<compile_context>
chip_gen: v7x
topology: tpu7x:2x2x1
jax: 0.10.0
libtpu: 0.0.40
codegen_flags: <defaults>
</compile_context>

<pallas_src>
import math
import functools

import jax
import jax.numpy as jnp
import numpy as np
from jax.experimental import pallas as pl
from jax.experimental.pallas import tpu as pltpu

# ----- model hyper-parameters (small, consistent with the module) -----
D_MODEL = 32
NHEAD = 4
HEAD_DIM = D_MODEL // NHEAD
DIM_FF = 64
L_TGT = 8     # target sequence length
S_MEM = 8     # memory sequence length
BATCH = 2
EPS = 1e-5
SCALE = 1.0 / math.sqrt(HEAD_DIM)

# ----- packed-weight column offsets (w_pack is (E, 320); every block pre-transposed: y = x @ W) -----
_C_SA_QKV = 0                          # (E, 3E) fused self-attn QKV
_C_CA_Q = _C_SA_QKV + 3 * D_MODEL      # 96:  (E, E)  cross-attn Q
_C_CA_KV = _C_CA_Q + D_MODEL           # 128: (E, 2E) cross-attn fused KV
_C_SA_OUT = _C_CA_KV + 2 * D_MODEL     # 192: (E, E)  self-attn out-proj (transposed)
_C_CA_OUT = _C_SA_OUT + D_MODEL        # 224: (E, E)  cross-attn out-proj (transposed)
_C_FF1 = _C_CA_OUT + D_MODEL           # 256: (E, FF) linear1 (transposed)
_C_END = _C_FF1 + DIM_FF               # 320

# ----- packed bias/LN rows (b_pack is (13, 128); each row holds one vector in lanes [0:len)) -----
(_R_SA_QKV_B, _R_SA_OUT_B, _R_CA_Q_B, _R_CA_KV_B, _R_CA_OUT_B,
 _R_FF1_B, _R_FF2_B,
 _R_N1_G, _R_N1_B, _R_N2_G, _R_N2_B, _R_N3_G, _R_N3_B) = range(13)


# ----------------------- kernel helpers -----------------------
def _layernorm(x, gamma, beta):
    mu = jnp.mean(x, axis=-1, keepdims=True)
    var = jnp.mean((x - mu) ** 2, axis=-1, keepdims=True)
    return (x - mu) * jax.lax.rsqrt(var + EPS) * gamma + beta


def _heads_to_batch(x2d, n, l):
    """(n*l, H*HD) -> (H*n, l, HD). Head-major batch dim; only leading-dim reshape +
    last-dim slices + axis-0 concat (no minor-dim transposes)."""
    x3 = x2d.reshape(n, l, D_MODEL)
    return jnp.concatenate(
        [x3[:, :, h * HEAD_DIM:(h + 1) * HEAD_DIM] for h in range(NHEAD)], axis=0)


def _mha_core(q2d, k2d, v2d, w_outT, b_out, n, lq, lk):
    """q2d: (n*lq, E) already scaled; k2d/v2d: (n*lk, E); w_outT: (E, E) pre-transposed.
    Returns (n*lq, E)."""
    qb = _heads_to_batch(q2d, n, lq)      # (H*n, lq, HD)
    kb = _heads_to_batch(k2d, n, lk)      # (H*n, lk, HD)
    vb = _heads_to_batch(v2d, n, lk)      # (H*n, lk, HD)
    s = jnp.einsum('bqd,bkd->bqk', qb, kb, preferred_element_type=jnp.float32)
    p = jax.nn.softmax(s, axis=-1)
    o = jnp.einsum('bqk,bkd->bqd', p, vb, preferred_element_type=jnp.float32)  # (H*n, lq, HD)

    # Output projection accumulated per head (no lane concatenate of heads).
    out = b_out                            # (1, E) broadcasts
    for h in range(NHEAD):
        oh = o[h * n:(h + 1) * n].reshape(n * lq, HEAD_DIM)
        out = out + jnp.dot(oh, w_outT[h * HEAD_DIM:(h + 1) * HEAD_DIM, :],
                            preferred_element_type=jnp.float32)
    return out


# ----------------------- Pallas kernel -----------------------
def decoder_layer_kernel(x_ref, m_ref, w_ref, w2_ref, b_ref, out_ref, *, n, l, s):
    E, FF = D_MODEL, DIM_FF
    x = x_ref[...]      # (n*l, E) target rows, batch-major
    m = m_ref[...]      # (n*s, E) memory rows, batch-major
    W = w_ref[...]      # (E, 320) packed pre-transposed weights
    W2 = w2_ref[...]    # (FF, E)  pre-transposed linear2
    B = b_ref[...]      # (13, 128) packed biases / LN params

    def brow(r, width):
        return B[r:r + 1, 0:width]                       # (1, width)

    # ---- self-attention block (fused QKV) ----
    qkv = jnp.dot(x, W[:, _C_SA_QKV:_C_CA_Q],
                  preferred_element_type=jnp.float32) + brow(_R_SA_QKV_B, 3 * E)
    sa = _mha_core(qkv[:, 0:E] * SCALE, qkv[:, E:2 * E], qkv[:, 2 * E:3 * E],
                   W[:, _C_SA_OUT:_C_SA_OUT + E], brow(_R_SA_OUT_B, E), n, l, l)
    x = _layernorm(x + sa, brow(_R_N1_G, E), brow(_R_N1_B, E))

    # ---- cross-attention block (fused KV) ----
    q = jnp.dot(x, W[:, _C_CA_Q:_C_CA_Q + E],
                preferred_element_type=jnp.float32) + brow(_R_CA_Q_B, E)
    kv = jnp.dot(m, W[:, _C_CA_KV:_C_CA_KV + 2 * E],
                 preferred_element_type=jnp.float32) + brow(_R_CA_KV_B, 2 * E)
    ca = _mha_core(q * SCALE, kv[:, 0:E], kv[:, E:2 * E],
                   W[:, _C_CA_OUT:_C_CA_OUT + E], brow(_R_CA_OUT_B, E), n, l, s)
    x = _layernorm(x + ca, brow(_R_N2_G, E), brow(_R_N2_B, E))

    # ---- feed-forward block (relu) ----
    h = jnp.maximum(jnp.dot(x, W[:, _C_FF1:_C_FF1 + FF],
                            preferred_element_type=jnp.float32) + brow(_R_FF1_B, FF), 0.0)
    y = jnp.dot(h, W2, preferred_element_type=jnp.float32) + brow(_R_FF2_B, E)
    x = _layernorm(x + y, brow(_R_N3_G, E), brow(_R_N3_B, E))

    out_ref[...] = x


# ----------------------- wrapper -----------------------
@jax.jit
def transformer_decoder_layer(tgt, memory, params):
    """tgt: (L, N, E), memory: (S, N, E) — PyTorch (seq, batch, embed) layout."""
    L, N, E = tgt.shape
    S = memory.shape[0]
    p = params

    # batch-major 2D folds for the projections
    x2d = jnp.transpose(tgt, (1, 0, 2)).reshape(N * L, E)
    m2d = jnp.transpose(memory, (1, 0, 2)).reshape(N * S, E)

    # pack all pre-transposed weights into one operand (plus FFN-2)
    w_pack = jnp.concatenate([
        p["sa_in_w"].T,              # (E, 3E)
        p["ca_in_w"][0:E, :].T,      # (E, E)   cross-attn Q
        p["ca_in_w"][E:3 * E, :].T,  # (E, 2E)  cross-attn KV
        p["sa_out_w"].T,             # (E, E)
        p["ca_out_w"].T,             # (E, E)
        p["l1_w"].T,                 # (E, FF)
    ], axis=1).astype(jnp.float32)   # (E, 320)
    w2t = p["l2_w"].T.astype(jnp.float32)   # (FF, E)

    def row(v):
        v = v.reshape(-1).astype(jnp.float32)
        return jnp.pad(v, (0, 128 - v.shape[0]))[None, :]

    b_pack = jnp.concatenate([
        row(p["sa_in_b"]), row(p["sa_out_b"]),
        row(p["ca_in_b"][:, 0:E]), row(p["ca_in_b"][:, E:3 * E]), row(p["ca_out_b"]),
        row(p["l1_b"]), row(p["l2_b"]),
        row(p["n1_g"]), row(p["n1_b"]),
        row(p["n2_g"]), row(p["n2_b"]),
        row(p["n3_g"]), row(p["n3_b"]),
    ], axis=0)                       # (13, 128)

    kernel = functools.partial(decoder_layer_kernel, n=N, l=L, s=S)
    vmem = pl.BlockSpec(memory_space=pltpu.MemorySpace.VMEM)

    out2d = pl.pallas_call(
        kernel,
        out_shape=jax.ShapeDtypeStruct((N * L, E), jnp.float32),
        in_specs=[vmem, vmem, vmem, vmem, vmem],
        out_specs=vmem,
    )(x2d, m2d, w_pack, w2t, b_pack)

    return jnp.transpose(out2d.reshape(N, L, E), (1, 0, 2))   # back to (L, N, E)


# ----------------------- pure-JAX reference -----------------------
def _ref_mha(q_in, kv_in, in_w, in_b, out_w, out_b):
    E = D_MODEL
    q = q_in @ in_w[:E].T + in_b[0, :E]
    k = kv_in @ in_w[E:2 * E].T + in_b[0, E:2 * E]
    v = kv_in @ in_w[2 * E:].T + in_b[0, 2 * E:]
    Lq, Lk = q.shape[0], k.shape[0]
    qh = q.reshape(Lq, NHEAD, HEAD_DIM).transpose(1, 0, 2) / math.sqrt(HEAD_DIM)
    kh = k.reshape(Lk, NHEAD, HEAD_DIM).transpose(1, 0, 2)
    vh = v.reshape(Lk, NHEAD, HEAD_DIM).transpose(1, 0, 2)
    p = jax.nn.softmax(jnp.einsum("hld,hsd->hls", qh, kh), axis=-1)
    o = jnp.einsum("hls,hsd->hld", p, vh).transpose(1, 0, 2).reshape(Lq, E)
    return o @ out_w.T + out_b[0]


def _ref_layer_single(tgt, mem, p):
    def ln(x, g, b):
        mu = x.mean(-1, keepdims=True)
        var = ((x - mu) ** 2).mean(-1, keepdims=True)
        return (x - mu) / jnp.sqrt(var + EPS) * g[0] + b[0]

    x = ln(tgt + _ref_mha(tgt, tgt, p["sa_in_w"], p["sa_in_b"],
                          p["sa_out_w"], p["sa_out_b"]), p["n1_g"], p["n1_b"])
    x = ln(x + _ref_mha(x, mem, p["ca_in_w"], p["ca_in_b"],
                        p["ca_out_w"], p["ca_out_b"]), p["n2_g"], p["n2_b"])
    ff = jnp.maximum(x @ p["l1_w"].T + p["l1_b"][0], 0.0) @ p["l2_w"].T + p["l2_b"][0]
    return ln(x + ff, p["n3_g"], p["n3_b"])


def reference(tgt, memory, params):
    tgt_b = jnp.transpose(tgt, (1, 0, 2))
    mem_b = jnp.transpose(memory, (1, 0, 2))
    out = jax.vmap(lambda t, m: _ref_layer_single(t, m, params))(tgt_b, mem_b)
    return jnp.transpose(out, (1, 0, 2))


# ----------------------- parameter init -----------------------
def init_params(key):
    ks = jax.random.split(key, 16)
    s = 0.05
    p = {
        "sa_in_w": jax.random.normal(ks[0], (3 * D_MODEL, D_MODEL)) * s,
        "sa_in_b": jax.random.normal(ks[1], (1, 3 * D_MODEL)) * s,
        "sa_out_w": jax.random.normal(ks[2], (D_MODEL, D_MODEL)) * s,
        "sa_out_b": jax.random.normal(ks[3], (1, D_MODEL)) * s,
        "ca_in_w": jax.random.normal(ks[4], (3 * D_MODEL, D_MODEL)) * s,
        "ca_in_b": jax.random.normal(ks[5], (1, 3 * D_MODEL)) * s,
        "ca_out_w": jax.random.normal(ks[6], (D_MODEL, D_MODEL)) * s,
        "ca_out_b": jax.random.normal(ks[7], (1, D_MODEL)) * s,
        "l1_w": jax.random.normal(ks[8], (DIM_FF, D_MODEL)) * s,
        "l1_b": jax.random.normal(ks[9], (1, DIM_FF)) * s,
        "l2_w": jax.random.normal(ks[10], (D_MODEL, DIM_FF)) * s,
        "l2_b": jax.random.normal(ks[11], (1, D_MODEL)) * s,
        "n1_g": 1.0 + jax.random.normal(ks[12], (1, D_MODEL)) * s,
        "n1_b": jax.random.normal(ks[13], (1, D_MODEL)) * s,
        "n2_g": 1.0 + jax.random.normal(ks[14], (1, D_MODEL)) * s,
        "n2_b": jax.random.normal(ks[15], (1, D_MODEL)) * s,
        "n3_g": jnp.ones((1, D_MODEL)),
        "n3_b": jnp.zeros((1, D_MODEL)),
    }
    return {k: v.astype(jnp.float32) for k, v in p.items()}


if __name__ == "__main__":
    key = jax.random.PRNGKey(0)
    k_tgt, k_mem, k_par = jax.random.split(key, 3)

    tgt = jax.random.normal(k_tgt, (L_TGT, BATCH, D_MODEL), dtype=jnp.float32)
    memory = jax.random.normal(k_mem, (S_MEM, BATCH, D_MODEL), dtype=jnp.float32)
    params = init_params(k_par)

    out = jax.block_until_ready(transformer_decoder_layer(tgt, memory, params))
    ref = jax.block_until_ready(reference(tgt, memory, params))
    np.testing.assert_allclose(np.asarray(out), np.asarray(ref), rtol=2e-3, atol=2e-3)

    assert out.shape == (L_TGT, BATCH, D_MODEL)
    print("KERNEL_OK")
</pallas_src>

<mosaic_0001>
module attributes {stable_mosaic.version = 11 : i64} {
  func.func @decoder_layer_kernel(%arg0: memref<16x32xf32, #tpu.memory_space<vmem>>, %arg1: memref<16x32xf32, #tpu.memory_space<vmem>>, %arg2: memref<32x320xf32, #tpu.memory_space<vmem>>, %arg3: memref<64x32xf32, #tpu.memory_space<vmem>>, %arg4: memref<13x128xf32, #tpu.memory_space<vmem>>, %arg5: memref<16x32xf32, #tpu.memory_space<vmem>>) attributes {dimension_semantics = [], scalar_prefetch = 0 : i64, scratch_operands = 0 : i64, tpu.core_type = #tpu.core_type<tc>} {
    %c0 = arith.constant 0 : index
    %c0_0 = arith.constant 0 : index
    %0 = vector.load %arg0[%c0, %c0_0] : memref<16x32xf32, #tpu.memory_space<vmem>>, vector<16x32xf32>
    %c0_1 = arith.constant 0 : index
    %c0_2 = arith.constant 0 : index
    %1 = vector.load %arg1[%c0_1, %c0_2] : memref<16x32xf32, #tpu.memory_space<vmem>>, vector<16x32xf32>
    %c0_3 = arith.constant 0 : index
    %c0_4 = arith.constant 0 : index
    %2 = vector.load %arg2[%c0_3, %c0_4] : memref<32x320xf32, #tpu.memory_space<vmem>>, vector<32x320xf32>
    %c0_5 = arith.constant 0 : index
    %c0_6 = arith.constant 0 : index
    %3 = vector.load %arg3[%c0_5, %c0_6] : memref<64x32xf32, #tpu.memory_space<vmem>>, vector<64x32xf32>
    %c0_7 = arith.constant 0 : index
    %c0_8 = arith.constant 0 : index
    %4 = vector.load %arg4[%c0_7, %c0_8] : memref<13x128xf32, #tpu.memory_space<vmem>>, vector<13x128xf32>
    %5 = vector.extract_strided_slice %2 {offsets = [0, 0], sizes = [32, 96], strides = [1, 1]} : vector<32x320xf32> to vector<32x96xf32>
    %cst = arith.constant dense<0.000000e+00> : vector<16x96xf32>
    %6 = tpu.matmul %0, %5, %cst {dimension_numbers = #tpu.dot_dimension_numbers<[1], [0], [0], [1], [0, 0, 1, 1], [], []>} : vector<16x32xf32>, vector<32x96xf32>, vector<16x96xf32> -> vector<16x96xf32>
    %7 = vector.extract_strided_slice %4 {offsets = [0, 0], sizes = [1, 96], strides = [1, 1]} : vector<13x128xf32> to vector<1x96xf32>
    %8 = vector.broadcast %7 : vector<1x96xf32> to vector<16x96xf32>
    %9 = arith.addf %6, %8 : vector<16x96xf32>
    %10 = vector.extract_strided_slice %9 {offsets = [0, 0], sizes = [16, 32], strides = [1, 1]} : vector<16x96xf32> to vector<16x32xf32>
    %cst_9 = arith.constant 0.353553385 : f32
    %11 = vector.broadcast %cst_9 : f32 to vector<16x32xf32>
    %12 = arith.mulf %10, %11 : vector<16x32xf32>
    %13 = vector.extract_strided_slice %9 {offsets = [0, 32], sizes = [16, 32], strides = [1, 1]} : vector<16x96xf32> to vector<16x32xf32>
    %14 = vector.extract_strided_slice %9 {offsets = [0, 64], sizes = [16, 32], strides = [1, 1]} : vector<16x96xf32> to vector<16x32xf32>
    %15 = vector.extract_strided_slice %2 {offsets = [0, 192], sizes = [32, 32], strides = [1, 1]} : vector<32x320xf32> to vector<32x32xf32>
    %16 = vector.extract_strided_slice %4 {offsets = [1, 0], sizes = [1, 32], strides = [1, 1]} : vector<13x128xf32> to vector<1x32xf32>
    %17 = vector.shape_cast %12 : vector<16x32xf32> to vector<2x8x32xf32>
    %18 = vector.extract_strided_slice %17 {offsets = [0, 0, 0], sizes = [2, 8, 8], strides = [1, 1, 1]} : vector<2x8x32xf32> to vector<2x8x8xf32>
    %19 = vector.extract_strided_slice %17 {offsets = [0, 0, 8], sizes = [2, 8, 8], strides = [1, 1, 1]} : vector<2x8x32xf32> to vector<2x8x8xf32>
    %20 = vector.extract_strided_slice %17 {offsets = [0, 0, 16], sizes = [2, 8, 8], strides = [1, 1, 1]} : vector<2x8x32xf32> to vector<2x8x8xf32>
    %21 = vector.extract_strided_slice %17 {offsets = [0, 0, 24], sizes = [2, 8, 8], strides = [1, 1, 1]} : vector<2x8x32xf32> to vector<2x8x8xf32>
    %22 = tpu.concatenate %18, %19, %20, %21 in 0 : vector<2x8x8xf32>, vector<2x8x8xf32>, vector<2x8x8xf32>, vector<2x8x8xf32> -> vector<8x8x8xf32>
    %23 = vector.shape_cast %13 : vector<16x32xf32> to vector<2x8x32xf32>
    %24 = vector.extract_strided_slice %23 {offsets = [0, 0, 0], sizes = [2, 8, 8], strides = [1, 1, 1]} : vector<2x8x32xf32> to vector<2x8x8xf32>
    %25 = vector.extract_strided_slice %23 {offsets = [0, 0, 8], sizes = [2, 8, 8], strides = [1, 1, 1]} : vector<2x8x32xf32> to vector<2x8x8xf32>
    %26 = vector.extract_strided_slice %23 {offsets = [0, 0, 16], sizes = [2, 8, 8], strides = [1, 1, 1]} : vector<2x8x32xf32> to vector<2x8x8xf32>
    %27 = vector.extract_strided_slice %23 {offsets = [0, 0, 24], sizes = [2, 8, 8], strides = [1, 1, 1]} : vector<2x8x32xf32> to vector<2x8x8xf32>
    %28 = tpu.concatenate %24, %25, %26, %27 in 0 : vector<2x8x8xf32>, vector<2x8x8xf32>, vector<2x8x8xf32>, vector<2x8x8xf32> -> vector<8x8x8xf32>
    %29 = vector.shape_cast %14 : vector<16x32xf32> to vector<2x8x32xf32>
    %30 = vector.extract_strided_slice %29 {offsets = [0, 0, 0], sizes = [2, 8, 8], strides = [1, 1, 1]} : vector<2x8x32xf32> to vector<2x8x8xf32>
    %31 = vector.extract_strided_slice %29 {offsets = [0, 0, 8], sizes = [2, 8, 8], strides = [1, 1, 1]} : vector<2x8x32xf32> to vector<2x8x8xf32>
    %32 = vector.extract_strided_slice %29 {offsets = [0, 0, 16], sizes = [2, 8, 8], strides = [1, 1, 1]} : vector<2x8x32xf32> to vector<2x8x8xf32>
    %33 = vector.extract_strided_slice %29 {offsets = [0, 0, 24], sizes = [2, 8, 8], strides = [1, 1, 1]} : vector<2x8x32xf32> to vector<2x8x8xf32>
    %34 = tpu.concatenate %30, %31, %32, %33 in 0 : vector<2x8x8xf32>, vector<2x8x8xf32>, vector<2x8x8xf32>, vector<2x8x8xf32> -> vector<8x8x8xf32>
    "tpu.trace_start"() <{level = 10 : i32, message = "bqd,bkd->bqk"}> : () -> ()
    %cst_10 = arith.constant dense<0.000000e+00> : vector<8x8x8xf32>
    %35 = tpu.matmul %22, %28, %cst_10 {dimension_numbers = #tpu.dot_dimension_numbers<[2], [2], [1], [1], [0, 0, 0, 1, 1, 1], [0], [0]>} : vector<8x8x8xf32>, vector<8x8x8xf32>, vector<8x8x8xf32> -> vector<8x8x8xf32>
    "tpu.trace_stop"() : () -> ()
    %cst_11 = arith.constant dense<0xFF800000> : vector<8x8xf32>
    %36 = vector.multi_reduction <maximumf>, %35, %cst_11 [2] : vector<8x8x8xf32> to vector<8x8xf32>
    %cst_12 = arith.constant 0xFF800000 : f32
    %37 = vector.broadcast %cst_12 : f32 to vector<8x8xf32>
    %38 = arith.maximumf %37, %36 : vector<8x8xf32>
    %39 = vector.shape_cast %38 : vector<8x8xf32> to vector<8x8x1xf32>
    %40 = vector.broadcast %39 : vector<8x8x1xf32> to vector<8x8x8xf32>
    %41 = arith.subf %35, %40 : vector<8x8x8xf32>
    %42 = math.exp %41 : vector<8x8x8xf32>
    %cst_13 = arith.constant dense<0.000000e+00> : vector<8x8xf32>
    %43 = vector.multi_reduction <add>, %42, %cst_13 [2] : vector<8x8x8xf32> to vector<8x8xf32>
    %44 = vector.shape_cast %43 : vector<8x8xf32> to vector<8x8x1xf32>
    %45 = vector.broadcast %44 : vector<8x8x1xf32> to vector<8x8x8xf32>
    %46 = arith.divf %42, %45 : vector<8x8x8xf32>
    "tpu.trace_start"() <{level = 10 : i32, message = "bqk,bkd->bqd"}> : () -> ()
    %cst_14 = arith.constant dense<0.000000e+00> : vector<8x8x8xf32>
    %47 = tpu.matmul %46, %34, %cst_14 {dimension_numbers = #tpu.dot_dimension_numbers<[2], [1], [1], [2], [0, 0, 0, 1, 1, 2], [0], [0]>} : vector<8x8x8xf32>, vector<8x8x8xf32>, vector<8x8x8xf32> -> vector<8x8x8xf32>
    "tpu.trace_stop"() : () -> ()
    %48 = vector.extract_strided_slice %47 {offsets = [0, 0, 0], sizes = [2, 8, 8], strides = [1, 1, 1]} : vector<8x8x8xf32> to vector<2x8x8xf32>
    %49 = vector.shape_cast %48 : vector<2x8x8xf32> to vector<16x8xf32>
    %50 = vector.extract_strided_slice %15 {offsets = [0, 0], sizes = [8, 32], strides = [1, 1]} : vector<32x32xf32> to vector<8x32xf32>
    %cst_15 = arith.constant dense<0.000000e+00> : vector<16x32xf32>
    %51 = tpu.matmul %49, %50, %cst_15 {dimension_numbers = #tpu.dot_dimension_numbers<[1], [0], [0], [1], [0, 0, 1, 1], [], []>} : vector<16x8xf32>, vector<8x32xf32>, vector<16x32xf32> -> vector<16x32xf32>
    %52 = vector.broadcast %16 : vector<1x32xf32> to vector<16x32xf32>
    %53 = arith.addf %52, %51 : vector<16x32xf32>
    %54 = vector.extract_strided_slice %47 {offsets = [2, 0, 0], sizes = [2, 8, 8], strides = [1, 1, 1]} : vector<8x8x8xf32> to vector<2x8x8xf32>
    %55 = vector.shape_cast %54 : vector<2x8x8xf32> to vector<16x8xf32>
    %56 = vector.extract_strided_slice %15 {offsets = [8, 0], sizes = [8, 32], strides = [1, 1]} : vector<32x32xf32> to vector<8x32xf32>
    %cst_16 = arith.constant dense<0.000000e+00> : vector<16x32xf32>
    %57 = tpu.matmul %55, %56, %cst_16 {dimension_numbers = #tpu.dot_dimension_numbers<[1], [0], [0], [1], [0, 0, 1, 1], [], []>} : vector<16x8xf32>, vector<8x32xf32>, vector<16x32xf32> -> vector<16x32xf32>
    %58 = arith.addf %53, %57 : vector<16x32xf32>
    %59 = vector.extract_strided_slice %47 {offsets = [4, 0, 0], sizes = [2, 8, 8], strides = [1, 1, 1]} : vector<8x8x8xf32> to vector<2x8x8xf32>
    %60 = vector.shape_cast %59 : vector<2x8x8xf32> to vector<16x8xf32>
    %61 = vector.extract_strided_slice %15 {offsets = [16, 0], sizes = [8, 32], strides = [1, 1]} : vector<32x32xf32> to vector<8x32xf32>
    %cst_17 = arith.constant dense<0.000000e+00> : vector<16x32xf32>
    %62 = tpu.matmul %60, %61, %cst_17 {dimension_numbers = #tpu.dot_dimension_numbers<[1], [0], [0], [1], [0, 0, 1, 1], [], []>} : vector<16x8xf32>, vector<8x32xf32>, vector<16x32xf32> -> vector<16x32xf32>
    %63 = arith.addf %58, %62 : vector<16x32xf32>
    %64 = vector.extract_strided_slice %47 {offsets = [6, 0, 0], sizes = [2, 8, 8], strides = [1, 1, 1]} : vector<8x8x8xf32> to vector<2x8x8xf32>
    %65 = vector.shape_cast %64 : vector<2x8x8xf32> to vector<16x8xf32>
    %66 = vector.extract_strided_slice %15 {offsets = [24, 0], sizes = [8, 32], strides = [1, 1]} : vector<32x32xf32> to vector<8x32xf32>
    %cst_18 = arith.constant dense<0.000000e+00> : vector<16x32xf32>
    %67 = tpu.matmul %65, %66, %cst_18 {dimension_numbers = #tpu.dot_dimension_numbers<[1], [0], [0], [1], [0, 0, 1, 1], [], []>} : vector<16x8xf32>, vector<8x32xf32>, vector<16x32xf32> -> vector<16x32xf32>
    %68 = arith.addf %63, %67 : vector<16x32xf32>
    %69 = arith.addf %0, %68 : vector<16x32xf32>
    %70 = vector.extract_strided_slice %4 {offsets = [7, 0], sizes = [1, 32], strides = [1, 1]} : vector<13x128xf32> to vector<1x32xf32>
    %71 = vector.extract_strided_slice %4 {offsets = [8, 0], sizes = [1, 32], strides = [1, 1]} : vector<13x128xf32> to vector<1x32xf32>
    %cst_19 = arith.constant dense<0.000000e+00> : vector<16xf32>
    %72 = vector.multi_reduction <add>, %69, %cst_19 [1] : vector<16x32xf32> to vector<16xf32>
    %73 = vector.shape_cast %72 : vector<16xf32> to vector<16x1xf32>
    %cst_20 = arith.constant 3.200000e+01 : f32
    %74 = vector.broadcast %cst_20 : f32 to vector<16x1xf32>
    %75 = arith.divf %73, %74 : vector<16x1xf32>
    %76 = vector.broadcast %75 : vector<16x1xf32> to vector<16x32xf32>
    %77 = arith.subf %69, %76 : vector<16x32xf32>
    %78 = arith.mulf %77, %77 : vector<16x32xf32>
    %cst_21 = arith.constant dense<0.000000e+00> : vector<16xf32>
    %79 = vector.multi_reduction <add>, %78, %cst_21 [1] : vector<16x32xf32> to vector<16xf32>
    %80 = vector.shape_cast %79 : vector<16xf32> to vector<16x1xf32>
    %cst_22 = arith.constant 3.200000e+01 : f32
    %81 = vector.broadcast %cst_22 : f32 to vector<16x1xf32>
    %82 = arith.divf %80, %81 : vector<16x1xf32>
    %83 = vector.broadcast %75 : vector<16x1xf32> to vector<16x32xf32>
    %84 = arith.subf %69, %83 : vector<16x32xf32>
    %cst_23 = arith.constant 9.99999974E-6 : f32
    %85 = vector.broadcast %cst_23 : f32 to vector<16x1xf32>
    %86 = arith.addf %82, %85 : vector<16x1xf32>
    %87 = math.rsqrt %86 : vector<16x1xf32>
    %88 = vector.broadcast %87 : vector<16x1xf32> to vector<16x32xf32>
    %89 = arith.mulf %84, %88 : vector<16x32xf32>
    %90 = vector.broadcast %70 : vector<1x32xf32> to vector<16x32xf32>
    %91 = arith.mulf %89, %90 : vector<16x32xf32>
    %92 = vector.broadcast %71 : vector<1x32xf32> to vector<16x32xf32>
    %93 = arith.addf %91, %92 : vector<16x32xf32>
    %94 = vector.extract_strided_slice %2 {offsets = [0, 96], sizes = [32, 32], strides = [1, 1]} : vector<32x320xf32> to vector<32x32xf32>
    %cst_24 = arith.constant dense<0.000000e+00> : vector<16x32xf32>
    %95 = tpu.matmul %93, %94, %cst_24 {dimension_numbers = #tpu.dot_dimension_numbers<[1], [0], [0], [1], [0, 0, 1, 1], [], []>} : vector<16x32xf32>, vector<32x32xf32>, vector<16x32xf32> -> vector<16x32xf32>
    %96 = vector.extract_strided_slice %4 {offsets = [2, 0], sizes = [1, 32], strides = [1, 1]} : vector<13x128xf32> to vector<1x32xf32>
    %97 = vector.broadcast %96 : vector<1x32xf32> to vector<16x32xf32>
    %98 = arith.addf %95, %97 : vector<16x32xf32>
    %99 = vector.extract_strided_slice %2 {offsets = [0, 128], sizes = [32, 64], strides = [1, 1]} : vector<32x320xf32> to vector<32x64xf32>
    %cst_25 = arith.constant dense<0.000000e+00> : vector<16x64xf32>
    %100 = tpu.matmul %1, %99, %cst_25 {dimension_numbers = #tpu.dot_dimension_numbers<[1], [0], [0], [1], [0, 0, 1, 1], [], []>} : vector<16x32xf32>, vector<32x64xf32>, vector<16x64xf32> -> vector<16x64xf32>
    %101 = vector.extract_strided_slice %4 {offsets = [3, 0], sizes = [1, 64], strides = [1, 1]} : vector<13x128xf32> to vector<1x64xf32>
    %102 = vector.broadcast %101 : vector<1x64xf32> to vector<16x64xf32>
    %103 = arith.addf %100, %102 : vector<16x64xf32>
    %cst_26 = arith.constant 0.353553385 : f32
    %104 = vector.broadcast %cst_26 : f32 to vector<16x32xf32>
    %105 = arith.mulf %98, %104 : vector<16x32xf32>
    %106 = vector.extract_strided_slice %103 {offsets = [0, 0], sizes = [16, 32], strides = [1, 1]} : vector<16x64xf32> to vector<16x32xf32>
    %107 = vector.extract_strided_slice %103 {offsets = [0, 32], sizes = [16, 32], strides = [1, 1]} : vector<16x64xf32> to vector<16x32xf32>
    %108 = vector.extract_strided_slice %2 {offsets = [0, 224], sizes = [32, 32], strides = [1, 1]} : vector<32x320xf32> to vector<32x32xf32>
    %109 = vector.extract_strided_slice %4 {offsets = [4, 0], sizes = [1, 32], strides = [1, 1]} : vector<13x128xf32> to vector<1x32xf32>
    %110 = vector.shape_cast %105 : vector<16x32xf32> to vector<2x8x32xf32>
    %111 = vector.extract_strided_slice %110 {offsets = [0, 0, 0], sizes = [2, 8, 8], strides = [1, 1, 1]} : vector<2x8x32xf32> to vector<2x8x8xf32>
    %112 = vector.extract_strided_slice %110 {offsets = [0, 0, 8], sizes = [2, 8, 8], strides = [1, 1, 1]} : vector<2x8x32xf32> to vector<2x8x8xf32>
    %113 = vector.extract_strided_slice %110 {offsets = [0, 0, 16], sizes = [2, 8, 8], strides = [1, 1, 1]} : vector<2x8x32xf32> to vector<2x8x8xf32>
    %114 = vector.extract_strided_slice %110 {offsets = [0, 0, 24], sizes = [2, 8, 8], strides = [1, 1, 1]} : vector<2x8x32xf32> to vector<2x8x8xf32>
    %115 = tpu.concatenate %111, %112, %113, %114 in 0 : vector<2x8x8xf32>, vector<2x8x8xf32>, vector<2x8x8xf32>, vector<2x8x8xf32> -> vector<8x8x8xf32>
    %116 = vector.shape_cast %106 : vector<16x32xf32> to vector<2x8x32xf32>
    %117 = vector.extract_strided_slice %116 {offsets = [0, 0, 0], sizes = [2, 8, 8], strides = [1, 1, 1]} : vector<2x8x32xf32> to vector<2x8x8xf32>
    %118 = vector.extract_strided_slice %116 {offsets = [0, 0, 8], sizes = [2, 8, 8], strides = [1, 1, 1]} : vector<2x8x32xf32> to vector<2x8x8xf32>
    %119 = vector.extract_strided_slice %116 {offsets = [0, 0, 16], sizes = [2, 8, 8], strides = [1, 1, 1]} : vector<2x8x32xf32> to vector<2x8x8xf32>
    %120 = vector.extract_strided_slice %116 {offsets = [0, 0, 24], sizes = [2, 8, 8], strides = [1, 1, 1]} : vector<2x8x32xf32> to vector<2x8x8xf32>
    %121 = tpu.concatenate %117, %118, %119, %120 in 0 : vector<2x8x8xf32>, vector<2x8x8xf32>, vector<2x8x8xf32>, vector<2x8x8xf32> -> vector<8x8x8xf32>
    %122 = vector.shape_cast %107 : vector<16x32xf32> to vector<2x8x32xf32>
    %123 = vector.extract_strided_slice %122 {offsets = [0, 0, 0], sizes = [2, 8, 8], strides = [1, 1, 1]} : vector<2x8x32xf32> to vector<2x8x8xf32>
    %124 = vector.extract_strided_slice %122 {offsets = [0, 0, 8], sizes = [2, 8, 8], strides = [1, 1, 1]} : vector<2x8x32xf32> to vector<2x8x8xf32>
    %125 = vector.extract_strided_slice %122 {offsets = [0, 0, 16], sizes = [2, 8, 8], strides = [1, 1, 1]} : vector<2x8x32xf32> to vector<2x8x8xf32>
    %126 = vector.extract_strided_slice %122 {offsets = [0, 0, 24], sizes = [2, 8, 8], strides = [1, 1, 1]} : vector<2x8x32xf32> to vector<2x8x8xf32>
    %127 = tpu.concatenate %123, %124, %125, %126 in 0 : vector<2x8x8xf32>, vector<2x8x8xf32>, vector<2x8x8xf32>, vector<2x8x8xf32> -> vector<8x8x8xf32>
    "tpu.trace_start"() <{level = 10 : i32, message = "bqd,bkd->bqk"}> : () -> ()
    %cst_27 = arith.constant dense<0.000000e+00> : vector<8x8x8xf32>
    %128 = tpu.matmul %115, %121, %cst_27 {dimension_numbers = #tpu.dot_dimension_numbers<[2], [2], [1], [1], [0, 0, 0, 1, 1, 1], [0], [0]>} : vector<8x8x8xf32>, vector<8x8x8xf32>, vector<8x8x8xf32> -> vector<8x8x8xf32>
    "tpu.trace_stop"() : () -> ()
    %cst_28 = arith.constant dense<0xFF800000> : vector<8x8xf32>
    %129 = vector.multi_reduction <maximumf>, %128, %cst_28 [2] : vector<8x8x8xf32> to vector<8x8xf32>
    %cst_29 = arith.constant 0xFF800000 : f32
    %130 = vector.broadcast %cst_29 : f32 to vector<8x8xf32>
    %131 = arith.maximumf %130, %129 : vector<8x8xf32>
    %132 = vector.shape_cast %131 : vector<8x8xf32> to vector<8x8x1xf32>
    %133 = vector.broadcast %132 : vector<8x8x1xf32> to vector<8x8x8xf32>
    %134 = arith.subf %128, %133 : vector<8x8x8xf32>
    %135 = math.exp %134 : vector<8x8x8xf32>
    %cst_30 = arith.constant dense<0.000000e+00> : vector<8x8xf32>
    %136 = vector.multi_reduction <add>, %135, %cst_30 [2] : vector<8x8x8xf32> to vector<8x8xf32>
    %137 = vector.shape_cast %136 : vector<8x8xf32> to vector<8x8x1xf32>
    %138 = vector.broadcast %137 : vector<8x8x1xf32> to vector<8x8x8xf32>
    %139 = arith.divf %135, %138 : vector<8x8x8xf32>
    "tpu.trace_start"() <{level = 10 : i32, message = "bqk,bkd->bqd"}> : () -> ()
    %cst_31 = arith.constant dense<0.000000e+00> : vector<8x8x8xf32>
    %140 = tpu.matmul %139, %127, %cst_31 {dimension_numbers = #tpu.dot_dimension_numbers<[2], [1], [1], [2], [0, 0, 0, 1, 1, 2], [0], [0]>} : vector<8x8x8xf32>, vector<8x8x8xf32>, vector<8x8x8xf32> -> vector<8x8x8xf32>
    "tpu.trace_stop"() : () -> ()
    %141 = vector.extract_strided_slice %140 {offsets = [0, 0, 0], sizes = [2, 8, 8], strides = [1, 1, 1]} : vector<8x8x8xf32> to vector<2x8x8xf32>
    %142 = vector.shape_cast %141 : vector<2x8x8xf32> to vector<16x8xf32>
    %143 = vector.extract_strided_slice %108 {offsets = [0, 0], sizes = [8, 32], strides = [1, 1]} : vector<32x32xf32> to vector<8x32xf32>
    %cst_32 = arith.constant dense<0.000000e+00> : vector<16x32xf32>
    %144 = tpu.matmul %142, %143, %cst_32 {dimension_numbers = #tpu.dot_dimension_numbers<[1], [0], [0], [1], [0, 0, 1, 1], [], []>} : vector<16x8xf32>, vector<8x32xf32>, vector<16x32xf32> -> vector<16x32xf32>
    %145 = vector.broadcast %109 : vector<1x32xf32> to vector<16x32xf32>
    %146 = arith.addf %145, %144 : vector<16x32xf32>
    %147 = vector.extract_strided_slice %140 {offsets = [2, 0, 0], sizes = [2, 8, 8], strides = [1, 1, 1]} : vector<8x8x8xf32> to vector<2x8x8xf32>
    %148 = vector.shape_cast %147 : vector<2x8x8xf32> to vector<16x8xf32>
    %149 = vector.extract_strided_slice %108 {offsets = [8, 0], sizes = [8, 32], strides = [1, 1]} : vector<32x32xf32> to vector<8x32xf32>
    %cst_33 = arith.constant dense<0.000000e+00> : vector<16x32xf32>
    %150 = tpu.matmul %148, %149, %cst_33 {dimension_numbers = #tpu.dot_dimension_numbers<[1], [0], [0], [1], [0, 0, 1, 1], [], []>} : vector<16x8xf32>, vector<8x32xf32>, vector<16x32xf32> -> vector<16x32xf32>
    %151 = arith.addf %146, %150 : vector<16x32xf32>
    %152 = vector.extract_strided_slice %140 {offsets = [4, 0, 0], sizes = [2, 8, 8], strides = [1, 1, 1]} : vector<8x8x8xf32> to vector<2x8x8xf32>
    %153 = vector.shape_cast %152 : vector<2x8x8xf32> to vector<16x8xf32>
    %154 = vector.extract_strided_slice %108 {offsets = [16, 0], sizes = [8, 32], strides = [1, 1]} : vector<32x32xf32> to vector<8x32xf32>
    %cst_34 = arith.constant dense<0.000000e+00> : vector<16x32xf32>
    %155 = tpu.matmul %153, %154, %cst_34 {dimension_numbers = #tpu.dot_dimension_numbers<[1], [0], [0], [1], [0, 0, 1, 1], [], []>} : vector<16x8xf32>, vector<8x32xf32>, vector<16x32xf32> -> vector<16x32xf32>
    %156 = arith.addf %151, %155 : vector<16x32xf32>
    %157 = vector.extract_strided_slice %140 {offsets = [6, 0, 0], sizes = [2, 8, 8], strides = [1, 1, 1]} : vector<8x8x8xf32> to vector<2x8x8xf32>
    %158 = vector.shape_cast %157 : vector<2x8x8xf32> to vector<16x8xf32>
    %159 = vector.extract_strided_slice %108 {offsets = [24, 0], sizes = [8, 32], strides = [1, 1]} : vector<32x32xf32> to vector<8x32xf32>
    %cst_35 = arith.constant dense<0.000000e+00> : vector<16x32xf32>
    %160 = tpu.matmul %158, %159, %cst_35 {dimension_numbers = #tpu.dot_dimension_numbers<[1], [0], [0], [1], [0, 0, 1, 1], [], []>} : vector<16x8xf32>, vector<8x32xf32>, vector<16x32xf32> -> vector<16x32xf32>
    %161 = arith.addf %156, %160 : vector<16x32xf32>
    %162 = arith.addf %93, %161 : vector<16x32xf32>
    %163 = vector.extract_strided_slice %4 {offsets = [9, 0], sizes = [1, 32], strides = [1, 1]} : vector<13x128xf32> to vector<1x32xf32>
    %164 = vector.extract_strided_slice %4 {offsets = [10, 0], sizes = [1, 32], strides = [1, 1]} : vector<13x128xf32> to vector<1x32xf32>
    %cst_36 = arith.constant dense<0.000000e+00> : vector<16xf32>
    %165 = vector.multi_reduction <add>, %162, %cst_36 [1] : vector<16x32xf32> to vector<16xf32>
    %166 = vector.shape_cast %165 : vector<16xf32> to vector<16x1xf32>
    %cst_37 = arith.constant 3.200000e+01 : f32
    %167 = vector.broadcast %cst_37 : f32 to vector<16x1xf32>
    %168 = arith.divf %166, %167 : vector<16x1xf32>
    %169 = vector.broadcast %168 : vector<16x1xf32> to vector<16x32xf32>
    %170 = arith.subf %162, %169 : vector<16x32xf32>
    %171 = arith.mulf %170, %170 : vector<16x32xf32>
    %cst_38 = arith.constant dense<0.000000e+00> : vector<16xf32>
    %172 = vector.multi_reduction <add>, %171, %cst_38 [1] : vector<16x32xf32> to vector<16xf32>
    %173 = vector.shape_cast %172 : vector<16xf32> to vector<16x1xf32>
    %cst_39 = arith.constant 3.200000e+01 : f32
    %174 = vector.broadcast %cst_39 : f32 to vector<16x1xf32>
    %175 = arith.divf %173, %174 : vector<16x1xf32>
    %176 = vector.broadcast %168 : vector<16x1xf32> to vector<16x32xf32>
    %177 = arith.subf %162, %176 : vector<16x32xf32>
    %cst_40 = arith.constant 9.99999974E-6 : f32
    %178 = vector.broadcast %cst_40 : f32 to vector<16x1xf32>
    %179 = arith.addf %175, %178 : vector<16x1xf32>
    %180 = math.rsqrt %179 : vector<16x1xf32>
    %181 = vector.broadcast %180 : vector<16x1xf32> to vector<16x32xf32>
    %182 = arith.mulf %177, %181 : vector<16x32xf32>
    %183 = vector.broadcast %163 : vector<1x32xf32> to vector<16x32xf32>
    %184 = arith.mulf %182, %183 : vector<16x32xf32>
    %185 = vector.broadcast %164 : vector<1x32xf32> to vector<16x32xf32>
    %186 = arith.addf %184, %185 : vector<16x32xf32>
    %187 = vector.extract_strided_slice %2 {offsets = [0, 256], sizes = [32, 64], strides = [1, 1]} : vector<32x320xf32> to vector<32x64xf32>
    %cst_41 = arith.constant dense<0.000000e+00> : vector<16x64xf32>
    %188 = tpu.matmul %186, %187, %cst_41 {dimension_numbers = #tpu.dot_dimension_numbers<[1], [0], [0], [1], [0, 0, 1, 1], [], []>} : vector<16x32xf32>, vector<32x64xf32>, vector<16x64xf32> -> vector<16x64xf32>
    %189 = vector.extract_strided_slice %4 {offsets = [5, 0], sizes = [1, 64], strides = [1, 1]} : vector<13x128xf32> to vector<1x64xf32>
    %190 = vector.broadcast %189 : vector<1x64xf32> to vector<16x64xf32>
    %191 = arith.addf %188, %190 : vector<16x64xf32>
    %cst_42 = arith.constant 0.000000e+00 : f32
    %192 = vector.broadcast %cst_42 : f32 to vector<16x64xf32>
    %193 = arith.maximumf %191, %192 : vector<16x64xf32>
    %cst_43 = arith.constant dense<0.000000e+00> : vector<16x32xf32>
    %194 = tpu.matmul %193, %3, %cst_43 {dimension_numbers = #tpu.dot_dimension_numbers<[1], [0], [0], [1], [0, 0, 1, 1], [], []>} : vector<16x64xf32>, vector<64x32xf32>, vector<16x32xf32> -> vector<16x32xf32>
    %195 = vector.extract_strided_slice %4 {offsets = [6, 0], sizes = [1, 32], strides = [1, 1]} : vector<13x128xf32> to vector<1x32xf32>
    %196 = vector.broadcast %195 : vector<1x32xf32> to vector<16x32xf32>
    %197 = arith.addf %194, %196 : vector<16x32xf32>
    %198 = arith.addf %186, %197 : vector<16x32xf32>
    %199 = vector.extract_strided_slice %4 {offsets = [11, 0], sizes = [1, 32], strides = [1, 1]} : vector<13x128xf32> to vector<1x32xf32>
    %200 = vector.extract_strided_slice %4 {offsets = [12, 0], sizes = [1, 32], strides = [1, 1]} : vector<13x128xf32> to vector<1x32xf32>
    %cst_44 = arith.constant dense<0.000000e+00> : vector<16xf32>
    %201 = vector.multi_reduction <add>, %198, %cst_44 [1] : vector<16x32xf32> to vector<16xf32>
    %202 = vector.shape_cast %201 : vector<16xf32> to vector<16x1xf32>
    %cst_45 = arith.constant 3.200000e+01 : f32
    %203 = vector.broadcast %cst_45 : f32 to vector<16x1xf32>
    %204 = arith.divf %202, %203 : vector<16x1xf32>
    %205 = vector.broadcast %204 : vector<16x1xf32> to vector<16x32xf32>
    %206 = arith.subf %198, %205 : vector<16x32xf32>
    %207 = arith.mulf %206, %206 : vector<16x32xf32>
    %cst_46 = arith.constant dense<0.000000e+00> : vector<16xf32>
    %208 = vector.multi_reduction <add>, %207, %cst_46 [1] : vector<16x32xf32> to vector<16xf32>
    %209 = vector.shape_cast %208 : vector<16xf32> to vector<16x1xf32>
    %cst_47 = arith.constant 3.200000e+01 : f32
    %210 = vector.broadcast %cst_47 : f32 to vector<16x1xf32>
    %211 = arith.divf %209, %210 : vector<16x1xf32>
    %212 = vector.broadcast %204 : vector<16x1xf32> to vector<16x32xf32>
    %213 = arith.subf %198, %212 : vector<16x32xf32>
    %cst_48 = arith.constant 9.99999974E-6 : f32
    %214 = vector.broadcast %cst_48 : f32 to vector<16x1xf32>
    %215 = arith.addf %211, %214 : vector<16x1xf32>
    %216 = math.rsqrt %215 : vector<16x1xf32>
    %217 = vector.broadcast %216 : vector<16x1xf32> to vector<16x32xf32>
    %218 = arith.mulf %213, %217 : vector<16x32xf32>
    %219 = vector.broadcast %199 : vector<1x32xf32> to vector<16x32xf32>
    %220 = arith.mulf %218, %219 : vector<16x32xf32>
    %221 = vector.broadcast %200 : vector<1x32xf32> to vector<16x32xf32>
    %222 = arith.addf %220, %221 : vector<16x32xf32>
    %c0_49 = arith.constant 0 : index
    %c0_50 = arith.constant 0 : index
    %223 = vector.load %arg5[%c0_49, %c0_50] : memref<16x32xf32, #tpu.memory_space<vmem>>, vector<16x32xf32>
    tpu.vector_store %arg5[%c0_49, %c0_50], %222 {strides = array<i32>} : memref<16x32xf32, #tpu.memory_space<vmem>>, vector<16x32xf32>,
    return
  }
}

</mosaic_0001>

<llo_original>
// kernel: transformer_decoder_layer.1
$region0: #{transformer_decoder_layer.1}
  #allocation0 [shape = 'u32[]', space=smem, size = 0x4, offset = 0x4, fixed_abs, tag = 'smem constant byte address 0x4 - core index']
  #allocation1 [shape = 'u32[144,128]{1,0:T(1,128)}', space=vmem, size = 0x12000, scoped, tag = 'internal scratch']
  %s0 = inlined_call_operand.vmem [shape: f32[16,32], index: 0, kind: input, shape index: {}]
  %s1 = inlined_call_operand.vmem [shape: f32[16,32], index: 1, kind: input, shape index: {}]
  %s2 = inlined_call_operand.vmem [shape: f32[32,320], index: 2, kind: input, shape index: {}]
  %s3 = inlined_call_operand.vmem [shape: f32[64,32], index: 3, kind: input, shape index: {}]
  %s4 = inlined_call_operand.vmem [shape: f32[13,128], index: 4, kind: input, shape index: {}]
  %s5 = inlined_call_operand.vmem [shape: f32[16,32], index: 5, kind: output, shape index: {}]
  %s6 = sld [smem:[#allocation0]]
  $region30: #{transformer_decoder_layer.1} parent=0
    _
  %s8 = ssub.s32 1, %s6
  %s9 = scalar_select 0, %s8, %s6
  // Predicated region
  $region2: #{transformer_decoder_layer.1} parent=0 // pred_check
    _
  $region3: #{transformer_decoder_layer.1} parent=0 // pred_check_branch
    %11 = sbr.rel (0) target = $region5
  $region4: #{transformer_decoder_layer.1} parent=0 // pred_region
    _
  $region5: #{transformer_decoder_layer.1} parent=0 // pred_fallthru
    _
  // Predicated region
  $region6: #{transformer_decoder_layer.1} parent=0 // pred_check
    _
  $region7: #{transformer_decoder_layer.1} parent=0 // pred_check_branch
    %13 = sbr.rel (0) target = $region9
  $region8: #{transformer_decoder_layer.1} parent=0 // pred_region
    _
  $region9: #{transformer_decoder_layer.1} parent=0 // pred_fallthru
    _
  // Predicated region
  $region10: #{transformer_decoder_layer.1} parent=0 // pred_check
    _
  $region11: #{transformer_decoder_layer.1} parent=0 // pred_check_branch
    %15 = sbr.rel (0) target = $region13
  $region12: #{transformer_decoder_layer.1} parent=0 // pred_region
    _
  $region13: #{transformer_decoder_layer.1} parent=0 // pred_fallthru
    _
  // Predicated region
  $region14: #{transformer_decoder_layer.1} parent=0 // pred_check
    _
  $region15: #{transformer_decoder_layer.1} parent=0 // pred_check_branch
    %17 = sbr.rel (0) target = $region17
  $region16: #{transformer_decoder_layer.1} parent=0 // pred_region
    _
  $region17: #{transformer_decoder_layer.1} parent=0 // pred_fallthru
    _
  // Predicated region
  $region18: #{transformer_decoder_layer.1} parent=0 // pred_check
    _
  $region19: #{transformer_decoder_layer.1} parent=0 // pred_check_branch
    %19 = sbr.rel (0) target = $region21
  $region20: #{transformer_decoder_layer.1} parent=0 // pred_region
    _
  $region21: #{transformer_decoder_layer.1} parent=0 // pred_fallthru
    _
  %v20 = vld [vmem:[%s0] sm:$0xff]
  %v21 = vld [vmem:[%s0 + $0x8] sm:$0xff]
  %v22 = vld [vmem:[%s1] sm:$0xff]
  %v23 = vld [vmem:[%s1 + $0x8] sm:$0xff]
  %v24 = vld [vmem:[%s2] sm:$0xff]
  %v25 = vld [vmem:[%s2 + $0x8] sm:$0xff]
  %v26 = vld [vmem:[%s2 + $0x10] sm:$0xff]
  %v27 = vld [vmem:[%s2 + $0x18] sm:$0xff]
  %v28 = vld [vmem:[%s2 + $0x20] sm:$0xff]
  %v29 = vld [vmem:[%s2 + $0x28] sm:$0xff]
  %v30 = vld [vmem:[%s2 + $0x30] sm:$0xff]
  %v31 = vld [vmem:[%s2 + $0x38] sm:$0xff]
  %v32 = vld [vmem:[%s2 + $0x40] sm:$0xff]
  %v33 = vld [vmem:[%s2 + $0x48] sm:$0xff]
  %v34 = vld [vmem:[%s2 + $0x50] sm:$0xff]
  %v35 = vld [vmem:[%s2 + $0x58] sm:$0xff]
  %v36 = vld [vmem:[%s3] sm:$0xff]
  %v37 = vld [vmem:[%s3 + $0x8] sm:$0xff]
  %v38 = vld [vmem:[%s3 + $0x10] sm:$0xff]
  %v39 = vld [vmem:[%s3 + $0x18] sm:$0xff]
  %v40 = vld [vmem:[%s3 + $0x20] sm:$0xff]
  %v41 = vld [vmem:[%s3 + $0x28] sm:$0xff]
  %v42 = vld [vmem:[%s3 + $0x30] sm:$0xff]
  %v43 = vld [vmem:[%s3 + $0x38] sm:$0xff]
  %v44 = vld [vmem:[%s4] sm:$0xff]
  %v45 = vld [vmem:[%s4 + $0x8] sm:$0x1f]
  %v46 = vlaneseq
  %v47 = vshrl.u32 %v46, 7
  %v48 = vsub.s32 0, %v47
  %v49 = vrot.slane %v44, %v48
  %vm50 = vcmask 261120
  %v52 = vsel %vm50, %v20, 0
  %v55 = vsel %vm50, %v21, 0
  %57 = vmatprep.subr.mxu0 0.0
  %58 = vmatpush1.msra.mxu0 %v24
  %59 = vmatprep.subr.mxu0 0.0
  %60 = vmatpush1.msra.mxu0 %v27
  %61 = vmatprep.subr.mxu0 0.0
  %62 = vmatpush1.msra.mxu0 %v30
  %63 = vmatprep.subr.mxu0 0.0
  %64 = vmatpush1.msra.mxu0 %v33
  %65 = vmatprep.subr.mxu0 0.0
  %66 = vmatpush1.msra.mxu0 0.0
  %67 = vmatprep.subr.mxu0 0.0
  %68 = vmatpush1.msra.mxu0 0.0
  %69 = vmatprep.subr.mxu0 0.0
  %70 = vmatpush1.msra.mxu0 0.0
  %71 = vmatprep.subr.mxu0 0.0
  %72 = vmatpush1.msra.mxu0 0.0
  %73 = vmatprep.subr.mxu0 0.0
  %74 = vmatpush1.msra.mxu0 0.0
  %75 = vmatprep.subr.mxu0 0.0
  %76 = vmatpush1.msra.mxu0 0.0
  %77 = vmatprep.subr.mxu0 0.0
  %78 = vmatpush1.msra.mxu0 0.0
  %79 = vmatprep.subr.mxu0 0.0
  %80 = vmatpush1.msra.mxu0 0.0
  %81 = vmatprep.subr.mxu0 0.0
  %82 = vmatpush1.msra.mxu0 0.0
  %83 = vmatprep.subr.mxu0 0.0
  %84 = vmatpush1.msra.mxu0 0.0
  %85 = vmatprep.subr.mxu0 0.0
  %86 = vmatpush1.msra.mxu0 0.0
  %87 = vmatprep.subr.mxu0 0.0
  %88 = vmatpush1.msra.mxu0 0.0
  %89 = vmatprep.subr.mxu0 0.0
  %90 = vmatpush1.msra.mxu0 0.0
  %91 = vmatprep.subr.mxu0 0.0
  %92 = vmatpush1.msra.mxu0 0.0
  %93 = vmatprep.subr.mxu0 0.0
  %94 = vmatpush1.msra.mxu0 0.0
  %95 = vmatprep.subr.mxu0 0.0
  %96 = vmatpush1.msra.mxu0 0.0
  %97 = vmatprep.subr.mxu0 0.0
  %98 = vmatpush1.msra.mxu0 0.0
  %99 = vmatprep.subr.mxu0 0.0
  %100 = vmatpush1.msra.mxu0 0.0
  %101 = vmatprep.subr.mxu0 0.0
  %102 = vmatpush1.msra.mxu0 0.0
  %103 = vmatprep.subr.mxu0 0.0
  %104 = vmatpush1.msra.mxu0 0.0
  %105 = vmatprep.subr.mxu0 0.0
  %106 = vmatpush1.msra.mxu0 0.0
  %107 = vmatprep.subr.mxu0 0.0
  %108 = vmatpush1.msra.mxu0 0.0
  %109 = vmatprep.subr.mxu0 0.0
  %110 = vmatpush1.msra.mxu0 0.0
  %111 = vmatprep.subr.mxu0 0.0
  %112 = vmatpush1.msra.mxu0 0.0
  %113 = vmatprep.subr.mxu0 0.0
  %114 = vmatpush1.msra.mxu0 0.0
  %115 = vmatprep.subr.mxu0 0.0
  %116 = vmatpush1.msra.mxu0 0.0
  %117 = vmatprep.subr.mxu0 0.0
  %118 = vmatpush1.msra.mxu0 0.0
  %119 = vmatprep.subr.mxu0 0.0
  %120 = vmatpush1.msra.mxu0 0.0
  %121 = vmatprep.mubr.f32.mxu0 0.0
  %122 = vmatmul.mubr.f32.gmra.mrb[0].mxu0 %v52
  %v123 = vpop.f32.mrb[0].mxu0
  %v124 = vadd.f32 %v49, %v123
  %v125 = vpop.f32.mrb[0].mxu0
  %126 = vmatprep.mubr.f32.mxu0 0.0
  %127 = vmatmul.mubr.f32.gmra.mrb[0].mxu0 %v55
  %v128 = vpop.f32.mrb[0].mxu0
  %v129 = vadd.f32 %v49, %v128
  %v130 = vpop.f32.mrb[0].mxu0
  %131 = vdwg.mxu0
  %v132 = vmul.f32 %v124, 0.35355338
  %v133 = vmul.f32 %v129, 0.35355338
  %136 = vrot.lane.b32.xlu0 %v132, 120
  %v137 = vpop.permute.xlu0 %136
  %138 = vrot.lane.b32.xlu0 %v133, 120
  %v139 = vpop.permute.xlu0 %138
  %140 = vrot.lane.b32.xlu0 %v132, 112
  %v141 = vpop.permute.xlu0 %140
  %142 = vrot.lane.b32.xlu0 %v133, 112
  %v143 = vpop.permute.xlu0 %142
  %144 = vrot.lane.b32.xlu0 %v132, 104
  %v145 = vpop.permute.xlu0 %144
  %146 = vrot.lane.b32.xlu0 %v133, 104
  %v147 = vpop.permute.xlu0 %146
  %150 = vrot.lane.b32.xlu0 %v124, 120
  %v151 = vpop.permute.xlu0 %150
  %152 = vrot.lane.b32.xlu0 %v129, 120
  %v153 = vpop.permute.xlu0 %152
  %154 = vrot.lane.b32.xlu0 %v124, 112
  %v155 = vpop.permute.xlu0 %154
  %156 = vrot.lane.b32.xlu0 %v129, 112
  %v157 = vpop.permute.xlu0 %156
  %158 = vrot.lane.b32.xlu0 %v124, 104
  %v159 = vpop.permute.xlu0 %158
  %160 = vrot.lane.b32.xlu0 %v129, 104
  %v161 = vpop.permute.xlu0 %160
  %162 = vrot.lane.b32.xlu0 %v124, 96
  %v163 = vpop.permute.xlu0 %162
  %vm164 = vcmask 64512
  %v165 = vsel %vm164, %v132, 0
  %v167 = vsel %vm164, %v163, 0
  %169 = vmatprep.subr.mxu0 0.0
  %170 = vmatpush1.xpose.msra.mxu0 %v167
  %171 = vmatprep.subr.mxu0 0.0
  %172 = vmatpush1.xpose.msra.mxu0 0.0
  %173 = vmatprep.subr.mxu0 0.0
  %174 = vmatpush1.xpose.msra.mxu0 0.0
  %175 = vmatprep.subr.mxu0 0.0
  %176 = vmatpush1.xpose.msra.mxu0 0.0
  %177 = vmatprep.subr.mxu0 0.0
  %178 = vmatpush1.xpose.msra.mxu0 0.0
  %179 = vmatprep.subr.mxu0 0.0
  %180 = vmatpush1.xpose.msra.mxu0 0.0
  %181 = vmatprep.subr.mxu0 0.0
  %182 = vmatpush1.xpose.msra.mxu0 0.0
  %183 = vmatprep.subr.mxu0 0.0
  %184 = vmatpush1.xpose.msra.mxu0 0.0
  %185 = vmatprep.subr.mxu0 0.0
  %186 = vmatpush1.xpose.msra.mxu0 0.0
  %187 = vmatprep.subr.mxu0 0.0
  %188 = vmatpush1.xpose.msra.mxu0 0.0
  %189 = vmatprep.subr.mxu0 0.0
  %190 = vmatpush1.xpose.msra.mxu0 0.0
  %191 = vmatprep.subr.mxu0 0.0
  %192 = vmatpush1.xpose.msra.mxu0 0.0
  %193 = vmatprep.subr.mxu0 0.0
  %194 = vmatpush1.xpose.msra.mxu0 0.0
  %195 = vmatprep.subr.mxu0 0.0
  %196 = vmatpush1.xpose.msra.mxu0 0.0
  %197 = vmatprep.subr.mxu0 0.0
  %198 = vmatpush1.xpose.msra.mxu0 0.0
  %199 = vmatprep.subr.mxu0 0.0
  %200 = vmatpush1.xpose.msra.mxu0 0.0
  %201 = vmatprep.subr.mxu0 0.0
  %202 = vmatpush1.xpose.msra.mxu0 0.0
  %203 = vmatprep.subr.mxu0 0.0
  %204 = vmatpush1.xpose.msra.mxu0 0.0
  %205 = vmatprep.subr.mxu0 0.0
  %206 = vmatpush1.xpose.msra.mxu0 0.0
  %207 = vmatprep.subr.mxu0 0.0
  %208 = vmatpush1.xpose.msra.mxu0 0.0
  %209 = vmatprep.subr.mxu0 0.0
  %210 = vmatpush1.xpose.msra.mxu0 0.0
  %211 = vmatprep.subr.mxu0 0.0
  %212 = vmatpush1.xpose.msra.mxu0 0.0
  %213 = vmatprep.subr.mxu0 0.0
  %214 = vmatpush1.xpose.msra.mxu0 0.0
  %215 = vmatprep.subr.mxu0 0.0
  %216 = vmatpush1.xpose.msra.mxu0 0.0
  %217 = vmatprep.subr.mxu0 0.0
  %218 = vmatpush1.xpose.msra.mxu0 0.0
  %219 = vmatprep.subr.mxu0 0.0
  %220 = vmatpush1.xpose.msra.mxu0 0.0
  %221 = vmatprep.subr.mxu0 0.0
  %222 = vmatpush1.xpose.msra.mxu0 0.0
  %223 = vmatprep.subr.mxu0 0.0
  %224 = vmatpush1.xpose.msra.mxu0 0.0
  %225 = vmatprep.subr.mxu0 0.0
  %226 = vmatpush1.xpose.msra.mxu0 0.0
  %227 = vmatprep.subr.mxu0 0.0
  %228 = vmatpush1.xpose.msra.mxu0 0.0
  %229 = vmatprep.subr.mxu0 0.0
  %230 = vmatpush1.xpose.msra.mxu0 0.0
  %231 = vmatprep.subr.mxu0 0.0
  %232 = vmatpush1.xpose.msra.mxu0 0.0
  %233 = vmatprep.mubr.f32.mxu0 0.0
  %234 = vmatmul.mubr.f32.gmra.mrb[0].mxu0 %v165
  %v235 = vpop.f32.mrb[0].mxu0
  %v236 = vadd.f32 0.0, %v235
  %v237 = vpop.f32.mrb[0].mxu0
  %238 = vdwg.mxu0
  %239 = vrot.lane.b32.xlu0 %v129, 96
  %v240 = vpop.permute.xlu0 %239
  %v241 = vsel %vm164, %v133, 0
  %v243 = vsel %vm164, %v240, 0
  %245 = vmatprep.subr.mxu0 0.0
  %246 = vmatpush1.xpose.msra.mxu0 %v243
  %247 = vmatprep.subr.mxu0 0.0
  %248 = vmatpush1.xpose.msra.mxu0 0.0
  %249 = vmatprep.subr.mxu0 0.0
  %250 = vmatpush1.xpose.msra.mxu0 0.0
  %251 = vmatprep.subr.mxu0 0.0
  %252 = vmatpush1.xpose.msra.mxu0 0.0
  %253 = vmatprep.subr.mxu0 0.0
  %254 = vmatpush1.xpose.msra.mxu0 0.0
  %255 = vmatprep.subr.mxu0 0.0
  %256 = vmatpush1.xpose.msra.mxu0 0.0
  %257 = vmatprep.subr.mxu0 0.0
  %258 = vmatpush1.xpose.msra.mxu0 0.0
  %259 = vmatprep.subr.mxu0 0.0
  %260 = vmatpush1.xpose.msra.mxu0 0.0
  %261 = vmatprep.subr.mxu0 0.0
  %262 = vmatpush1.xpose.msra.mxu0 0.0
  %263 = vmatprep.subr.mxu0 0.0
  %264 = vmatpush1.xpose.msra.mxu0 0.0
  %265 = vmatprep.subr.mxu0 0.0
  %266 = vmatpush1.xpose.msra.mxu0 0.0
  %267 = vmatprep.subr.mxu0 0.0
  %268 = vmatpush1.xpose.msra.mxu0 0.0
  %269 = vmatprep.subr.mxu0 0.0
  %270 = vmatpush1.xpose.msra.mxu0 0.0
  %271 = vmatprep.subr.mxu0 0.0
  %272 = vmatpush1.xpose.msra.mxu0 0.0
  %273 = vmatprep.subr.mxu0 0.0
  %274 = vmatpush1.xpose.msra.mxu0 0.0
  %275 = vmatprep.subr.mxu0 0.0
  %276 = vmatpush1.xpose.msra.mxu0 0.0
  %277 = vmatprep.subr.mxu0 0.0
  %278 = vmatpush1.xpose.msra.mxu0 0.0
  %279 = vmatprep.subr.mxu0 0.0
  %280 = vmatpush1.xpose.msra.mxu0 0.0
  %281 = vmatprep.subr.mxu0 0.0
  %282 = vmatpush1.xpose.msra.mxu0 0.0
  %283 = vmatprep.subr.mxu0 0.0
  %284 = vmatpush1.xpose.msra.mxu0 0.0
  %285 = vmatprep.subr.mxu0 0.0
  %286 = vmatpush1.xpose.msra.mxu0 0.0
  %287 = vmatprep.subr.mxu0 0.0
  %288 = vmatpush1.xpose.msra.mxu0 0.0
  %289 = vmatprep.subr.mxu0 0.0
  %290 = vmatpush1.xpose.msra.mxu0 0.0
  %291 = vmatprep.subr.mxu0 0.0
  %292 = vmatpush1.xpose.msra.mxu0 0.0
  %293 = vmatprep.subr.mxu0 0.0
  %294 = vmatpush1.xpose.msra.mxu0 0.0
  %295 = vmatprep.subr.mxu0 0.0
  %296 = vmatpush1.xpose.msra.mxu0 0.0
  %297 = vmatprep.subr.mxu0 0.0
  %298 = vmatpush1.xpose.msra.mxu0 0.0
  %299 = vmatprep.subr.mxu0 0.0
  %300 = vmatpush1.xpose.msra.mxu0 0.0
  %301 = vmatprep.subr.mxu0 0.0
  %302 = vmatpush1.xpose.msra.mxu0 0.0
  %303 = vmatprep.subr.mxu0 0.0
  %304 = vmatpush1.xpose.msra.mxu0 0.0
  %305 = vmatprep.subr.mxu0 0.0
  %306 = vmatpush1.xpose.msra.mxu0 0.0
  %307 = vmatprep.subr.mxu0 0.0
  %308 = vmatpush1.xpose.msra.mxu0 0.0
  %309 = vmatprep.mubr.f32.mxu0 0.0
  %310 = vmatmul.mubr.f32.gmra.mrb[0].mxu0 %v241
  %v311 = vpop.f32.mrb[0].mxu0
  %v312 = vadd.f32 0.0, %v311
  %v313 = vpop.f32.mrb[0].mxu0
  %314 = vdwg.mxu0
  %315 = vrot.lane.b32.xlu0 %v151, 96
  %v316 = vpop.permute.xlu0 %315
  %v317 = vsel %vm164, %v137, 0
  %v319 = vsel %vm164, %v316, 0
  %321 = vmatprep.subr.mxu0 0.0
  %322 = vmatpush1.xpose.msra.mxu0 %v319
  %323 = vmatprep.subr.mxu0 0.0
  %324 = vmatpush1.xpose.msra.mxu0 0.0
  %325 = vmatprep.subr.mxu0 0.0
  %326 = vmatpush1.xpose.msra.mxu0 0.0
  %327 = vmatprep.subr.mxu0 0.0
  %328 = vmatpush1.xpose.msra.mxu0 0.0
  %329 = vmatprep.subr.mxu0 0.0
  %330 = vmatpush1.xpose.msra.mxu0 0.0
  %331 = vmatprep.subr.mxu0 0.0
  %332 = vmatpush1.xpose.msra.mxu0 0.0
  %333 = vmatprep.subr.mxu0 0.0
  %334 = vmatpush1.xpose.msra.mxu0 0.0
  %335 = vmatprep.subr.mxu0 0.0
  %336 = vmatpush1.xpose.msra.mxu0 0.0
  %337 = vmatprep.subr.mxu0 0.0
  %338 = vmatpush1.xpose.msra.mxu0 0.0
  %339 = vmatprep.subr.mxu0 0.0
  %340 = vmatpush1.xpose.msra.mxu0 0.0
  %341 = vmatprep.subr.mxu0 0.0
  %342 = vmatpush1.xpose.msra.mxu0 0.0
  %343 = vmatprep.subr.mxu0 0.0
  %344 = vmatpush1.xpose.msra.mxu0 0.0
  %345 = vmatprep.subr.mxu0 0.0
  %346 = vmatpush1.xpose.msra.mxu0 0.0
  %347 = vmatprep.subr.mxu0 0.0
  %348 = vmatpush1.xpose.msra.mxu0 0.0
  %349 = vmatprep.subr.mxu0 0.0
  %350 = vmatpush1.xpose.msra.mxu0 0.0
  %351 = vmatprep.subr.mxu0 0.0
  %352 = vmatpush1.xpose.msra.mxu0 0.0
  %353 = vmatprep.subr.mxu0 0.0
  %354 = vmatpush1.xpose.msra.mxu0 0.0
  %355 = vmatprep.subr.mxu0 0.0
  %356 = vmatpush1.xpose.msra.mxu0 0.0
  %357 = vmatprep.subr.mxu0 0.0
  %358 = vmatpush1.xpose.msra.mxu0 0.0
  %359 = vmatprep.subr.mxu0 0.0
  %360 = vmatpush1.xpose.msra.mxu0 0.0
  %361 = vmatprep.subr.mxu0 0.0
  %362 = vmatpush1.xpose.msra.mxu0 0.0
  %363 = vmatprep.subr.mxu0 0.0
  %364 = vmatpush1.xpose.msra.mxu0 0.0
  %365 = vmatprep.subr.mxu0 0.0
  %366 = vmatpush1.xpose.msra.mxu0 0.0
  %367 = vmatprep.subr.mxu0 0.0
  %368 = vmatpush1.xpose.msra.mxu0 0.0
  %369 = vmatprep.subr.mxu0 0.0
  %370 = vmatpush1.xpose.msra.mxu0 0.0
  %371 = vmatprep.subr.mxu0 0.0
  %372 = vmatpush1.xpose.msra.mxu0 0.0
  %373 = vmatprep.subr.mxu0 0.0
  %374 = vmatpush1.xpose.msra.mxu0 0.0
  %375 = vmatprep.subr.mxu0 0.0
  %376 = vmatpush1.xpose.msra.mxu0 0.0
  %377 = vmatprep.subr.mxu0 0.0
  %378 = vmatpush1.xpose.msra.mxu0 0.0
  %379 = vmatprep.subr.mxu0 0.0
  %380 = vmatpush1.xpose.msra.mxu0 0.0
  %381 = vmatprep.subr.mxu0 0.0
  %382 = vmatpush1.xpose.msra.mxu0 0.0
  %383 = vmatprep.subr.mxu0 0.0
  %384 = vmatpush1.xpose.msra.mxu0 0.0
  %385 = vmatprep.mubr.f32.mxu0 0.0
  %386 = vmatmul.mubr.f32.gmra.mrb[0].mxu0 %v317
  %v387 = vpop.f32.mrb[0].mxu0
  %v388 = vadd.f32 0.0, %v387
  %v389 = vpop.f32.mrb[0].mxu0
  %390 = vdwg.mxu0
  %391 = vrot.lane.b32.xlu0 %v153, 96
  %v392 = vpop.permute.xlu0 %391
  %v393 = vsel %vm164, %v139, 0
  %v395 = vsel %vm164, %v392, 0
  %397 = vmatprep.subr.mxu0 0.0
  %398 = vmatpush1.xpose.msra.mxu0 %v395
  %399 = vmatprep.subr.mxu0 0.0
  %400 = vmatpush1.xpose.msra.mxu0 0.0
  %401 = vmatprep.subr.mxu0 0.0
  %402 = vmatpush1.xpose.msra.mxu0 0.0
  %403 = vmatprep.subr.mxu0 0.0
  %404 = vmatpush1.xpose.msra.mxu0 0.0
  %405 = vmatprep.subr.mxu0 0.0
  %406 = vmatpush1.xpose.msra.mxu0 0.0
  %407 = vmatprep.subr.mxu0 0.0
  %408 = vmatpush1.xpose.msra.mxu0 0.0
  %409 = vmatprep.subr.mxu0 0.0
  %410 = vmatpush1.xpose.msra.mxu0 0.0
  %411 = vmatprep.subr.mxu0 0.0
  %412 = vmatpush1.xpose.msra.mxu0 0.0
  %413 = vmatprep.subr.mxu0 0.0
  %414 = vmatpush1.xpose.msra.mxu0 0.0
  %415 = vmatprep.subr.mxu0 0.0
  %416 = vmatpush1.xpose.msra.mxu0 0.0
  %417 = vmatprep.subr.mxu0 0.0
  %418 = vmatpush1.xpose.msra.mxu0 0.0
  %419 = vmatprep.subr.mxu0 0.0
  %420 = vmatpush1.xpose.msra.mxu0 0.0
  %421 = vmatprep.subr.mxu0 0.0
  %422 = vmatpush1.xpose.msra.mxu0 0.0
  %423 = vmatprep.subr.mxu0 0.0
  %424 = vmatpush1.xpose.msra.mxu0 0.0
  %425 = vmatprep.subr.mxu0 0.0
  %426 = vmatpush1.xpose.msra.mxu0 0.0
  %427 = vmatprep.subr.mxu0 0.0
  %428 = vmatpush1.xpose.msra.mxu0 0.0
  %429 = vmatprep.subr.mxu0 0.0
  %430 = vmatpush1.xpose.msra.mxu0 0.0
  %431 = vmatprep.subr.mxu0 0.0
  %432 = vmatpush1.xpose.msra.mxu0 0.0
  %433 = vmatprep.subr.mxu0 0.0
  %434 = vmatpush1.xpose.msra.mxu0 0.0
  %435 = vmatprep.subr.mxu0 0.0
  %436 = vmatpush1.xpose.msra.mxu0 0.0
  %437 = vmatprep.subr.mxu0 0.0
  %438 = vmatpush1.xpose.msra.mxu0 0.0
  %439 = vmatprep.subr.mxu0 0.0
  %440 = vmatpush1.xpose.msra.mxu0 0.0
  %441 = vmatprep.subr.mxu0 0.0
  %442 = vmatpush1.xpose.msra.mxu0 0.0
  %443 = vmatprep.subr.mxu0 0.0
  %444 = vmatpush1.xpose.msra.mxu0 0.0
  %445 = vmatprep.subr.mxu0 0.0
  %446 = vmatpush1.xpose.msra.mxu0 0.0
  %447 = vmatprep.subr.mxu0 0.0
  %448 = vmatpush1.xpose.msra.mxu0 0.0
  %449 = vmatprep.subr.mxu0 0.0
  %450 = vmatpush1.xpose.msra.mxu0 0.0
  %451 = vmatprep.subr.mxu0 0.0
  %452 = vmatpush1.xpose.msra.mxu0 0.0
  %453 = vmatprep.subr.mxu0 0.0
  %454 = vmatpush1.xpose.msra.mxu0 0.0
  %455 = vmatprep.subr.mxu0 0.0
  %456 = vmatpush1.xpose.msra.mxu0 0.0
  %457 = vmatprep.subr.mxu0 0.0
  %458 = vmatpush1.xpose.msra.mxu0 0.0
  %459 = vmatprep.subr.mxu0 0.0
  %460 = vmatpush1.xpose.msra.mxu0 0.0
  %461 = vmatprep.mubr.f32.mxu0 0.0
  %462 = vmatmul.mubr.f32.gmra.mrb[0].mxu0 %v393
  %v463 = vpop.f32.mrb[0].mxu0
  %v464 = vadd.f32 0.0, %v463
  %v465 = vpop.f32.mrb[0].mxu0
  %466 = vdwg.mxu0
  %467 = vrot.lane.b32.xlu0 %v155, 96
  %v468 = vpop.permute.xlu0 %467
  %v469 = vsel %vm164, %v141, 0
  %v471 = vsel %vm164, %v468, 0
  %473 = vmatprep.subr.mxu0 0.0
  %474 = vmatpush1.xpose.msra.mxu0 %v471
  %475 = vmatprep.subr.mxu0 0.0
  %476 = vmatpush1.xpose.msra.mxu0 0.0
  %477 = vmatprep.subr.mxu0 0.0
  %478 = vmatpush1.xpose.msra.mxu0 0.0
  %479 = vmatprep.subr.mxu0 0.0
  %480 = vmatpush1.xpose.msra.mxu0 0.0
  %481 = vmatprep.subr.mxu0 0.0
  %482 = vmatpush1.xpose.msra.mxu0 0.0
  %483 = vmatprep.subr.mxu0 0.0
  %484 = vmatpush1.xpose.msra.mxu0 0.0
  %485 = vmatprep.subr.mxu0 0.0
  %486 = vmatpush1.xpose.msra.mxu0 0.0
  %487 = vmatprep.subr.mxu0 0.0
  %488 = vmatpush1.xpose.msra.mxu0 0.0
  %489 = vmatprep.subr.mxu0 0.0
  %490 = vmatpush1.xpose.msra.mxu0 0.0
  %491 = vmatprep.subr.mxu0 0.0
  %492 = vmatpush1.xpose.msra.mxu0 0.0
  %493 = vmatprep.subr.mxu0 0.0
  %494 = vmatpush1.xpose.msra.mxu0 0.0
  %495 = vmatprep.subr.mxu0 0.0
  %496 = vmatpush1.xpose.msra.mxu0 0.0
  %497 = vmatprep.subr.mxu0 0.0
  %498 = vmatpush1.xpose.msra.mxu0 0.0
  %499 = vmatprep.subr.mxu0 0.0
  %500 = vmatpush1.xpose.msra.mxu0 0.0
  %501 = vmatprep.subr.mxu0 0.0
  %502 = vmatpush1.xpose.msra.mxu0 0.0
  %503 = vmatprep.subr.mxu0 0.0
  %504 = vmatpush1.xpose.msra.mxu0 0.0
  %505 = vmatprep.subr.mxu0 0.0
  %506 = vmatpush1.xpose.msra.mxu0 0.0
  %507 = vmatprep.subr.mxu0 0.0
  %508 = vmatpush1.xpose.msra.mxu0 0.0
  %509 = vmatprep.subr.mxu0 0.0
  %510 = vmatpush1.xpose.msra.mxu0 0.0
  %511 = vmatprep.subr.mxu0 0.0
  %512 = vmatpush1.xpose.msra.mxu0 0.0
  %513 = vmatprep.subr.mxu0 0.0
  %514 = vmatpush1.xpose.msra.mxu0 0.0
  %515 = vmatprep.subr.mxu0 0.0
  %516 = vmatpush1.xpose.msra.mxu0 0.0
  %517 = vmatprep.subr.mxu0 0.0
  %518 = vmatpush1.xpose.msra.mxu0 0.0
  %519 = vmatprep.subr.mxu0 0.0
  %520 = vmatpush1.xpose.msra.mxu0 0.0
  %521 = vmatprep.subr.mxu0 0.0
  %522 = vmatpush1.xpose.msra.mxu0 0.0
  %523 = vmatprep.subr.mxu0 0.0
  %524 = vmatpush1.xpose.msra.mxu0 0.0
  %525 = vmatprep.subr.mxu0 0.0
  %526 = vmatpush1.xpose.msra.mxu0 0.0
  %527 = vmatprep.subr.mxu0 0.0
  %528 = vmatpush1.xpose.msra.mxu0 0.0
  %529 = vmatprep.subr.mxu0 0.0
  %530 = vmatpush1.xpose.msra.mxu0 0.0
  %531 = vmatprep.subr.mxu0 0.0
  %532 = vmatpush1.xpose.msra.mxu0 0.0
  %533 = vmatprep.subr.mxu0 0.0
  %534 = vmatpush1.xpose.msra.mxu0 0.0
  %535 = vmatprep.subr.mxu0 0.0
  %536 = vmatpush1.xpose.msra.mxu0 0.0
  %537 = vmatprep.mubr.f32.mxu0 0.0
  %538 = vmatmul.mubr.f32.gmra.mrb[0].mxu0 %v469
  %v539 = vpop.f32.mrb[0].mxu0
  %v540 = vadd.f32 0.0, %v539
  %v541 = vpop.f32.mrb[0].mxu0
  %542 = vdwg.mxu0
  %543 = vrot.lane.b32.xlu0 %v157, 96
  %v544 = vpop.permute.xlu0 %543
  %v545 = vsel %vm164, %v143, 0
  %v547 = vsel %vm164, %v544, 0
  %549 = vmatprep.subr.mxu0 0.0
  %550 = vmatpush1.xpose.msra.mxu0 %v547
  %551 = vmatprep.subr.mxu0 0.0
  %552 = vmatpush1.xpose.msra.mxu0 0.0
  %553 = vmatprep.subr.mxu0 0.0
  %554 = vmatpush1.xpose.msra.mxu0 0.0
  %555 = vmatprep.subr.mxu0 0.0
  %556 = vmatpush1.xpose.msra.mxu0 0.0
  %557 = vmatprep.subr.mxu0 0.0
  %558 = vmatpush1.xpose.msra.mxu0 0.0
  %559 = vmatprep.subr.mxu0 0.0
  %560 = vmatpush1.xpose.msra.mxu0 0.0
  %561 = vmatprep.subr.mxu0 0.0
  %562 = vmatpush1.xpose.msra.mxu0 0.0
  %563 = vmatprep.subr.mxu0 0.0
  %564 = vmatpush1.xpose.msra.mxu0 0.0
  %565 = vmatprep.subr.mxu0 0.0
  %566 = vmatpush1.xpose.msra.mxu0 0.0
  %567 = vmatprep.subr.mxu0 0.0
  %568 = vmatpush1.xpose.msra.mxu0 0.0
  %569 = vmatprep.subr.mxu0 0.0
  %570 = vmatpush1.xpose.msra.mxu0 0.0
  %571 = vmatprep.subr.mxu0 0.0
  %572 = vmatpush1.xpose.msra.mxu0 0.0
  %573 = vmatprep.subr.mxu0 0.0
  %574 = vmatpush1.xpose.msra.mxu0 0.0
  %575 = vmatprep.subr.mxu0 0.0
  %576 = vmatpush1.xpose.msra.mxu0 0.0
  %577 = vmatprep.subr.mxu0 0.0
  %578 = vmatpush1.xpose.msra.mxu0 0.0
  %579 = vmatprep.subr.mxu0 0.0
  %580 = vmatpush1.xpose.msra.mxu0 0.0
  %581 = vmatprep.subr.mxu0 0.0
  %582 = vmatpush1.xpose.msra.mxu0 0.0
  %583 = vmatprep.subr.mxu0 0.0
  %584 = vmatpush1.xpose.msra.mxu0 0.0
  %585 = vmatprep.subr.mxu0 0.0
  %586 = vmatpush1.xpose.msra.mxu0 0.0
  %587 = vmatprep.subr.mxu0 0.0
  %588 = vmatpush1.xpose.msra.mxu0 0.0
  %589 = vmatprep.subr.mxu0 0.0
  %590 = vmatpush1.xpose.msra.mxu0 0.0
  %591 = vmatprep.subr.mxu0 0.0
  %592 = vmatpush1.xpose.msra.mxu0 0.0
  %593 = vmatprep.subr.mxu0 0.0
  %594 = vmatpush1.xpose.msra.mxu0 0.0
  %595 = vmatprep.subr.mxu0 0.0
  %596 = vmatpush1.xpose.msra.mxu0 0.0
  %597 = vmatprep.subr.mxu0 0.0
  %598 = vmatpush1.xpose.msra.mxu0 0.0
  %599 = vmatprep.subr.mxu0 0.0
  %600 = vmatpush1.xpose.msra.mxu0 0.0
  %601 = vmatprep.subr.mxu0 0.0
  %602 = vmatpush1.xpose.msra.mxu0 0.0
  %603 = vmatprep.subr.mxu0 0.0
  %604 = vmatpush1.xpose.msra.mxu0 0.0
  %605 = vmatprep.subr.mxu0 0.0
  %606 = vmatpush1.xpose.msra.mxu0 0.0
  %607 = vmatprep.subr.mxu0 0.0
  %608 = vmatpush1.xpose.msra.mxu0 0.0
  %609 = vmatprep.subr.mxu0 0.0
  %610 = vmatpush1.xpose.msra.mxu0 0.0
  %611 = vmatprep.subr.mxu0 0.0
  %612 = vmatpush1.xpose.msra.mxu0 0.0
  %613 = vmatprep.mubr.f32.mxu0 0.0
  %614 = vmatmul.mubr.f32.gmra.mrb[0].mxu0 %v545
  %v615 = vpop.f32.mrb[0].mxu0
  %v616 = vadd.f32 0.0, %v615
  %v617 = vpop.f32.mrb[0].mxu0
  %618 = vdwg.mxu0
  %619 = vrot.lane.b32.xlu0 %v159, 96
  %v620 = vpop.permute.xlu0 %619
  %v621 = vsel %vm164, %v145, 0
  %v623 = vsel %vm164, %v620, 0
  %625 = vmatprep.subr.mxu0 0.0
  %626 = vmatpush1.xpose.msra.mxu0 %v623
  %627 = vmatprep.subr.mxu0 0.0
  %628 = vmatpush1.xpose.msra.mxu0 0.0
  %629 = vmatprep.subr.mxu0 0.0
  %630 = vmatpush1.xpose.msra.mxu0 0.0
  %631 = vmatprep.subr.mxu0 0.0
  %632 = vmatpush1.xpose.msra.mxu0 0.0
  %633 = vmatprep.subr.mxu0 0.0
  %634 = vmatpush1.xpose.msra.mxu0 0.0
  %635 = vmatprep.subr.mxu0 0.0
  %636 = vmatpush1.xpose.msra.mxu0 0.0
  %637 = vmatprep.subr.mxu0 0.0
  %638 = vmatpush1.xpose.msra.mxu0 0.0
  %639 = vmatprep.subr.mxu0 0.0
  %640 = vmatpush1.xpose.msra.mxu0 0.0
  %641 = vmatprep.subr.mxu0 0.0
  %642 = vmatpush1.xpose.msra.mxu0 0.0
  %643 = vmatprep.subr.mxu0 0.0
  %644 = vmatpush1.xpose.msra.mxu0 0.0
  %645 = vmatprep.subr.mxu0 0.0
  %646 = vmatpush1.xpose.msra.mxu0 0.0
  %647 = vmatprep.subr.mxu0 0.0
  %648 = vmatpush1.xpose.msra.mxu0 0.0
  %649 = vmatprep.subr.mxu0 0.0
  %650 = vmatpush1.xpose.msra.mxu0 0.0
  %651 = vmatprep.subr.mxu0 0.0
  %652 = vmatpush1.xpose.msra.mxu0 0.0
  %653 = vmatprep.subr.mxu0 0.0
  %654 = vmatpush1.xpose.msra.mxu0 0.0
  %655 = vmatprep.subr.mxu0 0.0
  %656 = vmatpush1.xpose.msra.mxu0 0.0
  %657 = vmatprep.subr.mxu0 0.0
  %658 = vmatpush1.xpose.msra.mxu0 0.0
  %659 = vmatprep.subr.mxu0 0.0
  %660 = vmatpush1.xpose.msra.mxu0 0.0
  %661 = vmatprep.subr.mxu0 0.0
  %662 = vmatpush1.xpose.msra.mxu0 0.0
  %663 = vmatprep.subr.mxu0 0.0
  %664 = vmatpush1.xpose.msra.mxu0 0.0
  %665 = vmatprep.subr.mxu0 0.0
  %666 = vmatpush1.xpose.msra.mxu0 0.0
  %667 = vmatprep.subr.mxu0 0.0
  %668 = vmatpush1.xpose.msra.mxu0 0.0
  %669 = vmatprep.subr.mxu0 0.0
  %670 = vmatpush1.xpose.msra.mxu0 0.0
  %671 = vmatprep.subr.mxu0 0.0
  %672 = vmatpush1.xpose.msra.mxu0 0.0
  %673 = vmatprep.subr.mxu0 0.0
  %674 = vmatpush1.xpose.msra.mxu0 0.0
  %675 = vmatprep.subr.mxu0 0.0
  %676 = vmatpush1.xpose.msra.mxu0 0.0
  %677 = vmatprep.subr.mxu0 0.0
  %678 = vmatpush1.xpose.msra.mxu0 0.0
  %679 = vmatprep.subr.mxu0 0.0
  %680 = vmatpush1.xpose.msra.mxu0 0.0
  %681 = vmatprep.subr.mxu0 0.0
  %682 = vmatpush1.xpose.msra.mxu0 0.0
  %683 = vmatprep.subr.mxu0 0.0
  %684 = vmatpush1.xpose.msra.mxu0 0.0
  %685 = vmatprep.subr.mxu0 0.0
  %686 = vmatpush1.xpose.msra.mxu0 0.0
  %687 = vmatprep.subr.mxu0 0.0
  %688 = vmatpush1.xpose.msra.mxu0 0.0
  %689 = vmatprep.mubr.f32.mxu0 0.0
  %690 = vmatmul.mubr.f32.gmra.mrb[0].mxu0 %v621
  %v691 = vpop.f32.mrb[0].mxu0
  %v692 = vadd.f32 0.0, %v691
  %v693 = vpop.f32.mrb[0].mxu0
  %694 = vdwg.mxu0
  %695 = vrot.lane.b32.xlu0 %v161, 96
  %v696 = vpop.permute.xlu0 %695
  %v697 = vsel %vm164, %v147, 0
  %v699 = vsel %vm164, %v696, 0
  %701 = vmatprep.subr.mxu0 0.0
  %702 = vmatpush1.xpose.msra.mxu0 %v699
  %703 = vmatprep.subr.mxu0 0.0
  %704 = vmatpush1.xpose.msra.mxu0 0.0
  %705 = vmatprep.subr.mxu0 0.0
  %706 = vmatpush1.xpose.msra.mxu0 0.0
  %707 = vmatprep.subr.mxu0 0.0
  %708 = vmatpush1.xpose.msra.mxu0 0.0
  %709 = vmatprep.subr.mxu0 0.0
  %710 = vmatpush1.xpose.msra.mxu0 0.0
  %711 = vmatprep.subr.mxu0 0.0
  %712 = vmatpush1.xpose.msra.mxu0 0.0
  %713 = vmatprep.subr.mxu0 0.0
  %714 = vmatpush1.xpose.msra.mxu0 0.0
  %715 = vmatprep.subr.mxu0 0.0
  %716 = vmatpush1.xpose.msra.mxu0 0.0
  %717 = vmatprep.subr.mxu0 0.0
  %718 = vmatpush1.xpose.msra.mxu0 0.0
  %719 = vmatprep.subr.mxu0 0.0
  %720 = vmatpush1.xpose.msra.mxu0 0.0
  %721 = vmatprep.subr.mxu0 0.0
  %722 = vmatpush1.xpose.msra.mxu0 0.0
  %723 = vmatprep.subr.mxu0 0.0
  %724 = vmatpush1.xpose.msra.mxu0 0.0
  %725 = vmatprep.subr.mxu0 0.0
  %726 = vmatpush1.xpose.msra.mxu0 0.0
  %727 = vmatprep.subr.mxu0 0.0
  %728 = vmatpush1.xpose.msra.mxu0 0.0
  %729 = vmatprep.subr.mxu0 0.0
  %730 = vmatpush1.xpose.msra.mxu0 0.0
  %731 = vmatprep.subr.mxu0 0.0
  %732 = vmatpush1.xpose.msra.mxu0 0.0
  %733 = vmatprep.subr.mxu0 0.0
  %734 = vmatpush1.xpose.msra.mxu0 0.0
  %735 = vmatprep.subr.mxu0 0.0
  %736 = vmatpush1.xpose.msra.mxu0 0.0
  %737 = vmatprep.subr.mxu0 0.0
  %738 = vmatpush1.xpose.msra.mxu0 0.0
  %739 = vmatprep.subr.mxu0 0.0
  %740 = vmatpush1.xpose.msra.mxu0 0.0
  %741 = vmatprep.subr.mxu0 0.0
  %742 = vmatpush1.xpose.msra.mxu0 0.0
  %743 = vmatprep.subr.mxu0 0.0
  %744 = vmatpush1.xpose.msra.mxu0 0.0
  %745 = vmatprep.subr.mxu0 0.0
  %746 = vmatpush1.xpose.msra.mxu0 0.0
  %747 = vmatprep.subr.mxu0 0.0
  %748 = vmatpush1.xpose.msra.mxu0 0.0
  %749 = vmatprep.subr.mxu0 0.0
  %750 = vmatpush1.xpose.msra.mxu0 0.0
  %751 = vmatprep.subr.mxu0 0.0
  %752 = vmatpush1.xpose.msra.mxu0 0.0
  %753 = vmatprep.subr.mxu0 0.0
  %754 = vmatpush1.xpose.msra.mxu0 0.0
  %755 = vmatprep.subr.mxu0 0.0
  %756 = vmatpush1.xpose.msra.mxu0 0.0
  %757 = vmatprep.subr.mxu0 0.0
  %758 = vmatpush1.xpose.msra.mxu0 0.0
  %759 = vmatprep.subr.mxu0 0.0
  %760 = vmatpush1.xpose.msra.mxu0 0.0
  %761 = vmatprep.subr.mxu0 0.0
  %762 = vmatpush1.xpose.msra.mxu0 0.0
  %763 = vmatprep.subr.mxu0 0.0
  %764 = vmatpush1.xpose.msra.mxu0 0.0
  %765 = vmatprep.mubr.f32.mxu0 0.0
  %766 = vmatmul.mubr.f32.gmra.mrb[0].mxu0 %v697
  %v767 = vpop.f32.mrb[0].mxu0
  %v768 = vadd.f32 0.0, %v767
  %v769 = vpop.f32.mrb[0].mxu0
  %770 = vdwg.mxu0
  %v771 = vsel %vm164, %v236, -inf
  %772 = vmax.xlane.f32.xlu0 %v771
  %v773 = vpop.xlane.xlu0 %772
  %v774 = vsel %vm164, %v312, -inf
  %775 = vmax.xlane.f32.xlu0 %v774
  %v776 = vpop.xlane.xlu0 %775
  %v777 = vsel %vm164, %v388, -inf
  %778 = vmax.xlane.f32.xlu0 %v777
  %v779 = vpop.xlane.xlu0 %778
  %v780 = vsel %vm164, %v464, -inf
  %781 = vmax.xlane.f32.xlu0 %v780
  %v782 = vpop.xlane.xlu0 %781
  %v783 = vsel %vm164, %v540, -inf
  %784 = vmax.xlane.f32.xlu0 %v783
  %v785 = vpop.xlane.xlu0 %784
  %v786 = vsel %vm164, %v616, -inf
  %787 = vmax.xlane.f32.xlu0 %v786
  %v788 = vpop.xlane.xlu0 %787
  %v789 = vsel %vm164, %v692, -inf
  %790 = vmax.xlane.f32.xlu0 %v789
  %v791 = vpop.xlane.xlu0 %790
  %v792 = vsel %vm164, %v768, -inf
  %793 = vmax.xlane.f32.xlu0 %v792
  %v794 = vpop.xlane.xlu0 %793
  %v795 = vsub.f32 %v236, %v773
  %v796 = vsub.f32 %v312, %v776
  %v797 = vsub.f32 %v388, %v779
  %v798 = vsub.f32 %v464, %v782
  %v799 = vsub.f32 %v540, %v785
  %v800 = vsub.f32 %v616, %v788
  %v801 = vsub.f32 %v692, %v791
  %v802 = vsub.f32 %v768, %v794
  %v803 = vmul.f32 %v795, 1.442695
  %v804 = vpow.pop %v803
  %v805 = vmul.f32 %v796, 1.442695
  %v806 = vpow.pop %v805
  %v807 = vmul.f32 %v797, 1.442695
  %v808 = vpow.pop %v807
  %v809 = vmul.f32 %v798, 1.442695
  %v810 = vpow.pop %v809
  %v811 = vmul.f32 %v799, 1.442695
  %v812 = vpow.pop %v811
  %v813 = vmul.f32 %v800, 1.442695
  %v814 = vpow.pop %v813
  %v815 = vmul.f32 %v801, 1.442695
  %v816 = vpow.pop %v815
  %v817 = vmul.f32 %v802, 1.442695
  %v818 = vpow.pop %v817
  %v819 = vsel %vm164, %v804, 0.0
  %820 = vadd.xlane.f32.xlu0 %v819
  %v821 = vpop.xlane.xlu0 %820
  %v822 = vsel %vm164, %v806, 0.0
  %823 = vadd.xlane.f32.xlu0 %v822
  %v824 = vpop.xlane.xlu0 %823
  %v825 = vsel %vm164, %v808, 0.0
  %826 = vadd.xlane.f32.xlu0 %v825
  %v827 = vpop.xlane.xlu0 %826
  %v828 = vsel %vm164, %v810, 0.0
  %829 = vadd.xlane.f32.xlu0 %v828
  %v830 = vpop.xlane.xlu0 %829
  %v831 = vsel %vm164, %v812, 0.0
  %832 = vadd.xlane.f32.xlu0 %v831
  %v833 = vpop.xlane.xlu0 %832
  %v834 = vsel %vm164, %v814, 0.0
  %835 = vadd.xlane.f32.xlu0 %v834
  %v836 = vpop.xlane.xlu0 %835
  %v837 = vsel %vm164, %v816, 0.0
  %838 = vadd.xlane.f32.xlu0 %v837
  %v839 = vpop.xlane.xlu0 %838
  %v840 = vsel %vm164, %v818, 0.0
  %841 = vadd.xlane.f32.xlu0 %v840
  %v842 = vpop.xlane.xlu0 %841
  %v843 = vrcp.pop %v821
  %v844 = vmul.f32 %v804, %v843
  %v845 = vrcp.pop %v824
  %v846 = vmul.f32 %v806, %v845
  %v847 = vrcp.pop %v827
  %v848 = vmul.f32 %v808, %v847
  %v849 = vrcp.pop %v830
  %v850 = vmul.f32 %v810, %v849
  %v851 = vrcp.pop %v833
  %v852 = vmul.f32 %v812, %v851
  %v853 = vrcp.pop %v836
  %v854 = vmul.f32 %v814, %v853
  %v855 = vrcp.pop %v839
  %v856 = vmul.f32 %v816, %v855
  %v857 = vrcp.pop %v842
  %v858 = vmul.f32 %v818, %v857
  %859 = vrot.lane.b32.xlu0 %v124, 64
  %v860 = vpop.permute.xlu0 %859
  %v863 = vsel %vm164, %v844, 0
  %865 = vmatprep.subr.mxu0 0.0
  %866 = vmatpush1.msra.mxu0 %v860
  %867 = vmatprep.subr.mxu0 0.0
  %868 = vmatpush1.msra.mxu0 0.0
  %869 = vmatprep.subr.mxu0 0.0
  %870 = vmatpush1.msra.mxu0 0.0
  %871 = vmatprep.subr.mxu0 0.0
  %872 = vmatpush1.msra.mxu0 0.0
  %873 = vmatprep.subr.mxu0 0.0
  %874 = vmatpush1.msra.mxu0 0.0
  %875 = vmatprep.subr.mxu0 0.0
  %876 = vmatpush1.msra.mxu0 0.0
  %877 = vmatprep.subr.mxu0 0.0
  %878 = vmatpush1.msra.mxu0 0.0
  %879 = vmatprep.subr.mxu0 0.0
  %880 = vmatpush1.msra.mxu0 0.0
  %881 = vmatprep.subr.mxu0 0.0
  %882 = vmatpush1.msra.mxu0 0.0
  %883 = vmatprep.subr.mxu0 0.0
  %884 = vmatpush1.msra.mxu0 0.0
  %885 = vmatprep.subr.mxu0 0.0
  %886 = vmatpush1.msra.mxu0 0.0
  %887 = vmatprep.subr.mxu0 0.0
  %888 = vmatpush1.msra.mxu0 0.0
  %889 = vmatprep.subr.mxu0 0.0
  %890 = vmatpush1.msra.mxu0 0.0
  %891 = vmatprep.subr.mxu0 0.0
  %892 = vmatpush1.msra.mxu0 0.0
  %893 = vmatprep.subr.mxu0 0.0
  %894 = vmatpush1.msra.mxu0 0.0
  %895 = vmatprep.subr.mxu0 0.0
  %896 = vmatpush1.msra.mxu0 0.0
  %897 = vmatprep.subr.mxu0 0.0
  %898 = vmatpush1.msra.mxu0 0.0
  %899 = vmatprep.subr.mxu0 0.0
  %900 = vmatpush1.msra.mxu0 0.0
  %901 = vmatprep.subr.mxu0 0.0
  %902 = vmatpush1.msra.mxu0 0.0
  %903 = vmatprep.subr.mxu0 0.0
  %904 = vmatpush1.msra.mxu0 0.0
  %905 = vmatprep.subr.mxu0 0.0
  %906 = vmatpush1.msra.mxu0 0.0
  %907 = vmatprep.subr.mxu0 0.0
  %908 = vmatpush1.msra.mxu0 0.0
  %909 = vmatprep.subr.mxu0 0.0
  %910 = vmatpush1.msra.mxu0 0.0
  %911 = vmatprep.subr.mxu0 0.0
  %912 = vmatpush1.msra.mxu0 0.0
  %913 = vmatprep.subr.mxu0 0.0
  %914 = vmatpush1.msra.mxu0 0.0
  %915 = vmatprep.subr.mxu0 0.0
  %916 = vmatpush1.msra.mxu0 0.0
  %917 = vmatprep.subr.mxu0 0.0
  %918 = vmatpush1.msra.mxu0 0.0
  %919 = vmatprep.subr.mxu0 0.0
  %920 = vmatpush1.msra.mxu0 0.0
  %921 = vmatprep.subr.mxu0 0.0
  %922 = vmatpush1.msra.mxu0 0.0
  %923 = vmatprep.subr.mxu0 0.0
  %924 = vmatpush1.msra.mxu0 0.0
  %925 = vmatprep.subr.mxu0 0.0
  %926 = vmatpush1.msra.mxu0 0.0
  %927 = vmatprep.subr.mxu0 0.0
  %928 = vmatpush1.msra.mxu0 0.0
  %929 = vmatprep.mubr.f32.mxu0 0.0
  %930 = vmatmul.mubr.f32.gmra.mrb[0].mxu0 %v863
  %v931 = vpop.f32.mrb[0].mxu0
  %v932 = vadd.f32 0.0, %v931
  %v933 = vpop.f32.mrb[0].mxu0
  %934 = vdwg.mxu0
  %935 = vrot.lane.b32.xlu0 %v129, 64
  %v936 = vpop.permute.xlu0 %935
  %v939 = vsel %vm164, %v846, 0
  %941 = vmatprep.subr.mxu0 0.0
  %942 = vmatpush1.msra.mxu0 %v936
  %943 = vmatprep.subr.mxu0 0.0
  %944 = vmatpush1.msra.mxu0 0.0
  %945 = vmatprep.subr.mxu0 0.0
  %946 = vmatpush1.msra.mxu0 0.0
  %947 = vmatprep.subr.mxu0 0.0
  %948 = vmatpush1.msra.mxu0 0.0
  %949 = vmatprep.subr.mxu0 0.0
  %950 = vmatpush1.msra.mxu0 0.0
  %951 = vmatprep.subr.mxu0 0.0
  %952 = vmatpush1.msra.mxu0 0.0
  %953 = vmatprep.subr.mxu0 0.0
  %954 = vmatpush1.msra.mxu0 0.0
  %955 = vmatprep.subr.mxu0 0.0
  %956 = vmatpush1.msra.mxu0 0.0
  %957 = vmatprep.subr.mxu0 0.0
  %958 = vmatpush1.msra.mxu0 0.0
  %959 = vmatprep.subr.mxu0 0.0
  %960 = vmatpush1.msra.mxu0 0.0
  %961 = vmatprep.subr.mxu0 0.0
  %962 = vmatpush1.msra.mxu0 0.0
  %963 = vmatprep.subr.mxu0 0.0
  %964 = vmatpush1.msra.mxu0 0.0
  %965 = vmatprep.subr.mxu0 0.0
  %966 = vmatpush1.msra.mxu0 0.0
  %967 = vmatprep.subr.mxu0 0.0
  %968 = vmatpush1.msra.mxu0 0.0
  %969 = vmatprep.subr.mxu0 0.0
  %970 = vmatpush1.msra.mxu0 0.0
  %971 = vmatprep.subr.mxu0 0.0
  %972 = vmatpush1.msra.mxu0 0.0
  %973 = vmatprep.subr.mxu0 0.0
  %974 = vmatpush1.msra.mxu0 0.0
  %975 = vmatprep.subr.mxu0 0.0
  %976 = vmatpush1.msra.mxu0 0.0
  %977 = vmatprep.subr.mxu0 0.0
  %978 = vmatpush1.msra.mxu0 0.0
  %979 = vmatprep.subr.mxu0 0.0
  %980 = vmatpush1.msra.mxu0 0.0
  %981 = vmatprep.subr.mxu0 0.0
  %982 = vmatpush1.msra.mxu0 0.0
  %983 = vmatprep.subr.mxu0 0.0
  %984 = vmatpush1.msra.mxu0 0.0
  %985 = vmatprep.subr.mxu0 0.0
  %986 = vmatpush1.msra.mxu0 0.0
  %987 = vmatprep.subr.mxu0 0.0
  %988 = vmatpush1.msra.mxu0 0.0
  %989 = vmatprep.subr.mxu0 0.0
  %990 = vmatpush1.msra.mxu0 0.0
  %991 = vmatprep.subr.mxu0 0.0
  %992 = vmatpush1.msra.mxu0 0.0
  %993 = vmatprep.subr.mxu0 0.0
  %994 = vmatpush1.msra.mxu0 0.0
  %995 = vmatprep.subr.mxu0 0.0
  %996 = vmatpush1.msra.mxu0 0.0
  %997 = vmatprep.subr.mxu0 0.0
  %998 = vmatpush1.msra.mxu0 0.0
  %999 = vmatprep.subr.mxu0 0.0
  %1000 = vmatpush1.msra.mxu0 0.0
  %1001 = vmatprep.subr.mxu0 0.0
  %1002 = vmatpush1.msra.mxu0 0.0
  %1003 = vmatprep.subr.mxu0 0.0
  %1004 = vmatpush1.msra.mxu0 0.0
  %1005 = vmatprep.mubr.f32.mxu0 0.0
  %1006 = vmatmul.mubr.f32.gmra.mrb[0].mxu0 %v939
  %v1007 = vpop.f32.mrb[0].mxu0
  %v1008 = vadd.f32 0.0, %v1007
  %v1009 = vpop.f32.mrb[0].mxu0
  %1010 = vdwg.mxu0
  %1011 = vrot.lane.b32.xlu0 %v151, 64
  %v1012 = vpop.permute.xlu0 %1011
  %v1015 = vsel %vm164, %v848, 0
  %1017 = vmatprep.subr.mxu0 0.0
  %1018 = vmatpush1.msra.mxu0 %v1012
  %1019 = vmatprep.subr.mxu0 0.0
  %1020 = vmatpush1.msra.mxu0 0.0
  %1021 = vmatprep.subr.mxu0 0.0
  %1022 = vmatpush1.msra.mxu0 0.0
  %1023 = vmatprep.subr.mxu0 0.0
  %1024 = vmatpush1.msra.mxu0 0.0
  %1025 = vmatprep.subr.mxu0 0.0
  %1026 = vmatpush1.msra.mxu0 0.0
  %1027 = vmatprep.subr.mxu0 0.0
  %1028 = vmatpush1.msra.mxu0 0.0
  %1029 = vmatprep.subr.mxu0 0.0
  %1030 = vmatpush1.msra.mxu0 0.0
  %1031 = vmatprep.subr.mxu0 0.0
  %1032 = vmatpush1.msra.mxu0 0.0
  %1033 = vmatprep.subr.mxu0 0.0
  %1034 = vmatpush1.msra.mxu0 0.0
  %1035 = vmatprep.subr.mxu0 0.0
  %1036 = vmatpush1.msra.mxu0 0.0
  %1037 = vmatprep.subr.mxu0 0.0
  %1038 = vmatpush1.msra.mxu0 0.0
  %1039 = vmatprep.subr.mxu0 0.0
  %1040 = vmatpush1.msra.mxu0 0.0
  %1041 = vmatprep.subr.mxu0 0.0
  %1042 = vmatpush1.msra.mxu0 0.0
  %1043 = vmatprep.subr.mxu0 0.0
  %1044 = vmatpush1.msra.mxu0 0.0
  %1045 = vmatprep.subr.mxu0 0.0
  %1046 = vmatpush1.msra.mxu0 0.0
  %1047 = vmatprep.subr.mxu0 0.0
  %1048 = vmatpush1.msra.mxu0 0.0
  %1049 = vmatprep.subr.mxu0 0.0
  %1050 = vmatpush1.msra.mxu0 0.0
  %1051 = vmatprep.subr.mxu0 0.0
  %1052 = vmatpush1.msra.mxu0 0.0
  %1053 = vmatprep.subr.mxu0 0.0
  %1054 = vmatpush1.msra.mxu0 0.0
  %1055 = vmatprep.subr.mxu0 0.0
  %1056 = vmatpush1.msra.mxu0 0.0
  %1057 = vmatprep.subr.mxu0 0.0
  %1058 = vmatpush1.msra.mxu0 0.0
  %1059 = vmatprep.subr.mxu0 0.0
  %1060 = vmatpush1.msra.mxu0 0.0
  %1061 = vmatprep.subr.mxu0 0.0
  %1062 = vmatpush1.msra.mxu0 0.0
  %1063 = vmatprep.subr.mxu0 0.0
  %1064 = vmatpush1.msra.mxu0 0.0
  %1065 = vmatprep.subr.mxu0 0.0
  %1066 = vmatpush1.msra.mxu0 0.0
  %1067 = vmatprep.subr.mxu0 0.0
  %1068 = vmatpush1.msra.mxu0 0.0
  %1069 = vmatprep.subr.mxu0 0.0
  %1070 = vmatpush1.msra.mxu0 0.0
  %1071 = vmatprep.subr.mxu0 0.0
  %1072 = vmatpush1.msra.mxu0 0.0
  %1073 = vmatprep.subr.mxu0 0.0
  %1074 = vmatpush1.msra.mxu0 0.0
  %1075 = vmatprep.subr.mxu0 0.0
  %1076 = vmatpush1.msra.mxu0 0.0
  %1077 = vmatprep.subr.mxu0 0.0
  %1078 = vmatpush1.msra.mxu0 0.0
  %1079 = vmatprep.subr.mxu0 0.0
  %1080 = vmatpush1.msra.mxu0 0.0
  %1081 = vmatprep.mubr.f32.mxu0 0.0
  %1082 = vmatmul.mubr.f32.gmra.mrb[0].mxu0 %v1015
  %v1083 = vpop.f32.mrb[0].mxu0
  %v1084 = vadd.f32 0.0, %v1083
  %v1085 = vpop.f32.mrb[0].mxu0
  %1086 = vdwg.mxu0
  %1087 = vrot.lane.b32.xlu0 %v153, 64
  %v1088 = vpop.permute.xlu0 %1087
  %v1091 = vsel %vm164, %v850, 0
  %1093 = vmatprep.subr.mxu0 0.0
  %1094 = vmatpush1.msra.mxu0 %v1088
  %1095 = vmatprep.subr.mxu0 0.0
  %1096 = vmatpush1.msra.mxu0 0.0
  %1097 = vmatprep.subr.mxu0 0.0
  %1098 = vmatpush1.msra.mxu0 0.0
  %1099 = vmatprep.subr.mxu0 0.0
  %1100 = vmatpush1.msra.mxu0 0.0
  %1101 = vmatprep.subr.mxu0 0.0
  %1102 = vmatpush1.msra.mxu0 0.0
  %1103 = vmatprep.subr.mxu0 0.0
  %1104 = vmatpush1.msra.mxu0 0.0
  %1105 = vmatprep.subr.mxu0 0.0
  %1106 = vmatpush1.msra.mxu0 0.0
  %1107 = vmatprep.subr.mxu0 0.0
  %1108 = vmatpush1.msra.mxu0 0.0
  %1109 = vmatprep.subr.mxu0 0.0
  %1110 = vmatpush1.msra.mxu0 0.0
  %1111 = vmatprep.subr.mxu0 0.0
  %1112 = vmatpush1.msra.mxu0 0.0
  %1113 = vmatprep.subr.mxu0 0.0
  %1114 = vmatpush1.msra.mxu0 0.0
  %1115 = vmatprep.subr.mxu0 0.0
  %1116 = vmatpush1.msra.mxu0 0.0
  %1117 = vmatprep.subr.mxu0 0.0
  %1118 = vmatpush1.msra.mxu0 0.0
  %1119 = vmatprep.subr.mxu0 0.0
  %1120 = vmatpush1.msra.mxu0 0.0
  %1121 = vmatprep.subr.mxu0 0.0
  %1122 = vmatpush1.msra.mxu0 0.0
  %1123 = vmatprep.subr.mxu0 0.0
  %1124 = vmatpush1.msra.mxu0 0.0
  %1125 = vmatprep.subr.mxu0 0.0
  %1126 = vmatpush1.msra.mxu0 0.0
  %1127 = vmatprep.subr.mxu0 0.0
  %1128 = vmatpush1.msra.mxu0 0.0
  %1129 = vmatprep.subr.mxu0 0.0
  %1130 = vmatpush1.msra.mxu0 0.0
  %1131 = vmatprep.subr.mxu0 0.0
  %1132 = vmatpush1.msra.mxu0 0.0
  %1133 = vmatprep.subr.mxu0 0.0
  %1134 = vmatpush1.msra.mxu0 0.0
  %1135 = vmatprep.subr.mxu0 0.0
  %1136 = vmatpush1.msra.mxu0 0.0
  %1137 = vmatprep.subr.mxu0 0.0
  %1138 = vmatpush1.msra.mxu0 0.0
  %1139 = vmatprep.subr.mxu0 0.0
  %1140 = vmatpush1.msra.mxu0 0.0
  %1141 = vmatprep.subr.mxu0 0.0
  %1142 = vmatpush1.msra.mxu0 0.0
  %1143 = vmatprep.subr.mxu0 0.0
  %1144 = vmatpush1.msra.mxu0 0.0
  %1145 = vmatprep.subr.mxu0 0.0
  %1146 = vmatpush1.msra.mxu0 0.0
  %1147 = vmatprep.subr.mxu0 0.0
  %1148 = vmatpush1.msra.mxu0 0.0
  %1149 = vmatprep.subr.mxu0 0.0
  %1150 = vmatpush1.msra.mxu0 0.0
  %1151 = vmatprep.subr.mxu0 0.0
  %1152 = vmatpush1.msra.mxu0 0.0
  %1153 = vmatprep.subr.mxu0 0.0
  %1154 = vmatpush1.msra.mxu0 0.0
  %1155 = vmatprep.subr.mxu0 0.0
  %1156 = vmatpush1.msra.mxu0 0.0
  %1157 = vmatprep.mubr.f32.mxu0 0.0
  %1158 = vmatmul.mubr.f32.gmra.mrb[0].mxu0 %v1091
  %v1159 = vpop.f32.mrb[0].mxu0
  %v1160 = vadd.f32 0.0, %v1159
  %v1161 = vpop.f32.mrb[0].mxu0
  %1162 = vdwg.mxu0
  %1163 = vrot.lane.b32.xlu0 %v155, 64
  %v1164 = vpop.permute.xlu0 %1163
  %v1167 = vsel %vm164, %v852, 0
  %1169 = vmatprep.subr.mxu0 0.0
  %1170 = vmatpush1.msra.mxu0 %v1164
  %1171 = vmatprep.subr.mxu0 0.0
  %1172 = vmatpush1.msra.mxu0 0.0
  %1173 = vmatprep.subr.mxu0 0.0
  %1174 = vmatpush1.msra.mxu0 0.0
  %1175 = vmatprep.subr.mxu0 0.0
  %1176 = vmatpush1.msra.mxu0 0.0
  %1177 = vmatprep.subr.mxu0 0.0
  %1178 = vmatpush1.msra.mxu0 0.0
  %1179 = vmatprep.subr.mxu0 0.0
  %1180 = vmatpush1.msra.mxu0 0.0
  %1181 = vmatprep.subr.mxu0 0.0
  %1182 = vmatpush1.msra.mxu0 0.0
  %1183 = vmatprep.subr.mxu0 0.0
  %1184 = vmatpush1.msra.mxu0 0.0
  %1185 = vmatprep.subr.mxu0 0.0
  %1186 = vmatpush1.msra.mxu0 0.0
  %1187 = vmatprep.subr.mxu0 0.0
  %1188 = vmatpush1.msra.mxu0 0.0
  %1189 = vmatprep.subr.mxu0 0.0
  %1190 = vmatpush1.msra.mxu0 0.0
  %1191 = vmatprep.subr.mxu0 0.0
  %1192 = vmatpush1.msra.mxu0 0.0
  %1193 = vmatprep.subr.mxu0 0.0
  %1194 = vmatpush1.msra.mxu0 0.0
  %1195 = vmatprep.subr.mxu0 0.0
  %1196 = vmatpush1.msra.mxu0 0.0
  %1197 = vmatprep.subr.mxu0 0.0
  %1198 = vmatpush1.msra.mxu0 0.0
  %1199 = vmatprep.subr.mxu0 0.0
  %1200 = vmatpush1.msra.mxu0 0.0
  %1201 = vmatprep.subr.mxu0 0.0
  %1202 = vmatpush1.msra.mxu0 0.0
  %1203 = vmatprep.subr.mxu0 0.0
  %1204 = vmatpush1.msra.mxu0 0.0
  %1205 = vmatprep.subr.mxu0 0.0
  %1206 = vmatpush1.msra.mxu0 0.0
  %1207 = vmatprep.subr.mxu0 0.0
  %1208 = vmatpush1.msra.mxu0 0.0
  %1209 = vmatprep.subr.mxu0 0.0
  %1210 = vmatpush1.msra.mxu0 0.0
  %1211 = vmatprep.subr.mxu0 0.0
  %1212 = vmatpush1.msra.mxu0 0.0
  %1213 = vmatprep.subr.mxu0 0.0
  %1214 = vmatpush1.msra.mxu0 0.0
  %1215 = vmatprep.subr.mxu0 0.0
  %1216 = vmatpush1.msra.mxu0 0.0
  %1217 = vmatprep.subr.mxu0 0.0
  %1218 = vmatpush1.msra.mxu0 0.0
  %1219 = vmatprep.subr.mxu0 0.0
  %1220 = vmatpush1.msra.mxu0 0.0
  %1221 = vmatprep.subr.mxu0 0.0
  %1222 = vmatpush1.msra.mxu0 0.0
  %1223 = vmatprep.subr.mxu0 0.0
  %1224 = vmatpush1.msra.mxu0 0.0
  %1225 = vmatprep.subr.mxu0 0.0
  %1226 = vmatpush1.msra.mxu0 0.0
  %1227 = vmatprep.subr.mxu0 0.0
  %1228 = vmatpush1.msra.mxu0 0.0
  %1229 = vmatprep.subr.mxu0 0.0
  %1230 = vmatpush1.msra.mxu0 0.0
  %1231 = vmatprep.subr.mxu0 0.0
  %1232 = vmatpush1.msra.mxu0 0.0
  %1233 = vmatprep.mubr.f32.mxu0 0.0
  %1234 = vmatmul.mubr.f32.gmra.mrb[0].mxu0 %v1167
  %v1235 = vpop.f32.mrb[0].mxu0
  %v1236 = vadd.f32 0.0, %v1235
  %v1237 = vpop.f32.mrb[0].mxu0
  %1238 = vdwg.mxu0
  %1239 = vrot.lane.b32.xlu0 %v157, 64
  %v1240 = vpop.permute.xlu0 %1239
  %v1243 = vsel %vm164, %v854, 0
  %1245 = vmatprep.subr.mxu0 0.0
  %1246 = vmatpush1.msra.mxu0 %v1240
  %1247 = vmatprep.subr.mxu0 0.0
  %1248 = vmatpush1.msra.mxu0 0.0
  %1249 = vmatprep.subr.mxu0 0.0
  %1250 = vmatpush1.msra.mxu0 0.0
  %1251 = vmatprep.subr.mxu0 0.0
  %1252 = vmatpush1.msra.mxu0 0.0
  %1253 = vmatprep.subr.mxu0 0.0
  %1254 = vmatpush1.msra.mxu0 0.0
  %1255 = vmatprep.subr.mxu0 0.0
  %1256 = vmatpush1.msra.mxu0 0.0
  %1257 = vmatprep.subr.mxu0 0.0
  %1258 = vmatpush1.msra.mxu0 0.0
  %1259 = vmatprep.subr.mxu0 0.0
  %1260 = vmatpush1.msra.mxu0 0.0
  %1261 = vmatprep.subr.mxu0 0.0
  %1262 = vmatpush1.msra.mxu0 0.0
  %1263 = vmatprep.subr.mxu0 0.0
  %1264 = vmatpush1.msra.mxu0 0.0
  %1265 = vmatprep.subr.mxu0 0.0
  %1266 = vmatpush1.msra.mxu0 0.0
  %1267 = vmatprep.subr.mxu0 0.0
  %1268 = vmatpush1.msra.mxu0 0.0
  %1269 = vmatprep.subr.mxu0 0.0
  %1270 = vmatpush1.msra.mxu0 0.0
  %1271 = vmatprep.subr.mxu0 0.0
  %1272 = vmatpush1.msra.mxu0 0.0
  %1273 = vmatprep.subr.mxu0 0.0
  %1274 = vmatpush1.msra.mxu0 0.0
  %1275 = vmatprep.subr.mxu0 0.0
  %1276 = vmatpush1.msra.mxu0 0.0
  %1277 = vmatprep.subr.mxu0 0.0
  %1278 = vmatpush1.msra.mxu0 0.0
  %1279 = vmatprep.subr.mxu0 0.0
  %1280 = vmatpush1.msra.mxu0 0.0
  %1281 = vmatprep.subr.mxu0 0.0
  %1282 = vmatpush1.msra.mxu0 0.0
  %1283 = vmatprep.subr.mxu0 0.0
  %1284 = vmatpush1.msra.mxu0 0.0
  %1285 = vmatprep.subr.mxu0 0.0
  %1286 = vmatpush1.msra.mxu0 0.0
  %1287 = vmatprep.subr.mxu0 0.0
  %1288 = vmatpush1.msra.mxu0 0.0
  %1289 = vmatprep.subr.mxu0 0.0
  %1290 = vmatpush1.msra.mxu0 0.0
  %1291 = vmatprep.subr.mxu0 0.0
  %1292 = vmatpush1.msra.mxu0 0.0
  %1293 = vmatprep.subr.mxu0 0.0
  %1294 = vmatpush1.msra.mxu0 0.0
  %1295 = vmatprep.subr.mxu0 0.0
  %1296 = vmatpush1.msra.mxu0 0.0
  %1297 = vmatprep.subr.mxu0 0.0
  %1298 = vmatpush1.msra.mxu0 0.0
  %1299 = vmatprep.subr.mxu0 0.0
  %1300 = vmatpush1.msra.mxu0 0.0
  %1301 = vmatprep.subr.mxu0 0.0
  %1302 = vmatpush1.msra.mxu0 0.0
  %1303 = vmatprep.subr.mxu0 0.0
  %1304 = vmatpush1.msra.mxu0 0.0
  %1305 = vmatprep.subr.mxu0 0.0
  %1306 = vmatpush1.msra.mxu0 0.0
  %1307 = vmatprep.subr.mxu0 0.0
  %1308 = vmatpush1.msra.mxu0 0.0
  %1309 = vmatprep.mubr.f32.mxu0 0.0
  %1310 = vmatmul.mubr.f32.gmra.mrb[0].mxu0 %v1243
  %v1311 = vpop.f32.mrb[0].mxu0
  %v1312 = vadd.f32 0.0, %v1311
  %v1313 = vpop.f32.mrb[0].mxu0
  %1314 = vdwg.mxu0
  %1315 = vrot.lane.b32.xlu0 %v159, 64
  %v1316 = vpop.permute.xlu0 %1315
  %v1319 = vsel %vm164, %v856, 0
  %1321 = vmatprep.subr.mxu0 0.0
  %1322 = vmatpush1.msra.mxu0 %v1316
  %1323 = vmatprep.subr.mxu0 0.0
  %1324 = vmatpush1.msra.mxu0 0.0
  %1325 = vmatprep.subr.mxu0 0.0
  %1326 = vmatpush1.msra.mxu0 0.0
  %1327 = vmatprep.subr.mxu0 0.0
  %1328 = vmatpush1.msra.mxu0 0.0
  %1329 = vmatprep.subr.mxu0 0.0
  %1330 = vmatpush1.msra.mxu0 0.0
  %1331 = vmatprep.subr.mxu0 0.0
  %1332 = vmatpush1.msra.mxu0 0.0
  %1333 = vmatprep.subr.mxu0 0.0
  %1334 = vmatpush1.msra.mxu0 0.0
  %1335 = vmatprep.subr.mxu0 0.0
  %1336 = vmatpush1.msra.mxu0 0.0
  %1337 = vmatprep.subr.mxu0 0.0
  %1338 = vmatpush1.msra.mxu0 0.0
  %1339 = vmatprep.subr.mxu0 0.0
  %1340 = vmatpush1.msra.mxu0 0.0
  %1341 = vmatprep.subr.mxu0 0.0
  %1342 = vmatpush1.msra.mxu0 0.0
  %1343 = vmatprep.subr.mxu0 0.0
  %1344 = vmatpush1.msra.mxu0 0.0
  %1345 = vmatprep.subr.mxu0 0.0
  %1346 = vmatpush1.msra.mxu0 0.0
  %1347 = vmatprep.subr.mxu0 0.0
  %1348 = vmatpush1.msra.mxu0 0.0
  %1349 = vmatprep.subr.mxu0 0.0
  %1350 = vmatpush1.msra.mxu0 0.0
  %1351 = vmatprep.subr.mxu0 0.0
  %1352 = vmatpush1.msra.mxu0 0.0
  %1353 = vmatprep.subr.mxu0 0.0
  %1354 = vmatpush1.msra.mxu0 0.0
  %1355 = vmatprep.subr.mxu0 0.0
  %1356 = vmatpush1.msra.mxu0 0.0
  %1357 = vmatprep.subr.mxu0 0.0
  %1358 = vmatpush1.msra.mxu0 0.0
  %1359 = vmatprep.subr.mxu0 0.0
  %1360 = vmatpush1.msra.mxu0 0.0
  %1361 = vmatprep.subr.mxu0 0.0
  %1362 = vmatpush1.msra.mxu0 0.0
  %1363 = vmatprep.subr.mxu0 0.0
  %1364 = vmatpush1.msra.mxu0 0.0
  %1365 = vmatprep.subr.mxu0 0.0
  %1366 = vmatpush1.msra.mxu0 0.0
  %1367 = vmatprep.subr.mxu0 0.0
  %1368 = vmatpush1.msra.mxu0 0.0
  %1369 = vmatprep.subr.mxu0 0.0
  %1370 = vmatpush1.msra.mxu0 0.0
  %1371 = vmatprep.subr.mxu0 0.0
  %1372 = vmatpush1.msra.mxu0 0.0
  %1373 = vmatprep.subr.mxu0 0.0
  %1374 = vmatpush1.msra.mxu0 0.0
  %1375 = vmatprep.subr.mxu0 0.0
  %1376 = vmatpush1.msra.mxu0 0.0
  %1377 = vmatprep.subr.mxu0 0.0
  %1378 = vmatpush1.msra.mxu0 0.0
  %1379 = vmatprep.subr.mxu0 0.0
  %1380 = vmatpush1.msra.mxu0 0.0
  %1381 = vmatprep.subr.mxu0 0.0
  %1382 = vmatpush1.msra.mxu0 0.0
  %1383 = vmatprep.subr.mxu0 0.0
  %1384 = vmatpush1.msra.mxu0 0.0
  %1385 = vmatprep.mubr.f32.mxu0 0.0
  %1386 = vmatmul.mubr.f32.gmra.mrb[0].mxu0 %v1319
  %v1387 = vpop.f32.mrb[0].mxu0
  %v1388 = vadd.f32 0.0, %v1387
  %v1389 = vpop.f32.mrb[0].mxu0
  %1390 = vdwg.mxu0
  %1391 = vrot.lane.b32.xlu0 %v161, 64
  %v1392 = vpop.permute.xlu0 %1391
  %v1395 = vsel %vm164, %v858, 0
  %1397 = vmatprep.subr.mxu0 0.0
  %1398 = vmatpush1.msra.mxu0 %v1392
  %1399 = vmatprep.subr.mxu0 0.0
  %1400 = vmatpush1.msra.mxu0 0.0
  %1401 = vmatprep.subr.mxu0 0.0
  %1402 = vmatpush1.msra.mxu0 0.0
  %1403 = vmatprep.subr.mxu0 0.0
  %1404 = vmatpush1.msra.mxu0 0.0
  %1405 = vmatprep.subr.mxu0 0.0
  %1406 = vmatpush1.msra.mxu0 0.0
  %1407 = vmatprep.subr.mxu0 0.0
  %1408 = vmatpush1.msra.mxu0 0.0
  %1409 = vmatprep.subr.mxu0 0.0
  %1410 = vmatpush1.msra.mxu0 0.0
  %1411 = vmatprep.subr.mxu0 0.0
  %1412 = vmatpush1.msra.mxu0 0.0
  %1413 = vmatprep.subr.mxu0 0.0
  %1414 = vmatpush1.msra.mxu0 0.0
  %1415 = vmatprep.subr.mxu0 0.0
  %1416 = vmatpush1.msra.mxu0 0.0
  %1417 = vmatprep.subr.mxu0 0.0
  %1418 = vmatpush1.msra.mxu0 0.0
  %1419 = vmatprep.subr.mxu0 0.0
  %1420 = vmatpush1.msra.mxu0 0.0
  %1421 = vmatprep.subr.mxu0 0.0
  %1422 = vmatpush1.msra.mxu0 0.0
  %1423 = vmatprep.subr.mxu0 0.0
  %1424 = vmatpush1.msra.mxu0 0.0
  %1425 = vmatprep.subr.mxu0 0.0
  %1426 = vmatpush1.msra.mxu0 0.0
  %1427 = vmatprep.subr.mxu0 0.0
  %1428 = vmatpush1.msra.mxu0 0.0
  %1429 = vmatprep.subr.mxu0 0.0
  %1430 = vmatpush1.msra.mxu0 0.0
  %1431 = vmatprep.subr.mxu0 0.0
  %1432 = vmatpush1.msra.mxu0 0.0
  %1433 = vmatprep.subr.mxu0 0.0
  %1434 = vmatpush1.msra.mxu0 0.0
  %1435 = vmatprep.subr.mxu0 0.0
  %1436 = vmatpush1.msra.mxu0 0.0
  %1437 = vmatprep.subr.mxu0 0.0
  %1438 = vmatpush1.msra.mxu0 0.0
  %1439 = vmatprep.subr.mxu0 0.0
  %1440 = vmatpush1.msra.mxu0 0.0
  %1441 = vmatprep.subr.mxu0 0.0
  %1442 = vmatpush1.msra.mxu0 0.0
  %1443 = vmatprep.subr.mxu0 0.0
  %1444 = vmatpush1.msra.mxu0 0.0
  %1445 = vmatprep.subr.mxu0 0.0
  %1446 = vmatpush1.msra.mxu0 0.0
  %1447 = vmatprep.subr.mxu0 0.0
  %1448 = vmatpush1.msra.mxu0 0.0
  %1449 = vmatprep.subr.mxu0 0.0
  %1450 = vmatpush1.msra.mxu0 0.0
  %1451 = vmatprep.subr.mxu0 0.0
  %1452 = vmatpush1.msra.mxu0 0.0
  %1453 = vmatprep.subr.mxu0 0.0
  %1454 = vmatpush1.msra.mxu0 0.0
  %1455 = vmatprep.subr.mxu0 0.0
  %1456 = vmatpush1.msra.mxu0 0.0
  %1457 = vmatprep.subr.mxu0 0.0
  %1458 = vmatpush1.msra.mxu0 0.0
  %1459 = vmatprep.subr.mxu0 0.0
  %1460 = vmatpush1.msra.mxu0 0.0
  %1461 = vmatprep.mubr.f32.mxu0 0.0
  %1462 = vmatmul.mubr.f32.gmra.mrb[0].mxu0 %v1395
  %v1463 = vpop.f32.mrb[0].mxu0
  %v1464 = vadd.f32 0.0, %v1463
  %v1465 = vpop.f32.mrb[0].mxu0
  %1466 = vdwg.mxu0
  %1468 = vrot.lane.b32.xlu0 %v25, 64
  %v1469 = vpop.permute.xlu0 %1468
  %v1472 = vsel %vm164, %v932, 0
  %v1475 = vsel %vm164, %v1008, 0
  %1477 = vmatprep.subr.mxu0 0.0
  %1478 = vmatpush1.msra.mxu0 %v1469
  %1479 = vmatprep.subr.mxu0 0.0
  %1480 = vmatpush1.msra.mxu0 0.0
  %1481 = vmatprep.subr.mxu0 0.0
  %1482 = vmatpush1.msra.mxu0 0.0
  %1483 = vmatprep.subr.mxu0 0.0
  %1484 = vmatpush1.msra.mxu0 0.0
  %1485 = vmatprep.subr.mxu0 0.0
  %1486 = vmatpush1.msra.mxu0 0.0
  %1487 = vmatprep.subr.mxu0 0.0
  %1488 = vmatpush1.msra.mxu0 0.0
  %1489 = vmatprep.subr.mxu0 0.0
  %1490 = vmatpush1.msra.mxu0 0.0
  %1491 = vmatprep.subr.mxu0 0.0
  %1492 = vmatpush1.msra.mxu0 0.0
  %1493 = vmatprep.subr.mxu0 0.0
  %1494 = vmatpush1.msra.mxu0 0.0
  %1495 = vmatprep.subr.mxu0 0.0
  %1496 = vmatpush1.msra.mxu0 0.0
  %1497 = vmatprep.subr.mxu0 0.0
  %1498 = vmatpush1.msra.mxu0 0.0
  %1499 = vmatprep.subr.mxu0 0.0
  %1500 = vmatpush1.msra.mxu0 0.0
  %1501 = vmatprep.subr.mxu0 0.0
  %1502 = vmatpush1.msra.mxu0 0.0
  %1503 = vmatprep.subr.mxu0 0.0
  %1504 = vmatpush1.msra.mxu0 0.0
  %1505 = vmatprep.subr.mxu0 0.0
  %1506 = vmatpush1.msra.mxu0 0.0
  %1507 = vmatprep.subr.mxu0 0.0
  %1508 = vmatpush1.msra.mxu0 0.0
  %1509 = vmatprep.subr.mxu0 0.0
  %1510 = vmatpush1.msra.mxu0 0.0
  %1511 = vmatprep.subr.mxu0 0.0
  %1512 = vmatpush1.msra.mxu0 0.0
  %1513 = vmatprep.subr.mxu0 0.0
  %1514 = vmatpush1.msra.mxu0 0.0
  %1515 = vmatprep.subr.mxu0 0.0
  %1516 = vmatpush1.msra.mxu0 0.0
  %1517 = vmatprep.subr.mxu0 0.0
  %1518 = vmatpush1.msra.mxu0 0.0
  %1519 = vmatprep.subr.mxu0 0.0
  %1520 = vmatpush1.msra.mxu0 0.0
  %1521 = vmatprep.subr.mxu0 0.0
  %1522 = vmatpush1.msra.mxu0 0.0
  %1523 = vmatprep.subr.mxu0 0.0
  %1524 = vmatpush1.msra.mxu0 0.0
  %1525 = vmatprep.subr.mxu0 0.0
  %1526 = vmatpush1.msra.mxu0 0.0
  %1527 = vmatprep.subr.mxu0 0.0
  %1528 = vmatpush1.msra.mxu0 0.0
  %1529 = vmatprep.subr.mxu0 0.0
  %1530 = vmatpush1.msra.mxu0 0.0
  %1531 = vmatprep.subr.mxu0 0.0
  %1532 = vmatpush1.msra.mxu0 0.0
  %1533 = vmatprep.subr.mxu0 0.0
  %1534 = vmatpush1.msra.mxu0 0.0
  %1535 = vmatprep.subr.mxu0 0.0
  %1536 = vmatpush1.msra.mxu0 0.0
  %1537 = vmatprep.subr.mxu0 0.0
  %1538 = vmatpush1.msra.mxu0 0.0
  %1539 = vmatprep.subr.mxu0 0.0
  %1540 = vmatpush1.msra.mxu0 0.0
  %1541 = vmatprep.mubr.f32.mxu0 0.0
  %1542 = vmatmul.mubr.f32.gmra.mrb[0].mxu0 %v1472
  %v1543 = vpop.f32.mrb[0].mxu0
  %v1544 = vadd.f32 0.0, %v1543
  %v1545 = vpop.f32.mrb[0].mxu0
  %1546 = vmatprep.mubr.f32.mxu0 0.0
  %1547 = vmatmul.mubr.f32.gmra.mrb[0].mxu0 %v1475
  %v1548 = vpop.f32.mrb[0].mxu0
  %v1549 = vadd.f32 0.0, %v1548
  %v1550 = vpop.f32.mrb[0].mxu0
  %1551 = vdwg.mxu0
  %v1552 = vlaneseq
  %v1553 = vshrl.u32 %v1552, 7
  %v1554 = vsub.s32 1, %v1553
  %v1555 = vrot.slane %v44, %v1554
  %v1556 = vadd.f32 %v1555, %v1544
  %v1557 = vadd.f32 %v1555, %v1549
  %1559 = vrot.lane.b32.xlu0 %v28, 64
  %v1560 = vpop.permute.xlu0 %1559
  %v1563 = vsel %vm164, %v1084, 0
  %v1566 = vsel %vm164, %v1160, 0
  %1568 = vmatprep.subr.mxu0 0.0
  %1569 = vmatpush1.msra.mxu0 %v1560
  %1570 = vmatprep.subr.mxu0 0.0
  %1571 = vmatpush1.msra.mxu0 0.0
  %1572 = vmatprep.subr.mxu0 0.0
  %1573 = vmatpush1.msra.mxu0 0.0
  %1574 = vmatprep.subr.mxu0 0.0
  %1575 = vmatpush1.msra.mxu0 0.0
  %1576 = vmatprep.subr.mxu0 0.0
  %1577 = vmatpush1.msra.mxu0 0.0
  %1578 = vmatprep.subr.mxu0 0.0
  %1579 = vmatpush1.msra.mxu0 0.0
  %1580 = vmatprep.subr.mxu0 0.0
  %1581 = vmatpush1.msra.mxu0 0.0
  %1582 = vmatprep.subr.mxu0 0.0
  %1583 = vmatpush1.msra.mxu0 0.0
  %1584 = vmatprep.subr.mxu0 0.0
  %1585 = vmatpush1.msra.mxu0 0.0
  %1586 = vmatprep.subr.mxu0 0.0
  %1587 = vmatpush1.msra.mxu0 0.0
  %1588 = vmatprep.subr.mxu0 0.0
  %1589 = vmatpush1.msra.mxu0 0.0
  %1590 = vmatprep.subr.mxu0 0.0
  %1591 = vmatpush1.msra.mxu0 0.0
  %1592 = vmatprep.subr.mxu0 0.0
  %1593 = vmatpush1.msra.mxu0 0.0
  %1594 = vmatprep.subr.mxu0 0.0
  %1595 = vmatpush1.msra.mxu0 0.0
  %1596 = vmatprep.subr.mxu0 0.0
  %1597 = vmatpush1.msra.mxu0 0.0
  %1598 = vmatprep.subr.mxu0 0.0
  %1599 = vmatpush1.msra.mxu0 0.0
  %1600 = vmatprep.subr.mxu0 0.0
  %1601 = vmatpush1.msra.mxu0 0.0
  %1602 = vmatprep.subr.mxu0 0.0
  %1603 = vmatpush1.msra.mxu0 0.0
  %1604 = vmatprep.subr.mxu0 0.0
  %1605 = vmatpush1.msra.mxu0 0.0
  %1606 = vmatprep.subr.mxu0 0.0
  %1607 = vmatpush1.msra.mxu0 0.0
  %1608 = vmatprep.subr.mxu0 0.0
  %1609 = vmatpush1.msra.mxu0 0.0
  %1610 = vmatprep.subr.mxu0 0.0
  %1611 = vmatpush1.msra.mxu0 0.0
  %1612 = vmatprep.subr.mxu0 0.0
  %1613 = vmatpush1.msra.mxu0 0.0
  %1614 = vmatprep.subr.mxu0 0.0
  %1615 = vmatpush1.msra.mxu0 0.0
  %1616 = vmatprep.subr.mxu0 0.0
  %1617 = vmatpush1.msra.mxu0 0.0
  %1618 = vmatprep.subr.mxu0 0.0
  %1619 = vmatpush1.msra.mxu0 0.0
  %1620 = vmatprep.subr.mxu0 0.0
  %1621 = vmatpush1.msra.mxu0 0.0
  %1622 = vmatprep.subr.mxu0 0.0
  %1623 = vmatpush1.msra.mxu0 0.0
  %1624 = vmatprep.subr.mxu0 0.0
  %1625 = vmatpush1.msra.mxu0 0.0
  %1626 = vmatprep.subr.mxu0 0.0
  %1627 = vmatpush1.msra.mxu0 0.0
  %1628 = vmatprep.subr.mxu0 0.0
  %1629 = vmatpush1.msra.mxu0 0.0
  %1630 = vmatprep.subr.mxu0 0.0
  %1631 = vmatpush1.msra.mxu0 0.0
  %1632 = vmatprep.mubr.f32.mxu0 0.0
  %1633 = vmatmul.mubr.f32.gmra.mrb[0].mxu0 %v1563
  %v1634 = vpop.f32.mrb[0].mxu0
  %v1635 = vadd.f32 0.0, %v1634
  %v1636 = vpop.f32.mrb[0].mxu0
  %1637 = vmatprep.mubr.f32.mxu0 0.0
  %1638 = vmatmul.mubr.f32.gmra.mrb[0].mxu0 %v1566
  %v1639 = vpop.f32.mrb[0].mxu0
  %v1640 = vadd.f32 0.0, %v1639
  %v1641 = vpop.f32.mrb[0].mxu0
  %1642 = vdwg.mxu0
  %v1643 = vadd.f32 %v1556, %v1635
  %v1644 = vadd.f32 %v1557, %v1640
  %1646 = vrot.lane.b32.xlu0 %v31, 64
  %v1647 = vpop.permute.xlu0 %1646
  %v1650 = vsel %vm164, %v1236, 0
  %v1653 = vsel %vm164, %v1312, 0
  %1655 = vmatprep.subr.mxu0 0.0
  %1656 = vmatpush1.msra.mxu0 %v1647
  %1657 = vmatprep.subr.mxu0 0.0
  %1658 = vmatpush1.msra.mxu0 0.0
  %1659 = vmatprep.subr.mxu0 0.0
  %1660 = vmatpush1.msra.mxu0 0.0
  %1661 = vmatprep.subr.mxu0 0.0
  %1662 = vmatpush1.msra.mxu0 0.0
  %1663 = vmatprep.subr.mxu0 0.0
  %1664 = vmatpush1.msra.mxu0 0.0
  %1665 = vmatprep.subr.mxu0 0.0
  %1666 = vmatpush1.msra.mxu0 0.0
  %1667 = vmatprep.subr.mxu0 0.0
  %1668 = vmatpush1.msra.mxu0 0.0
  %1669 = vmatprep.subr.mxu0 0.0
  %1670 = vmatpush1.msra.mxu0 0.0
  %1671 = vmatprep.subr.mxu0 0.0
  %1672 = vmatpush1.msra.mxu0 0.0
  %1673 = vmatprep.subr.mxu0 0.0
  %1674 = vmatpush1.msra.mxu0 0.0
  %1675 = vmatprep.subr.mxu0 0.0
  %1676 = vmatpush1.msra.mxu0 0.0
  %1677 = vmatprep.subr.mxu0 0.0
  %1678 = vmatpush1.msra.mxu0 0.0
  %1679 = vmatprep.subr.mxu0 0.0
  %1680 = vmatpush1.msra.mxu0 0.0
  %1681 = vmatprep.subr.mxu0 0.0
  %1682 = vmatpush1.msra.mxu0 0.0
  %1683 = vmatprep.subr.mxu0 0.0
  %1684 = vmatpush1.msra.mxu0 0.0
  %1685 = vmatprep.subr.mxu0 0.0
  %1686 = vmatpush1.msra.mxu0 0.0
  %1687 = vmatprep.subr.mxu0 0.0
  %1688 = vmatpush1.msra.mxu0 0.0
  %1689 = vmatprep.subr.mxu0 0.0
  %1690 = vmatpush1.msra.mxu0 0.0
  %1691 = vmatprep.subr.mxu0 0.0
  %1692 = vmatpush1.msra.mxu0 0.0
  %1693 = vmatprep.subr.mxu0 0.0
  %1694 = vmatpush1.msra.mxu0 0.0
  %1695 = vmatprep.subr.mxu0 0.0
  %1696 = vmatpush1.msra.mxu0 0.0
  %1697 = vmatprep.subr.mxu0 0.0
  %1698 = vmatpush1.msra.mxu0 0.0
  %1699 = vmatprep.subr.mxu0 0.0
  %1700 = vmatpush1.msra.mxu0 0.0
  %1701 = vmatprep.subr.mxu0 0.0
  %1702 = vmatpush1.msra.mxu0 0.0
  %1703 = vmatprep.subr.mxu0 0.0
  %1704 = vmatpush1.msra.mxu0 0.0
  %1705 = vmatprep.subr.mxu0 0.0
  %1706 = vmatpush1.msra.mxu0 0.0
  %1707 = vmatprep.subr.mxu0 0.0
  %1708 = vmatpush1.msra.mxu0 0.0
  %1709 = vmatprep.subr.mxu0 0.0
  %1710 = vmatpush1.msra.mxu0 0.0
  %1711 = vmatprep.subr.mxu0 0.0
  %1712 = vmatpush1.msra.mxu0 0.0
  %1713 = vmatprep.subr.mxu0 0.0
  %1714 = vmatpush1.msra.mxu0 0.0
  %1715 = vmatprep.subr.mxu0 0.0
  %1716 = vmatpush1.msra.mxu0 0.0
  %1717 = vmatprep.subr.mxu0 0.0
  %1718 = vmatpush1.msra.mxu0 0.0
  %1719 = vmatprep.mubr.f32.mxu0 0.0
  %1720 = vmatmul.mubr.f32.gmra.mrb[0].mxu0 %v1650
  %v1721 = vpop.f32.mrb[0].mxu0
  %v1722 = vadd.f32 0.0, %v1721
  %v1723 = vpop.f32.mrb[0].mxu0
  %1724 = vmatprep.mubr.f32.mxu0 0.0
  %1725 = vmatmul.mubr.f32.gmra.mrb[0].mxu0 %v1653
  %v1726 = vpop.f32.mrb[0].mxu0
  %v1727 = vadd.f32 0.0, %v1726
  %v1728 = vpop.f32.mrb[0].mxu0
  %1729 = vdwg.mxu0
  %v1730 = vadd.f32 %v1643, %v1722
  %v1731 = vadd.f32 %v1644, %v1727
  %1733 = vrot.lane.b32.xlu0 %v34, 64
  %v1734 = vpop.permute.xlu0 %1733
  %v1737 = vsel %vm164, %v1388, 0
  %v1740 = vsel %vm164, %v1464, 0
  %1742 = vmatprep.subr.mxu0 0.0
  %1743 = vmatpush1.msra.mxu0 %v1734
  %1744 = vmatprep.subr.mxu0 0.0
  %1745 = vmatpush1.msra.mxu0 0.0
  %1746 = vmatprep.subr.mxu0 0.0
  %1747 = vmatpush1.msra.mxu0 0.0
  %1748 = vmatprep.subr.mxu0 0.0
  %1749 = vmatpush1.msra.mxu0 0.0
  %1750 = vmatprep.subr.mxu0 0.0
  %1751 = vmatpush1.msra.mxu0 0.0
  %1752 = vmatprep.subr.mxu0 0.0
  %1753 = vmatpush1.msra.mxu0 0.0
  %1754 = vmatprep.subr.mxu0 0.0
  %1755 = vmatpush1.msra.mxu0 0.0
  %1756 = vmatprep.subr.mxu0 0.0
  %1757 = vmatpush1.msra.mxu0 0.0
  %1758 = vmatprep.subr.mxu0 0.0
  %1759 = vmatpush1.msra.mxu0 0.0
  %1760 = vmatprep.subr.mxu0 0.0
  %1761 = vmatpush1.msra.mxu0 0.0
  %1762 = vmatprep.subr.mxu0 0.0
  %1763 = vmatpush1.msra.mxu0 0.0
  %1764 = vmatprep.subr.mxu0 0.0
  %1765 = vmatpush1.msra.mxu0 0.0
  %1766 = vmatprep.subr.mxu0 0.0
  %1767 = vmatpush1.msra.mxu0 0.0
  %1768 = vmatprep.subr.mxu0 0.0
  %1769 = vmatpush1.msra.mxu0 0.0
  %1770 = vmatprep.subr.mxu0 0.0
  %1771 = vmatpush1.msra.mxu0 0.0
  %1772 = vmatprep.subr.mxu0 0.0
  %1773 = vmatpush1.msra.mxu0 0.0
  %1774 = vmatprep.subr.mxu0 0.0
  %1775 = vmatpush1.msra.mxu0 0.0
  %1776 = vmatprep.subr.mxu0 0.0
  %1777 = vmatpush1.msra.mxu0 0.0
  %1778 = vmatprep.subr.mxu0 0.0
  %1779 = vmatpush1.msra.mxu0 0.0
  %1780 = vmatprep.subr.mxu0 0.0
  %1781 = vmatpush1.msra.mxu0 0.0
  %1782 = vmatprep.subr.mxu0 0.0
  %1783 = vmatpush1.msra.mxu0 0.0
  %1784 = vmatprep.subr.mxu0 0.0
  %1785 = vmatpush1.msra.mxu0 0.0
  %1786 = vmatprep.subr.mxu0 0.0
  %1787 = vmatpush1.msra.mxu0 0.0
  %1788 = vmatprep.subr.mxu0 0.0
  %1789 = vmatpush1.msra.mxu0 0.0
  %1790 = vmatprep.subr.mxu0 0.0
  %1791 = vmatpush1.msra.mxu0 0.0
  %1792 = vmatprep.subr.mxu0 0.0
  %1793 = vmatpush1.msra.mxu0 0.0
  %1794 = vmatprep.subr.mxu0 0.0
  %1795 = vmatpush1.msra.mxu0 0.0
  %1796 = vmatprep.subr.mxu0 0.0
  %1797 = vmatpush1.msra.mxu0 0.0
  %1798 = vmatprep.subr.mxu0 0.0
  %1799 = vmatpush1.msra.mxu0 0.0
  %1800 = vmatprep.subr.mxu0 0.0
  %1801 = vmatpush1.msra.mxu0 0.0
  %1802 = vmatprep.subr.mxu0 0.0
  %1803 = vmatpush1.msra.mxu0 0.0
  %1804 = vmatprep.subr.mxu0 0.0
  %1805 = vmatpush1.msra.mxu0 0.0
  %1806 = vmatprep.mubr.f32.mxu0 0.0
  %1807 = vmatmul.mubr.f32.gmra.mrb[0].mxu0 %v1737
  %v1808 = vpop.f32.mrb[0].mxu0
  %v1809 = vadd.f32 0.0, %v1808
  %v1810 = vpop.f32.mrb[0].mxu0
  %1811 = vmatprep.mubr.f32.mxu0 0.0
  %1812 = vmatmul.mubr.f32.gmra.mrb[0].mxu0 %v1740
  %v1813 = vpop.f32.mrb[0].mxu0
  %v1814 = vadd.f32 0.0, %v1813
  %v1815 = vpop.f32.mrb[0].mxu0
  %1816 = vdwg.mxu0
  %v1817 = vadd.f32 %v1730, %v1809
  %v1818 = vadd.f32 %v1731, %v1814
  %v1819 = vadd.f32 %v20, %v1817
  %v1820 = vadd.f32 %v21, %v1818
  %v1821 = vsel %vm50, %v1819, 0.0
  %1822 = vadd.xlane.f32.xlu0 %v1821
  %v1823 = vpop.xlane.xlu0 %1822
  %v1824 = vsel %vm50, %v1820, 0.0
  %1825 = vadd.xlane.f32.xlu0 %v1824
  %v1826 = vpop.xlane.xlu0 %1825
  %v1827 = vrcp.pop 32.0
  %v1828 = vmul.f32 %v1823, %v1827
  %v1829 = vmul.f32 %v1826, %v1827
  %v1830 = vsub.f32 %v1819, %v1828
  %v1831 = vsub.f32 %v1820, %v1829
  %v1832 = vmul.f32 %v1830, %v1830
  %v1833 = vmul.f32 %v1831, %v1831
  %v1834 = vsel %vm50, %v1832, 0.0
  %1835 = vadd.xlane.f32.xlu0 %v1834
  %v1836 = vpop.xlane.xlu0 %1835
  %v1837 = vsel %vm50, %v1833, 0.0
  %1838 = vadd.xlane.f32.xlu0 %v1837
  %v1839 = vpop.xlane.xlu0 %1838
  %v1840 = vmul.f32 %v1836, %v1827
  %v1841 = vmul.f32 %v1839, %v1827
  %v1842 = vadd.f32 %v1840, 1e-05
  %v1843 = vadd.f32 %v1841, 1e-05
  %v1844 = vrsqrt.pop %v1842
  %v1845 = vrsqrt.pop %v1843
  %v1846 = vmul.f32 %v1830, %v1844
  %v1847 = vmul.f32 %v1831, %v1845
  %v1848 = vlaneseq
  %v1849 = vshrl.u32 %v1848, 7
  %v1850 = vsub.s32 7, %v1849
  %v1851 = vrot.slane %v44, %v1850
  %v1852 = vmul.f32 %v1846, %v1851
  %v1853 = vmul.f32 %v1847, %v1851
  %v1854 = vlaneseq
  %v1855 = vshrl.u32 %v1854, 7
  %v1856 = vsub.s32 0, %v1855
  %v1857 = vrot.slane %v45, %v1856
  %v1858 = vadd.f32 %v1852, %v1857
  %v1859 = vadd.f32 %v1853, %v1857
  %v1860 = vlaneseq
  %v1861 = vshrl.u32 %v1860, 7
  %v1862 = vsub.s32 2, %v1861
  %v1863 = vrot.slane %v44, %v1862
  %1868 = vrot.lane.b32.xlu0 %v24, 32
  %v1869 = vpop.permute.xlu0 %1868
  %1870 = vrot.lane.b32.xlu0 %v27, 32
  %v1871 = vpop.permute.xlu0 %1870
  %1872 = vrot.lane.b32.xlu0 %v30, 32
  %v1873 = vpop.permute.xlu0 %1872
  %1874 = vrot.lane.b32.xlu0 %v33, 32
  %v1875 = vpop.permute.xlu0 %1874
  %v1881 = vsel %vm50, %v1858, 0
  %v1884 = vsel %vm50, %v1859, 0
  %1886 = vmatprep.subr.mxu0 0.0
  %1887 = vmatpush1.msra.mxu0 %v1869
  %1888 = vmatprep.subr.mxu0 0.0
  %1889 = vmatpush1.msra.mxu0 %v1871
  %1890 = vmatprep.subr.mxu0 0.0
  %1891 = vmatpush1.msra.mxu0 %v1873
  %1892 = vmatprep.subr.mxu0 0.0
  %1893 = vmatpush1.msra.mxu0 %v1875
  %1894 = vmatprep.subr.mxu0 0.0
  %1895 = vmatpush1.msra.mxu0 0.0
  %1896 = vmatprep.subr.mxu0 0.0
  %1897 = vmatpush1.msra.mxu0 0.0
  %1898 = vmatprep.subr.mxu0 0.0
  %1899 = vmatpush1.msra.mxu0 0.0
  %1900 = vmatprep.subr.mxu0 0.0
  %1901 = vmatpush1.msra.mxu0 0.0
  %1902 = vmatprep.subr.mxu0 0.0
  %1903 = vmatpush1.msra.mxu0 0.0
  %1904 = vmatprep.subr.mxu0 0.0
  %1905 = vmatpush1.msra.mxu0 0.0
  %1906 = vmatprep.subr.mxu0 0.0
  %1907 = vmatpush1.msra.mxu0 0.0
  %1908 = vmatprep.subr.mxu0 0.0
  %1909 = vmatpush1.msra.mxu0 0.0
  %1910 = vmatprep.subr.mxu0 0.0
  %1911 = vmatpush1.msra.mxu0 0.0
  %1912 = vmatprep.subr.mxu0 0.0
  %1913 = vmatpush1.msra.mxu0 0.0
  %1914 = vmatprep.subr.mxu0 0.0
  %1915 = vmatpush1.msra.mxu0 0.0
  %1916 = vmatprep.subr.mxu0 0.0
  %1917 = vmatpush1.msra.mxu0 0.0
  %1918 = vmatprep.subr.mxu0 0.0
  %1919 = vmatpush1.msra.mxu0 0.0
  %1920 = vmatprep.subr.mxu0 0.0
  %1921 = vmatpush1.msra.mxu0 0.0
  %1922 = vmatprep.subr.mxu0 0.0
  %1923 = vmatpush1.msra.mxu0 0.0
  %1924 = vmatprep.subr.mxu0 0.0
  %1925 = vmatpush1.msra.mxu0 0.0
  %1926 = vmatprep.subr.mxu0 0.0
  %1927 = vmatpush1.msra.mxu0 0.0
  %1928 = vmatprep.subr.mxu0 0.0
  %1929 = vmatpush1.msra.mxu0 0.0
  %1930 = vmatprep.subr.mxu0 0.0
  %1931 = vmatpush1.msra.mxu0 0.0
  %1932 = vmatprep.subr.mxu0 0.0
  %1933 = vmatpush1.msra.mxu0 0.0
  %1934 = vmatprep.subr.mxu0 0.0
  %1935 = vmatpush1.msra.mxu0 0.0
  %1936 = vmatprep.subr.mxu0 0.0
  %1937 = vmatpush1.msra.mxu0 0.0
  %1938 = vmatprep.subr.mxu0 0.0
  %1939 = vmatpush1.msra.mxu0 0.0
  %1940 = vmatprep.subr.mxu0 0.0
  %1941 = vmatpush1.msra.mxu0 0.0
  %1942 = vmatprep.subr.mxu0 0.0
  %1943 = vmatpush1.msra.mxu0 0.0
  %1944 = vmatprep.subr.mxu0 0.0
  %1945 = vmatpush1.msra.mxu0 0.0
  %1946 = vmatprep.subr.mxu0 0.0
  %1947 = vmatpush1.msra.mxu0 0.0
  %1948 = vmatprep.subr.mxu0 0.0
  %1949 = vmatpush1.msra.mxu0 0.0
  %1950 = vmatprep.mubr.f32.mxu0 0.0
  %1951 = vmatmul.mubr.f32.gmra.mrb[0].mxu0 %v1881
  %v1952 = vpop.f32.mrb[0].mxu0
  %v1953 = vadd.f32 %v1863, %v1952
  %v1954 = vpop.f32.mrb[0].mxu0
  %1955 = vmatprep.mubr.f32.mxu0 0.0
  %1956 = vmatmul.mubr.f32.gmra.mrb[0].mxu0 %v1884
  %v1957 = vpop.f32.mrb[0].mxu0
  %v1958 = vadd.f32 %v1863, %v1957
  %v1959 = vpop.f32.mrb[0].mxu0
  %1960 = vdwg.mxu0
  %v1961 = vlaneseq
  %v1962 = vshrl.u32 %v1961, 7
  %v1963 = vsub.s32 3, %v1962
  %v1964 = vrot.slane %v44, %v1963
  %v1966 = vsel %vm50, %v22, 0
  %v1969 = vsel %vm50, %v23, 0
  %1971 = vmatprep.subr.mxu0 0.0
  %1972 = vmatpush1.msra.mxu0 %v25
  %1973 = vmatprep.subr.mxu0 0.0
  %1974 = vmatpush1.msra.mxu0 %v28
  %1975 = vmatprep.subr.mxu0 0.0
  %1976 = vmatpush1.msra.mxu0 %v31
  %1977 = vmatprep.subr.mxu0 0.0
  %1978 = vmatpush1.msra.mxu0 %v34
  %1979 = vmatprep.subr.mxu0 0.0
  %1980 = vmatpush1.msra.mxu0 0.0
  %1981 = vmatprep.subr.mxu0 0.0
  %1982 = vmatpush1.msra.mxu0 0.0
  %1983 = vmatprep.subr.mxu0 0.0
  %1984 = vmatpush1.msra.mxu0 0.0
  %1985 = vmatprep.subr.mxu0 0.0
  %1986 = vmatpush1.msra.mxu0 0.0
  %1987 = vmatprep.subr.mxu0 0.0
  %1988 = vmatpush1.msra.mxu0 0.0
  %1989 = vmatprep.subr.mxu0 0.0
  %1990 = vmatpush1.msra.mxu0 0.0
  %1991 = vmatprep.subr.mxu0 0.0
  %1992 = vmatpush1.msra.mxu0 0.0
  %1993 = vmatprep.subr.mxu0 0.0
  %1994 = vmatpush1.msra.mxu0 0.0
  %1995 = vmatprep.subr.mxu0 0.0
  %1996 = vmatpush1.msra.mxu0 0.0
  %1997 = vmatprep.subr.mxu0 0.0
  %1998 = vmatpush1.msra.mxu0 0.0
  %1999 = vmatprep.subr.mxu0 0.0
  %2000 = vmatpush1.msra.mxu0 0.0
  %2001 = vmatprep.subr.mxu0 0.0
  %2002 = vmatpush1.msra.mxu0 0.0
  %2003 = vmatprep.subr.mxu0 0.0
  %2004 = vmatpush1.msra.mxu0 0.0
  %2005 = vmatprep.subr.mxu0 0.0
  %2006 = vmatpush1.msra.mxu0 0.0
  %2007 = vmatprep.subr.mxu0 0.0
  %2008 = vmatpush1.msra.mxu0 0.0
  %2009 = vmatprep.subr.mxu0 0.0
  %2010 = vmatpush1.msra.mxu0 0.0
  %2011 = vmatprep.subr.mxu0 0.0
  %2012 = vmatpush1.msra.mxu0 0.0
  %2013 = vmatprep.subr.mxu0 0.0
  %2014 = vmatpush1.msra.mxu0 0.0
  %2015 = vmatprep.subr.mxu0 0.0
  %2016 = vmatpush1.msra.mxu0 0.0
  %2017 = vmatprep.subr.mxu0 0.0
  %2018 = vmatpush1.msra.mxu0 0.0
  %2019 = vmatprep.subr.mxu0 0.0
  %2020 = vmatpush1.msra.mxu0 0.0
  %2021 = vmatprep.subr.mxu0 0.0
  %2022 = vmatpush1.msra.mxu0 0.0
  %2023 = vmatprep.subr.mxu0 0.0
  %2024 = vmatpush1.msra.mxu0 0.0
  %2025 = vmatprep.subr.mxu0 0.0
  %2026 = vmatpush1.msra.mxu0 0.0
  %2027 = vmatprep.subr.mxu0 0.0
  %2028 = vmatpush1.msra.mxu0 0.0
  %2029 = vmatprep.subr.mxu0 0.0
  %2030 = vmatpush1.msra.mxu0 0.0
  %2031 = vmatprep.subr.mxu0 0.0
  %2032 = vmatpush1.msra.mxu0 0.0
  %2033 = vmatprep.subr.mxu0 0.0
  %2034 = vmatpush1.msra.mxu0 0.0
  %2035 = vmatprep.mubr.f32.mxu0 0.0
  %2036 = vmatmul.mubr.f32.gmra.mrb[0].mxu0 %v1966
  %v2037 = vpop.f32.mrb[0].mxu0
  %v2038 = vadd.f32 %v1964, %v2037
  %v2039 = vpop.f32.mrb[0].mxu0
  %2040 = vmatprep.mubr.f32.mxu0 0.0
  %2041 = vmatmul.mubr.f32.gmra.mrb[0].mxu0 %v1969
  %v2042 = vpop.f32.mrb[0].mxu0
  %v2043 = vadd.f32 %v1964, %v2042
  %v2044 = vpop.f32.mrb[0].mxu0
  %2045 = vdwg.mxu0
  %v2046 = vmul.f32 %v1953, 0.35355338
  %v2047 = vmul.f32 %v1958, 0.35355338
  %2050 = vrot.lane.b32.xlu0 %v2046, 120
  %v2051 = vpop.permute.xlu0 %2050
  %2052 = vrot.lane.b32.xlu0 %v2047, 120
  %v2053 = vpop.permute.xlu0 %2052
  %2054 = vrot.lane.b32.xlu0 %v2046, 112
  %v2055 = vpop.permute.xlu0 %2054
  %2056 = vrot.lane.b32.xlu0 %v2047, 112
  %v2057 = vpop.permute.xlu0 %2056
  %2058 = vrot.lane.b32.xlu0 %v2046, 104
  %v2059 = vpop.permute.xlu0 %2058
  %2060 = vrot.lane.b32.xlu0 %v2047, 104
  %v2061 = vpop.permute.xlu0 %2060
  %2064 = vrot.lane.b32.xlu0 %v2038, 120
  %v2065 = vpop.permute.xlu0 %2064
  %2066 = vrot.lane.b32.xlu0 %v2043, 120
  %v2067 = vpop.permute.xlu0 %2066
  %2068 = vrot.lane.b32.xlu0 %v2038, 112
  %v2069 = vpop.permute.xlu0 %2068
  %2070 = vrot.lane.b32.xlu0 %v2043, 112
  %v2071 = vpop.permute.xlu0 %2070
  %2072 = vrot.lane.b32.xlu0 %v2038, 104
  %v2073 = vpop.permute.xlu0 %2072
  %2074 = vrot.lane.b32.xlu0 %v2043, 104
  %v2075 = vpop.permute.xlu0 %2074
  %v2076 = vsel %vm164, %v2046, 0
  %v2078 = vsel %vm164, %v2038, 0
  %2080 = vmatprep.subr.mxu0 0.0
  %2081 = vmatpush1.xpose.msra.mxu0 %v2078
  %2082 = vmatprep.subr.mxu0 0.0
  %2083 = vmatpush1.xpose.msra.mxu0 0.0
  %2084 = vmatprep.subr.mxu0 0.0
  %2085 = vmatpush1.xpose.msra.mxu0 0.0
  %2086 = vmatprep.subr.mxu0 0.0
  %2087 = vmatpush1.xpose.msra.mxu0 0.0
  %2088 = vmatprep.subr.mxu0 0.0
  %2089 = vmatpush1.xpose.msra.mxu0 0.0
  %2090 = vmatprep.subr.mxu0 0.0
  %2091 = vmatpush1.xpose.msra.mxu0 0.0
  %2092 = vmatprep.subr.mxu0 0.0
  %2093 = vmatpush1.xpose.msra.mxu0 0.0
  %2094 = vmatprep.subr.mxu0 0.0
  %2095 = vmatpush1.xpose.msra.mxu0 0.0
  %2096 = vmatprep.subr.mxu0 0.0
  %2097 = vmatpush1.xpose.msra.mxu0 0.0
  %2098 = vmatprep.subr.mxu0 0.0
  %2099 = vmatpush1.xpose.msra.mxu0 0.0
  %2100 = vmatprep.subr.mxu0 0.0
  %2101 = vmatpush1.xpose.msra.mxu0 0.0
  %2102 = vmatprep.subr.mxu0 0.0
  %2103 = vmatpush1.xpose.msra.mxu0 0.0
  %2104 = vmatprep.subr.mxu0 0.0
  %2105 = vmatpush1.xpose.msra.mxu0 0.0
  %2106 = vmatprep.subr.mxu0 0.0
  %2107 = vmatpush1.xpose.msra.mxu0 0.0
  %2108 = vmatprep.subr.mxu0 0.0
  %2109 = vmatpush1.xpose.msra.mxu0 0.0
  %2110 = vmatprep.subr.mxu0 0.0
  %2111 = vmatpush1.xpose.msra.mxu0 0.0
  %2112 = vmatprep.subr.mxu0 0.0
  %2113 = vmatpush1.xpose.msra.mxu0 0.0
  %2114 = vmatprep.subr.mxu0 0.0
  %2115 = vmatpush1.xpose.msra.mxu0 0.0
  %2116 = vmatprep.subr.mxu0 0.0
  %2117 = vmatpush1.xpose.msra.mxu0 0.0
  %2118 = vmatprep.subr.mxu0 0.0
  %2119 = vmatpush1.xpose.msra.mxu0 0.0
  %2120 = vmatprep.subr.mxu0 0.0
  %2121 = vmatpush1.xpose.msra.mxu0 0.0
  %2122 = vmatprep.subr.mxu0 0.0
  %2123 = vmatpush1.xpose.msra.mxu0 0.0
  %2124 = vmatprep.subr.mxu0 0.0
  %2125 = vmatpush1.xpose.msra.mxu0 0.0
  %2126 = vmatprep.subr.mxu0 0.0
  %2127 = vmatpush1.xpose.msra.mxu0 0.0
  %2128 = vmatprep.subr.mxu0 0.0
  %2129 = vmatpush1.xpose.msra.mxu0 0.0
  %2130 = vmatprep.subr.mxu0 0.0
  %2131 = vmatpush1.xpose.msra.mxu0 0.0
  %2132 = vmatprep.subr.mxu0 0.0
  %2133 = vmatpush1.xpose.msra.mxu0 0.0
  %2134 = vmatprep.subr.mxu0 0.0
  %2135 = vmatpush1.xpose.msra.mxu0 0.0
  %2136 = vmatprep.subr.mxu0 0.0
  %2137 = vmatpush1.xpose.msra.mxu0 0.0
  %2138 = vmatprep.subr.mxu0 0.0
  %2139 = vmatpush1.xpose.msra.mxu0 0.0
  %2140 = vmatprep.subr.mxu0 0.0
  %2141 = vmatpush1.xpose.msra.mxu0 0.0
  %2142 = vmatprep.subr.mxu0 0.0
  %2143 = vmatpush1.xpose.msra.mxu0 0.0
  %2144 = vmatprep.mubr.f32.mxu0 0.0
  %2145 = vmatmul.mubr.f32.gmra.mrb[0].mxu0 %v2076
  %v2146 = vpop.f32.mrb[0].mxu0
  %v2147 = vadd.f32 0.0, %v2146
  %v2148 = vpop.f32.mrb[0].mxu0
  %2149 = vdwg.mxu0
  %v2150 = vsel %vm164, %v2047, 0
  %v2152 = vsel %vm164, %v2043, 0
  %2154 = vmatprep.subr.mxu0 0.0
  %2155 = vmatpush1.xpose.msra.mxu0 %v2152
  %2156 = vmatprep.subr.mxu0 0.0
  %2157 = vmatpush1.xpose.msra.mxu0 0.0
  %2158 = vmatprep.subr.mxu0 0.0
  %2159 = vmatpush1.xpose.msra.mxu0 0.0
  %2160 = vmatprep.subr.mxu0 0.0
  %2161 = vmatpush1.xpose.msra.mxu0 0.0
  %2162 = vmatprep.subr.mxu0 0.0
  %2163 = vmatpush1.xpose.msra.mxu0 0.0
  %2164 = vmatprep.subr.mxu0 0.0
  %2165 = vmatpush1.xpose.msra.mxu0 0.0
  %2166 = vmatprep.subr.mxu0 0.0
  %2167 = vmatpush1.xpose.msra.mxu0 0.0
  %2168 = vmatprep.subr.mxu0 0.0
  %2169 = vmatpush1.xpose.msra.mxu0 0.0
  %2170 = vmatprep.subr.mxu0 0.0
  %2171 = vmatpush1.xpose.msra.mxu0 0.0
  %2172 = vmatprep.subr.mxu0 0.0
  %2173 = vmatpush1.xpose.msra.mxu0 0.0
  %2174 = vmatprep.subr.mxu0 0.0
  %2175 = vmatpush1.xpose.msra.mxu0 0.0
  %2176 = vmatprep.subr.mxu0 0.0
  %2177 = vmatpush1.xpose.msra.mxu0 0.0
  %2178 = vmatprep.subr.mxu0 0.0
  %2179 = vmatpush1.xpose.msra.mxu0 0.0
  %2180 = vmatprep.subr.mxu0 0.0
  %2181 = vmatpush1.xpose.msra.mxu0 0.0
  %2182 = vmatprep.subr.mxu0 0.0
  %2183 = vmatpush1.xpose.msra.mxu0 0.0
  %2184 = vmatprep.subr.mxu0 0.0
  %2185 = vmatpush1.xpose.msra.mxu0 0.0
  %2186 = vmatprep.subr.mxu0 0.0
  %2187 = vmatpush1.xpose.msra.mxu0 0.0
  %2188 = vmatprep.subr.mxu0 0.0
  %2189 = vmatpush1.xpose.msra.mxu0 0.0
  %2190 = vmatprep.subr.mxu0 0.0
  %2191 = vmatpush1.xpose.msra.mxu0 0.0
  %2192 = vmatprep.subr.mxu0 0.0
  %2193 = vmatpush1.xpose.msra.mxu0 0.0
  %2194 = vmatprep.subr.mxu0 0.0
  %2195 = vmatpush1.xpose.msra.mxu0 0.0
  %2196 = vmatprep.subr.mxu0 0.0
  %2197 = vmatpush1.xpose.msra.mxu0 0.0
  %2198 = vmatprep.subr.mxu0 0.0
  %2199 = vmatpush1.xpose.msra.mxu0 0.0
  %2200 = vmatprep.subr.mxu0 0.0
  %2201 = vmatpush1.xpose.msra.mxu0 0.0
  %2202 = vmatprep.subr.mxu0 0.0
  %2203 = vmatpush1.xpose.msra.mxu0 0.0
  %2204 = vmatprep.subr.mxu0 0.0
  %2205 = vmatpush1.xpose.msra.mxu0 0.0
  %2206 = vmatprep.subr.mxu0 0.0
  %2207 = vmatpush1.xpose.msra.mxu0 0.0
  %2208 = vmatprep.subr.mxu0 0.0
  %2209 = vmatpush1.xpose.msra.mxu0 0.0
  %2210 = vmatprep.subr.mxu0 0.0
  %2211 = vmatpush1.xpose.msra.mxu0 0.0
  %2212 = vmatprep.subr.mxu0 0.0
  %2213 = vmatpush1.xpose.msra.mxu0 0.0
  %2214 = vmatprep.subr.mxu0 0.0
  %2215 = vmatpush1.xpose.msra.mxu0 0.0
  %2216 = vmatprep.subr.mxu0 0.0
  %2217 = vmatpush1.xpose.msra.mxu0 0.0
  %2218 = vmatprep.mubr.f32.mxu0 0.0
  %2219 = vmatmul.mubr.f32.gmra.mrb[0].mxu0 %v2150
  %v2220 = vpop.f32.mrb[0].mxu0
  %v2221 = vadd.f32 0.0, %v2220
  %v2222 = vpop.f32.mrb[0].mxu0
  %2223 = vdwg.mxu0
  %v2224 = vsel %vm164, %v2051, 0
  %v2226 = vsel %vm164, %v2065, 0
  %2228 = vmatprep.subr.mxu0 0.0
  %2229 = vmatpush1.xpose.msra.mxu0 %v2226
  %2230 = vmatprep.subr.mxu0 0.0
  %2231 = vmatpush1.xpose.msra.mxu0 0.0
  %2232 = vmatprep.subr.mxu0 0.0
  %2233 = vmatpush1.xpose.msra.mxu0 0.0
  %2234 = vmatprep.subr.mxu0 0.0
  %2235 = vmatpush1.xpose.msra.mxu0 0.0
  %2236 = vmatprep.subr.mxu0 0.0
  %2237 = vmatpush1.xpose.msra.mxu0 0.0
  %2238 = vmatprep.subr.mxu0 0.0
  %2239 = vmatpush1.xpose.msra.mxu0 0.0
  %2240 = vmatprep.subr.mxu0 0.0
  %2241 = vmatpush1.xpose.msra.mxu0 0.0
  %2242 = vmatprep.subr.mxu0 0.0
  %2243 = vmatpush1.xpose.msra.mxu0 0.0
  %2244 = vmatprep.subr.mxu0 0.0
  %2245 = vmatpush1.xpose.msra.mxu0 0.0
  %2246 = vmatprep.subr.mxu0 0.0
  %2247 = vmatpush1.xpose.msra.mxu0 0.0
  %2248 = vmatprep.subr.mxu0 0.0
  %2249 = vmatpush1.xpose.msra.mxu0 0.0
  %2250 = vmatprep.subr.mxu0 0.0
  %2251 = vmatpush1.xpose.msra.mxu0 0.0
  %2252 = vmatprep.subr.mxu0 0.0
  %2253 = vmatpush1.xpose.msra.mxu0 0.0
  %2254 = vmatprep.subr.mxu0 0.0
  %2255 = vmatpush1.xpose.msra.mxu0 0.0
  %2256 = vmatprep.subr.mxu0 0.0
  %2257 = vmatpush1.xpose.msra.mxu0 0.0
  %2258 = vmatprep.subr.mxu0 0.0
  %2259 = vmatpush1.xpose.msra.mxu0 0.0
  %2260 = vmatprep.subr.mxu0 0.0
  %2261 = vmatpush1.xpose.msra.mxu0 0.0
  %2262 = vmatprep.subr.mxu0 0.0
  %2263 = vmatpush1.xpose.msra.mxu0 0.0
  %2264 = vmatprep.subr.mxu0 0.0
  %2265 = vmatpush1.xpose.msra.mxu0 0.0
  %2266 = vmatprep.subr.mxu0 0.0
  %2267 = vmatpush1.xpose.msra.mxu0 0.0
  %2268 = vmatprep.subr.mxu0 0.0
  %2269 = vmatpush1.xpose.msra.mxu0 0.0
  %2270 = vmatprep.subr.mxu0 0.0
  %2271 = vmatpush1.xpose.msra.mxu0 0.0
  %2272 = vmatprep.subr.mxu0 0.0
  %2273 = vmatpush1.xpose.msra.mxu0 0.0
  %2274 = vmatprep.subr.mxu0 0.0
  %2275 = vmatpush1.xpose.msra.mxu0 0.0
  %2276 = vmatprep.subr.mxu0 0.0
  %2277 = vmatpush1.xpose.msra.mxu0 0.0
  %2278 = vmatprep.subr.mxu0 0.0
  %2279 = vmatpush1.xpose.msra.mxu0 0.0
  %2280 = vmatprep.subr.mxu0 0.0
  %2281 = vmatpush1.xpose.msra.mxu0 0.0
  %2282 = vmatprep.subr.mxu0 0.0
  %2283 = vmatpush1.xpose.msra.mxu0 0.0
  %2284 = vmatprep.subr.mxu0 0.0
  %2285 = vmatpush1.xpose.msra.mxu0 0.0
  %2286 = vmatprep.subr.mxu0 0.0
  %2287 = vmatpush1.xpose.msra.mxu0 0.0
  %2288 = vmatprep.subr.mxu0 0.0
  %2289 = vmatpush1.xpose.msra.mxu0 0.0
  %2290 = vmatprep.subr.mxu0 0.0
  %2291 = vmatpush1.xpose.msra.mxu0 0.0
  %2292 = vmatprep.mubr.f32.mxu0 0.0
  %2293 = vmatmul.mubr.f32.gmra.mrb[0].mxu0 %v2224
  %v2294 = vpop.f32.mrb[0].mxu0
  %v2295 = vadd.f32 0.0, %v2294
  %v2296 = vpop.f32.mrb[0].mxu0
  %2297 = vdwg.mxu0
  %v2298 = vsel %vm164, %v2053, 0
  %v2300 = vsel %vm164, %v2067, 0
  %2302 = vmatprep.subr.mxu0 0.0
  %2303 = vmatpush1.xpose.msra.mxu0 %v2300
  %2304 = vmatprep.subr.mxu0 0.0
  %2305 = vmatpush1.xpose.msra.mxu0 0.0
  %2306 = vmatprep.subr.mxu0 0.0
  %2307 = vmatpush1.xpose.msra.mxu0 0.0
  %2308 = vmatprep.subr.mxu0 0.0
  %2309 = vmatpush1.xpose.msra.mxu0 0.0
  %2310 = vmatprep.subr.mxu0 0.0
  %2311 = vmatpush1.xpose.msra.mxu0 0.0
  %2312 = vmatprep.subr.mxu0 0.0
  %2313 = vmatpush1.xpose.msra.mxu0 0.0
  %2314 = vmatprep.subr.mxu0 0.0
  %2315 = vmatpush1.xpose.msra.mxu0 0.0
  %2316 = vmatprep.subr.mxu0 0.0
  %2317 = vmatpush1.xpose.msra.mxu0 0.0
  %2318 = vmatprep.subr.mxu0 0.0
  %2319 = vmatpush1.xpose.msra.mxu0 0.0
  %2320 = vmatprep.subr.mxu0 0.0
  %2321 = vmatpush1.xpose.msra.mxu0 0.0
  %2322 = vmatprep.subr.mxu0 0.0
  %2323 = vmatpush1.xpose.msra.mxu0 0.0
  %2324 = vmatprep.subr.mxu0 0.0
  %2325 = vmatpush1.xpose.msra.mxu0 0.0
  %2326 = vmatprep.subr.mxu0 0.0
  %2327 = vmatpush1.xpose.msra.mxu0 0.0
  %2328 = vmatprep.subr.mxu0 0.0
  %2329 = vmatpush1.xpose.msra.mxu0 0.0
  %2330 = vmatprep.subr.mxu0 0.0
  %2331 = vmatpush1.xpose.msra.mxu0 0.0
  %2332 = vmatprep.subr.mxu0 0.0
  %2333 = vmatpush1.xpose.msra.mxu0 0.0
  %2334 = vmatprep.subr.mxu0 0.0
  %2335 = vmatpush1.xpose.msra.mxu0 0.0
  %2336 = vmatprep.subr.mxu0 0.0
  %2337 = vmatpush1.xpose.msra.mxu0 0.0
  %2338 = vmatprep.subr.mxu0 0.0
  %2339 = vmatpush1.xpose.msra.mxu0 0.0
  %2340 = vmatprep.subr.mxu0 0.0
  %2341 = vmatpush1.xpose.msra.mxu0 0.0
  %2342 = vmatprep.subr.mxu0 0.0
  %2343 = vmatpush1.xpose.msra.mxu0 0.0
  %2344 = vmatprep.subr.mxu0 0.0
  %2345 = vmatpush1.xpose.msra.mxu0 0.0
  %2346 = vmatprep.subr.mxu0 0.0
  %2347 = vmatpush1.xpose.msra.mxu0 0.0
  %2348 = vmatprep.subr.mxu0 0.0
  %2349 = vmatpush1.xpose.msra.mxu0 0.0
  %2350 = vmatprep.subr.mxu0 0.0
  %2351 = vmatpush1.xpose.msra.mxu0 0.0
  %2352 = vmatprep.subr.mxu0 0.0
  %2353 = vmatpush1.xpose.msra.mxu0 0.0
  %2354 = vmatprep.subr.mxu0 0.0
  %2355 = vmatpush1.xpose.msra.mxu0 0.0
  %2356 = vmatprep.subr.mxu0 0.0
  %2357 = vmatpush1.xpose.msra.mxu0 0.0
  %2358 = vmatprep.subr.mxu0 0.0
  %2359 = vmatpush1.xpose.msra.mxu0 0.0
  %2360 = vmatprep.subr.mxu0 0.0
  %2361 = vmatpush1.xpose.msra.mxu0 0.0
  %2362 = vmatprep.subr.mxu0 0.0
  %2363 = vmatpush1.xpose.msra.mxu0 0.0
  %2364 = vmatprep.subr.mxu0 0.0
  %2365 = vmatpush1.xpose.msra.mxu0 0.0
  %2366 = vmatprep.mubr.f32.mxu0 0.0
  %2367 = vmatmul.mubr.f32.gmra.mrb[0].mxu0 %v2298
  %v2368 = vpop.f32.mrb[0].mxu0
  %v2369 = vadd.f32 0.0, %v2368
  %v2370 = vpop.f32.mrb[0].mxu0
  %2371 = vdwg.mxu0
  %v2372 = vsel %vm164, %v2055, 0
  %v2374 = vsel %vm164, %v2069, 0
  %2376 = vmatprep.subr.mxu0 0.0
  %2377 = vmatpush1.xpose.msra.mxu0 %v2374
  %2378 = vmatprep.subr.mxu0 0.0
  %2379 = vmatpush1.xpose.msra.mxu0 0.0
  %2380 = vmatprep.subr.mxu0 0.0
  %2381 = vmatpush1.xpose.msra.mxu0 0.0
  %2382 = vmatprep.subr.mxu0 0.0
  %2383 = vmatpush1.xpose.msra.mxu0 0.0
  %2384 = vmatprep.subr.mxu0 0.0
  %2385 = vmatpush1.xpose.msra.mxu0 0.0
  %2386 = vmatprep.subr.mxu0 0.0
  %2387 = vmatpush1.xpose.msra.mxu0 0.0
  %2388 = vmatprep.subr.mxu0 0.0
  %2389 = vmatpush1.xpose.msra.mxu0 0.0
  %2390 = vmatprep.subr.mxu0 0.0
  %2391 = vmatpush1.xpose.msra.mxu0 0.0
  %2392 = vmatprep.subr.mxu0 0.0
  %2393 = vmatpush1.xpose.msra.mxu0 0.0
  %2394 = vmatprep.subr.mxu0 0.0
  %2395 = vmatpush1.xpose.msra.mxu0 0.0
  %2396 = vmatprep.subr.mxu0 0.0
  %2397 = vmatpush1.xpose.msra.mxu0 0.0
  %2398 = vmatprep.subr.mxu0 0.0
  %2399 = vmatpush1.xpose.msra.mxu0 0.0
  %2400 = vmatprep.subr.mxu0 0.0
  %2401 = vmatpush1.xpose.msra.mxu0 0.0
  %2402 = vmatprep.subr.mxu0 0.0
  %2403 = vmatpush1.xpose.msra.mxu0 0.0
  %2404 = vmatprep.subr.mxu0 0.0
  %2405 = vmatpush1.xpose.msra.mxu0 0.0
  %2406 = vmatprep.subr.mxu0 0.0
  %2407 = vmatpush1.xpose.msra.mxu0 0.0
  %2408 = vmatprep.subr.mxu0 0.0
  %2409 = vmatpush1.xpose.msra.mxu0 0.0
  %2410 = vmatprep.subr.mxu0 0.0
  %2411 = vmatpush1.xpose.msra.mxu0 0.0
  %2412 = vmatprep.subr.mxu0 0.0
  %2413 = vmatpush1.xpose.msra.mxu0 0.0
  %2414 = vmatprep.subr.mxu0 0.0
  %2415 = vmatpush1.xpose.msra.mxu0 0.0
  %2416 = vmatprep.subr.mxu0 0.0
  %2417 = vmatpush1.xpose.msra.mxu0 0.0
  %2418 = vmatprep.subr.mxu0 0.0
  %2419 = vmatpush1.xpose.msra.mxu0 0.0
  %2420 = vmatprep.subr.mxu0 0.0
  %2421 = vmatpush1.xpose.msra.mxu0 0.0
  %2422 = vmatprep.subr.mxu0 0.0
  %2423 = vmatpush1.xpose.msra.mxu0 0.0
  %2424 = vmatprep.subr.mxu0 0.0
  %2425 = vmatpush1.xpose.msra.mxu0 0.0
  %2426 = vmatprep.subr.mxu0 0.0
  %2427 = vmatpush1.xpose.msra.mxu0 0.0
  %2428 = vmatprep.subr.mxu0 0.0
  %2429 = vmatpush1.xpose.msra.mxu0 0.0
  %2430 = vmatprep.subr.mxu0 0.0
  %2431 = vmatpush1.xpose.msra.mxu0 0.0
  %2432 = vmatprep.subr.mxu0 0.0
  %2433 = vmatpush1.xpose.msra.mxu0 0.0
  %2434 = vmatprep.subr.mxu0 0.0
  %2435 = vmatpush1.xpose.msra.mxu0 0.0
  %2436 = vmatprep.subr.mxu0 0.0
  %2437 = vmatpush1.xpose.msra.mxu0 0.0
  %2438 = vmatprep.subr.mxu0 0.0
  %2439 = vmatpush1.xpose.msra.mxu0 0.0
  %2440 = vmatprep.mubr.f32.mxu0 0.0
  %2441 = vmatmul.mubr.f32.gmra.mrb[0].mxu0 %v2372
  %v2442 = vpop.f32.mrb[0].mxu0
  %v2443 = vadd.f32 0.0, %v2442
  %v2444 = vpop.f32.mrb[0].mxu0
  %2445 = vdwg.mxu0
  %v2446 = vsel %vm164, %v2057, 0
  %v2448 = vsel %vm164, %v2071, 0
  %2450 = vmatprep.subr.mxu0 0.0
  %2451 = vmatpush1.xpose.msra.mxu0 %v2448
  %2452 = vmatprep.subr.mxu0 0.0
  %2453 = vmatpush1.xpose.msra.mxu0 0.0
  %2454 = vmatprep.subr.mxu0 0.0
  %2455 = vmatpush1.xpose.msra.mxu0 0.0
  %2456 = vmatprep.subr.mxu0 0.0
  %2457 = vmatpush1.xpose.msra.mxu0 0.0
  %2458 = vmatprep.subr.mxu0 0.0
  %2459 = vmatpush1.xpose.msra.mxu0 0.0
  %2460 = vmatprep.subr.mxu0 0.0
  %2461 = vmatpush1.xpose.msra.mxu0 0.0
  %2462 = vmatprep.subr.mxu0 0.0
  %2463 = vmatpush1.xpose.msra.mxu0 0.0
  %2464 = vmatprep.subr.mxu0 0.0
  %2465 = vmatpush1.xpose.msra.mxu0 0.0
  %2466 = vmatprep.subr.mxu0 0.0
  %2467 = vmatpush1.xpose.msra.mxu0 0.0
  %2468 = vmatprep.subr.mxu0 0.0
  %2469 = vmatpush1.xpose.msra.mxu0 0.0
  %2470 = vmatprep.subr.mxu0 0.0
  %2471 = vmatpush1.xpose.msra.mxu0 0.0
  %2472 = vmatprep.subr.mxu0 0.0
  %2473 = vmatpush1.xpose.msra.mxu0 0.0
  %2474 = vmatprep.subr.mxu0 0.0
  %2475 = vmatpush1.xpose.msra.mxu0 0.0
  %2476 = vmatprep.subr.mxu0 0.0
  %2477 = vmatpush1.xpose.msra.mxu0 0.0
  %2478 = vmatprep.subr.mxu0 0.0
  %2479 = vmatpush1.xpose.msra.mxu0 0.0
  %2480 = vmatprep.subr.mxu0 0.0
  %2481 = vmatpush1.xpose.msra.mxu0 0.0
  %2482 = vmatprep.subr.mxu0 0.0
  %2483 = vmatpush1.xpose.msra.mxu0 0.0
  %2484 = vmatprep.subr.mxu0 0.0
  %2485 = vmatpush1.xpose.msra.mxu0 0.0
  %2486 = vmatprep.subr.mxu0 0.0
  %2487 = vmatpush1.xpose.msra.mxu0 0.0
  %2488 = vmatprep.subr.mxu0 0.0
  %2489 = vmatpush1.xpose.msra.mxu0 0.0
  %2490 = vmatprep.subr.mxu0 0.0
  %2491 = vmatpush1.xpose.msra.mxu0 0.0
  %2492 = vmatprep.subr.mxu0 0.0
  %2493 = vmatpush1.xpose.msra.mxu0 0.0
  %2494 = vmatprep.subr.mxu0 0.0
  %2495 = vmatpush1.xpose.msra.mxu0 0.0
  %2496 = vmatprep.subr.mxu0 0.0
  %2497 = vmatpush1.xpose.msra.mxu0 0.0
  %2498 = vmatprep.subr.mxu0 0.0
  %2499 = vmatpush1.xpose.msra.mxu0 0.0
  %2500 = vmatprep.subr.mxu0 0.0
  %2501 = vmatpush1.xpose.msra.mxu0 0.0
  %2502 = vmatprep.subr.mxu0 0.0
  %2503 = vmatpush1.xpose.msra.mxu0 0.0
  %2504 = vmatprep.subr.mxu0 0.0
  %2505 = vmatpush1.xpose.msra.mxu0 0.0
  %2506 = vmatprep.subr.mxu0 0.0
  %2507 = vmatpush1.xpose.msra.mxu0 0.0
  %2508 = vmatprep.subr.mxu0 0.0
  %2509 = vmatpush1.xpose.msra.mxu0 0.0
  %2510 = vmatprep.subr.mxu0 0.0
  %2511 = vmatpush1.xpose.msra.mxu0 0.0
  %2512 = vmatprep.subr.mxu0 0.0
  %2513 = vmatpush1.xpose.msra.mxu0 0.0
  %2514 = vmatprep.mubr.f32.mxu0 0.0
  %2515 = vmatmul.mubr.f32.gmra.mrb[0].mxu0 %v2446
  %v2516 = vpop.f32.mrb[0].mxu0
  %v2517 = vadd.f32 0.0, %v2516
  %v2518 = vpop.f32.mrb[0].mxu0
  %2519 = vdwg.mxu0
  %v2520 = vsel %vm164, %v2059, 0
  %v2522 = vsel %vm164, %v2073, 0
  %2524 = vmatprep.subr.mxu0 0.0
  %2525 = vmatpush1.xpose.msra.mxu0 %v2522
  %2526 = vmatprep.subr.mxu0 0.0
  %2527 = vmatpush1.xpose.msra.mxu0 0.0
  %2528 = vmatprep.subr.mxu0 0.0
  %2529 = vmatpush1.xpose.msra.mxu0 0.0
  %2530 = vmatprep.subr.mxu0 0.0
  %2531 = vmatpush1.xpose.msra.mxu0 0.0
  %2532 = vmatprep.subr.mxu0 0.0
  %2533 = vmatpush1.xpose.msra.mxu0 0.0
  %2534 = vmatprep.subr.mxu0 0.0
  %2535 = vmatpush1.xpose.msra.mxu0 0.0
  %2536 = vmatprep.subr.mxu0 0.0
  %2537 = vmatpush1.xpose.msra.mxu0 0.0
  %2538 = vmatprep.subr.mxu0 0.0
  %2539 = vmatpush1.xpose.msra.mxu0 0.0
  %2540 = vmatprep.subr.mxu0 0.0
  %2541 = vmatpush1.xpose.msra.mxu0 0.0
  %2542 = vmatprep.subr.mxu0 0.0
  %2543 = vmatpush1.xpose.msra.mxu0 0.0
  %2544 = vmatprep.subr.mxu0 0.0
  %2545 = vmatpush1.xpose.msra.mxu0 0.0
  %2546 = vmatprep.subr.mxu0 0.0
  %2547 = vmatpush1.xpose.msra.mxu0 0.0
  %2548 = vmatprep.subr.mxu0 0.0
  %2549 = vmatpush1.xpose.msra.mxu0 0.0
  %2550 = vmatprep.subr.mxu0 0.0
  %2551 = vmatpush1.xpose.msra.mxu0 0.0
  %2552 = vmatprep.subr.mxu0 0.0
  %2553 = vmatpush1.xpose.msra.mxu0 0.0
  %2554 = vmatprep.subr.mxu0 0.0
  %2555 = vmatpush1.xpose.msra.mxu0 0.0
  %2556 = vmatprep.subr.mxu0 0.0
  %2557 = vmatpush1.xpose.msra.mxu0 0.0
  %2558 = vmatprep.subr.mxu0 0.0
  %2559 = vmatpush1.xpose.msra.mxu0 0.0
  %2560 = vmatprep.subr.mxu0 0.0
  %2561 = vmatpush1.xpose.msra.mxu0 0.0
  %2562 = vmatprep.subr.mxu0 0.0
  %2563 = vmatpush1.xpose.msra.mxu0 0.0
  %2564 = vmatprep.subr.mxu0 0.0
  %2565 = vmatpush1.xpose.msra.mxu0 0.0
  %2566 = vmatprep.subr.mxu0 0.0
  %2567 = vmatpush1.xpose.msra.mxu0 0.0
  %2568 = vmatprep.subr.mxu0 0.0
  %2569 = vmatpush1.xpose.msra.mxu0 0.0
  %2570 = vmatprep.subr.mxu0 0.0
  %2571 = vmatpush1.xpose.msra.mxu0 0.0
  %2572 = vmatprep.subr.mxu0 0.0
  %2573 = vmatpush1.xpose.msra.mxu0 0.0
  %2574 = vmatprep.subr.mxu0 0.0
  %2575 = vmatpush1.xpose.msra.mxu0 0.0
  %2576 = vmatprep.subr.mxu0 0.0
  %2577 = vmatpush1.xpose.msra.mxu0 0.0
  %2578 = vmatprep.subr.mxu0 0.0
  %2579 = vmatpush1.xpose.msra.mxu0 0.0
  %2580 = vmatprep.subr.mxu0 0.0
  %2581 = vmatpush1.xpose.msra.mxu0 0.0
  %2582 = vmatprep.subr.mxu0 0.0
  %2583 = vmatpush1.xpose.msra.mxu0 0.0
  %2584 = vmatprep.subr.mxu0 0.0
  %2585 = vmatpush1.xpose.msra.mxu0 0.0
  %2586 = vmatprep.subr.mxu0 0.0
  %2587 = vmatpush1.xpose.msra.mxu0 0.0
  %2588 = vmatprep.mubr.f32.mxu0 0.0
  %2589 = vmatmul.mubr.f32.gmra.mrb[0].mxu0 %v2520
  %v2590 = vpop.f32.mrb[0].mxu0
  %v2591 = vadd.f32 0.0, %v2590
  %v2592 = vpop.f32.mrb[0].mxu0
  %2593 = vdwg.mxu0
  %v2594 = vsel %vm164, %v2061, 0
  %v2596 = vsel %vm164, %v2075, 0
  %2598 = vmatprep.subr.mxu0 0.0
  %2599 = vmatpush1.xpose.msra.mxu0 %v2596
  %2600 = vmatprep.subr.mxu0 0.0
  %2601 = vmatpush1.xpose.msra.mxu0 0.0
  %2602 = vmatprep.subr.mxu0 0.0
  %2603 = vmatpush1.xpose.msra.mxu0 0.0
  %2604 = vmatprep.subr.mxu0 0.0
  %2605 = vmatpush1.xpose.msra.mxu0 0.0
  %2606 = vmatprep.subr.mxu0 0.0
  %2607 = vmatpush1.xpose.msra.mxu0 0.0
  %2608 = vmatprep.subr.mxu0 0.0
  %2609 = vmatpush1.xpose.msra.mxu0 0.0
  %2610 = vmatprep.subr.mxu0 0.0
  %2611 = vmatpush1.xpose.msra.mxu0 0.0
  %2612 = vmatprep.subr.mxu0 0.0
  %2613 = vmatpush1.xpose.msra.mxu0 0.0
  %2614 = vmatprep.subr.mxu0 0.0
  %2615 = vmatpush1.xpose.msra.mxu0 0.0
  %2616 = vmatprep.subr.mxu0 0.0
  %2617 = vmatpush1.xpose.msra.mxu0 0.0
  %2618 = vmatprep.subr.mxu0 0.0
  %2619 = vmatpush1.xpose.msra.mxu0 0.0
  %2620 = vmatprep.subr.mxu0 0.0
  %2621 = vmatpush1.xpose.msra.mxu0 0.0
  %2622 = vmatprep.subr.mxu0 0.0
  %2623 = vmatpush1.xpose.msra.mxu0 0.0
  %2624 = vmatprep.subr.mxu0 0.0
  %2625 = vmatpush1.xpose.msra.mxu0 0.0
  %2626 = vmatprep.subr.mxu0 0.0
  %2627 = vmatpush1.xpose.msra.mxu0 0.0
  %2628 = vmatprep.subr.mxu0 0.0
  %2629 = vmatpush1.xpose.msra.mxu0 0.0
  %2630 = vmatprep.subr.mxu0 0.0
  %2631 = vmatpush1.xpose.msra.mxu0 0.0
  %2632 = vmatprep.subr.mxu0 0.0
  %2633 = vmatpush1.xpose.msra.mxu0 0.0
  %2634 = vmatprep.subr.mxu0 0.0
  %2635 = vmatpush1.xpose.msra.mxu0 0.0
  %2636 = vmatprep.subr.mxu0 0.0
  %2637 = vmatpush1.xpose.msra.mxu0 0.0
  %2638 = vmatprep.subr.mxu0 0.0
  %2639 = vmatpush1.xpose.msra.mxu0 0.0
  %2640 = vmatprep.subr.mxu0 0.0
  %2641 = vmatpush1.xpose.msra.mxu0 0.0
  %2642 = vmatprep.subr.mxu0 0.0
  %2643 = vmatpush1.xpose.msra.mxu0 0.0
  %2644 = vmatprep.subr.mxu0 0.0
  %2645 = vmatpush1.xpose.msra.mxu0 0.0
  %2646 = vmatprep.subr.mxu0 0.0
  %2647 = vmatpush1.xpose.msra.mxu0 0.0
  %2648 = vmatprep.subr.mxu0 0.0
  %2649 = vmatpush1.xpose.msra.mxu0 0.0
  %2650 = vmatprep.subr.mxu0 0.0
  %2651 = vmatpush1.xpose.msra.mxu0 0.0
  %2652 = vmatprep.subr.mxu0 0.0
  %2653 = vmatpush1.xpose.msra.mxu0 0.0
  %2654 = vmatprep.subr.mxu0 0.0
  %2655 = vmatpush1.xpose.msra.mxu0 0.0
  %2656 = vmatprep.subr.mxu0 0.0
  %2657 = vmatpush1.xpose.msra.mxu0 0.0
  %2658 = vmatprep.subr.mxu0 0.0
  %2659 = vmatpush1.xpose.msra.mxu0 0.0
  %2660 = vmatprep.subr.mxu0 0.0
  %2661 = vmatpush1.xpose.msra.mxu0 0.0
  %2662 = vmatprep.mubr.f32.mxu0 0.0
  %2663 = vmatmul.mubr.f32.gmra.mrb[0].mxu0 %v2594
  %v2664 = vpop.f32.mrb[0].mxu0
  %v2665 = vadd.f32 0.0, %v2664
  %v2666 = vpop.f32.mrb[0].mxu0
  %2667 = vdwg.mxu0
  %v2668 = vsel %vm164, %v2147, -inf
  %2669 = vmax.xlane.f32.xlu0 %v2668
  %v2670 = vpop.xlane.xlu0 %2669
  %v2671 = vsel %vm164, %v2221, -inf
  %2672 = vmax.xlane.f32.xlu0 %v2671
  %v2673 = vpop.xlane.xlu0 %2672
  %v2674 = vsel %vm164, %v2295, -inf
  %2675 = vmax.xlane.f32.xlu0 %v2674
  %v2676 = vpop.xlane.xlu0 %2675
  %v2677 = vsel %vm164, %v2369, -inf
  %2678 = vmax.xlane.f32.xlu0 %v2677
  %v2679 = vpop.xlane.xlu0 %2678
  %v2680 = vsel %vm164, %v2443, -inf
  %2681 = vmax.xlane.f32.xlu0 %v2680
  %v2682 = vpop.xlane.xlu0 %2681
  %v2683 = vsel %vm164, %v2517, -inf
  %2684 = vmax.xlane.f32.xlu0 %v2683
  %v2685 = vpop.xlane.xlu0 %2684
  %v2686 = vsel %vm164, %v2591, -inf
  %2687 = vmax.xlane.f32.xlu0 %v2686
  %v2688 = vpop.xlane.xlu0 %2687
  %v2689 = vsel %vm164, %v2665, -inf
  %2690 = vmax.xlane.f32.xlu0 %v2689
  %v2691 = vpop.xlane.xlu0 %2690
  %v2692 = vsub.f32 %v2147, %v2670
  %v2693 = vsub.f32 %v2221, %v2673
  %v2694 = vsub.f32 %v2295, %v2676
  %v2695 = vsub.f32 %v2369, %v2679
  %v2696 = vsub.f32 %v2443, %v2682
  %v2697 = vsub.f32 %v2517, %v2685
  %v2698 = vsub.f32 %v2591, %v2688
  %v2699 = vsub.f32 %v2665, %v2691
  %v2700 = vmul.f32 %v2692, 1.442695
  %v2701 = vpow.pop %v2700
  %v2702 = vmul.f32 %v2693, 1.442695
  %v2703 = vpow.pop %v2702
  %v2704 = vmul.f32 %v2694, 1.442695
  %v2705 = vpow.pop %v2704
  %v2706 = vmul.f32 %v2695, 1.442695
  %v2707 = vpow.pop %v2706
  %v2708 = vmul.f32 %v2696, 1.442695
  %v2709 = vpow.pop %v2708
  %v2710 = vmul.f32 %v2697, 1.442695
  %v2711 = vpow.pop %v2710
  %v2712 = vmul.f32 %v2698, 1.442695
  %v2713 = vpow.pop %v2712
  %v2714 = vmul.f32 %v2699, 1.442695
  %v2715 = vpow.pop %v2714
  %v2716 = vsel %vm164, %v2701, 0.0
  %2717 = vadd.xlane.f32.xlu0 %v2716
  %v2718 = vpop.xlane.xlu0 %2717
  %v2719 = vsel %vm164, %v2703, 0.0
  %2720 = vadd.xlane.f32.xlu0 %v2719
  %v2721 = vpop.xlane.xlu0 %2720
  %v2722 = vsel %vm164, %v2705, 0.0
  %2723 = vadd.xlane.f32.xlu0 %v2722
  %v2724 = vpop.xlane.xlu0 %2723
  %v2725 = vsel %vm164, %v2707, 0.0
  %2726 = vadd.xlane.f32.xlu0 %v2725
  %v2727 = vpop.xlane.xlu0 %2726
  %v2728 = vsel %vm164, %v2709, 0.0
  %2729 = vadd.xlane.f32.xlu0 %v2728
  %v2730 = vpop.xlane.xlu0 %2729
  %v2731 = vsel %vm164, %v2711, 0.0
  %2732 = vadd.xlane.f32.xlu0 %v2731
  %v2733 = vpop.xlane.xlu0 %2732
  %v2734 = vsel %vm164, %v2713, 0.0
  %2735 = vadd.xlane.f32.xlu0 %v2734
  %v2736 = vpop.xlane.xlu0 %2735
  %v2737 = vsel %vm164, %v2715, 0.0
  %2738 = vadd.xlane.f32.xlu0 %v2737
  %v2739 = vpop.xlane.xlu0 %2738
  %v2740 = vrcp.pop %v2718
  %v2741 = vmul.f32 %v2701, %v2740
  %v2742 = vrcp.pop %v2721
  %v2743 = vmul.f32 %v2703, %v2742
  %v2744 = vrcp.pop %v2724
  %v2745 = vmul.f32 %v2705, %v2744
  %v2746 = vrcp.pop %v2727
  %v2747 = vmul.f32 %v2707, %v2746
  %v2748 = vrcp.pop %v2730
  %v2749 = vmul.f32 %v2709, %v2748
  %v2750 = vrcp.pop %v2733
  %v2751 = vmul.f32 %v2711, %v2750
  %v2752 = vrcp.pop %v2736
  %v2753 = vmul.f32 %v2713, %v2752
  %v2754 = vrcp.pop %v2739
  %v2755 = vmul.f32 %v2715, %v2754
  %2756 = vrot.lane.b32.xlu0 %v2038, 96
  %v2757 = vpop.permute.xlu0 %2756
  %v2760 = vsel %vm164, %v2741, 0
  %2762 = vmatprep.subr.mxu0 0.0
  %2763 = vmatpush1.msra.mxu0 %v2757
  %2764 = vmatprep.subr.mxu0 0.0
  %2765 = vmatpush1.msra.mxu0 0.0
  %2766 = vmatprep.subr.mxu0 0.0
  %2767 = vmatpush1.msra.mxu0 0.0
  %2768 = vmatprep.subr.mxu0 0.0
  %2769 = vmatpush1.msra.mxu0 0.0
  %2770 = vmatprep.subr.mxu0 0.0
  %2771 = vmatpush1.msra.mxu0 0.0
  %2772 = vmatprep.subr.mxu0 0.0
  %2773 = vmatpush1.msra.mxu0 0.0
  %2774 = vmatprep.subr.mxu0 0.0
  %2775 = vmatpush1.msra.mxu0 0.0
  %2776 = vmatprep.subr.mxu0 0.0
  %2777 = vmatpush1.msra.mxu0 0.0
  %2778 = vmatprep.subr.mxu0 0.0
  %2779 = vmatpush1.msra.mxu0 0.0
  %2780 = vmatprep.subr.mxu0 0.0
  %2781 = vmatpush1.msra.mxu0 0.0
  %2782 = vmatprep.subr.mxu0 0.0
  %2783 = vmatpush1.msra.mxu0 0.0
  %2784 = vmatprep.subr.mxu0 0.0
  %2785 = vmatpush1.msra.mxu0 0.0
  %2786 = vmatprep.subr.mxu0 0.0
  %2787 = vmatpush1.msra.mxu0 0.0
  %2788 = vmatprep.subr.mxu0 0.0
  %2789 = vmatpush1.msra.mxu0 0.0
  %2790 = vmatprep.subr.mxu0 0.0
  %2791 = vmatpush1.msra.mxu0 0.0
  %2792 = vmatprep.subr.mxu0 0.0
  %2793 = vmatpush1.msra.mxu0 0.0
  %2794 = vmatprep.subr.mxu0 0.0
  %2795 = vmatpush1.msra.mxu0 0.0
  %2796 = vmatprep.subr.mxu0 0.0
  %2797 = vmatpush1.msra.mxu0 0.0
  %2798 = vmatprep.subr.mxu0 0.0
  %2799 = vmatpush1.msra.mxu0 0.0
  %2800 = vmatprep.subr.mxu0 0.0
  %2801 = vmatpush1.msra.mxu0 0.0
  %2802 = vmatprep.subr.mxu0 0.0
  %2803 = vmatpush1.msra.mxu0 0.0
  %2804 = vmatprep.subr.mxu0 0.0
  %2805 = vmatpush1.msra.mxu0 0.0
  %2806 = vmatprep.subr.mxu0 0.0
  %2807 = vmatpush1.msra.mxu0 0.0
  %2808 = vmatprep.subr.mxu0 0.0
  %2809 = vmatpush1.msra.mxu0 0.0
  %2810 = vmatprep.subr.mxu0 0.0
  %2811 = vmatpush1.msra.mxu0 0.0
  %2812 = vmatprep.subr.mxu0 0.0
  %2813 = vmatpush1.msra.mxu0 0.0
  %2814 = vmatprep.subr.mxu0 0.0
  %2815 = vmatpush1.msra.mxu0 0.0
  %2816 = vmatprep.subr.mxu0 0.0
  %2817 = vmatpush1.msra.mxu0 0.0
  %2818 = vmatprep.subr.mxu0 0.0
  %2819 = vmatpush1.msra.mxu0 0.0
  %2820 = vmatprep.subr.mxu0 0.0
  %2821 = vmatpush1.msra.mxu0 0.0
  %2822 = vmatprep.subr.mxu0 0.0
  %2823 = vmatpush1.msra.mxu0 0.0
  %2824 = vmatprep.subr.mxu0 0.0
  %2825 = vmatpush1.msra.mxu0 0.0
  %2826 = vmatprep.mubr.f32.mxu0 0.0
  %2827 = vmatmul.mubr.f32.gmra.mrb[0].mxu0 %v2760
  %v2828 = vpop.f32.mrb[0].mxu0
  %v2829 = vadd.f32 0.0, %v2828
  %v2830 = vpop.f32.mrb[0].mxu0
  %2831 = vdwg.mxu0
  %2832 = vrot.lane.b32.xlu0 %v2043, 96
  %v2833 = vpop.permute.xlu0 %2832
  %v2836 = vsel %vm164, %v2743, 0
  %2838 = vmatprep.subr.mxu0 0.0
  %2839 = vmatpush1.msra.mxu0 %v2833
  %2840 = vmatprep.subr.mxu0 0.0
  %2841 = vmatpush1.msra.mxu0 0.0
  %2842 = vmatprep.subr.mxu0 0.0
  %2843 = vmatpush1.msra.mxu0 0.0
  %2844 = vmatprep.subr.mxu0 0.0
  %2845 = vmatpush1.msra.mxu0 0.0
  %2846 = vmatprep.subr.mxu0 0.0
  %2847 = vmatpush1.msra.mxu0 0.0
  %2848 = vmatprep.subr.mxu0 0.0
  %2849 = vmatpush1.msra.mxu0 0.0
  %2850 = vmatprep.subr.mxu0 0.0
  %2851 = vmatpush1.msra.mxu0 0.0
  %2852 = vmatprep.subr.mxu0 0.0
  %2853 = vmatpush1.msra.mxu0 0.0
  %2854 = vmatprep.subr.mxu0 0.0
  %2855 = vmatpush1.msra.mxu0 0.0
  %2856 = vmatprep.subr.mxu0 0.0
  %2857 = vmatpush1.msra.mxu0 0.0
  %2858 = vmatprep.subr.mxu0 0.0
  %2859 = vmatpush1.msra.mxu0 0.0
  %2860 = vmatprep.subr.mxu0 0.0
  %2861 = vmatpush1.msra.mxu0 0.0
  %2862 = vmatprep.subr.mxu0 0.0
  %2863 = vmatpush1.msra.mxu0 0.0
  %2864 = vmatprep.subr.mxu0 0.0
  %2865 = vmatpush1.msra.mxu0 0.0
  %2866 = vmatprep.subr.mxu0 0.0
  %2867 = vmatpush1.msra.mxu0 0.0
  %2868 = vmatprep.subr.mxu0 0.0
  %2869 = vmatpush1.msra.mxu0 0.0
  %2870 = vmatprep.subr.mxu0 0.0
  %2871 = vmatpush1.msra.mxu0 0.0
  %2872 = vmatprep.subr.mxu0 0.0
  %2873 = vmatpush1.msra.mxu0 0.0
  %2874 = vmatprep.subr.mxu0 0.0
  %2875 = vmatpush1.msra.mxu0 0.0
  %2876 = vmatprep.subr.mxu0 0.0
  %2877 = vmatpush1.msra.mxu0 0.0
  %2878 = vmatprep.subr.mxu0 0.0
  %2879 = vmatpush1.msra.mxu0 0.0
  %2880 = vmatprep.subr.mxu0 0.0
  %2881 = vmatpush1.msra.mxu0 0.0
  %2882 = vmatprep.subr.mxu0 0.0
  %2883 = vmatpush1.msra.mxu0 0.0
  %2884 = vmatprep.subr.mxu0 0.0
  %2885 = vmatpush1.msra.mxu0 0.0
  %2886 = vmatprep.subr.mxu0 0.0
  %2887 = vmatpush1.msra.mxu0 0.0
  %2888 = vmatprep.subr.mxu0 0.0
  %2889 = vmatpush1.msra.mxu0 0.0
  %2890 = vmatprep.subr.mxu0 0.0
  %2891 = vmatpush1.msra.mxu0 0.0
  %2892 = vmatprep.subr.mxu0 0.0
  %2893 = vmatpush1.msra.mxu0 0.0
  %2894 = vmatprep.subr.mxu0 0.0
  %2895 = vmatpush1.msra.mxu0 0.0
  %2896 = vmatprep.subr.mxu0 0.0
  %2897 = vmatpush1.msra.mxu0 0.0
  %2898 = vmatprep.subr.mxu0 0.0
  %2899 = vmatpush1.msra.mxu0 0.0
  %2900 = vmatprep.subr.mxu0 0.0
  %2901 = vmatpush1.msra.mxu0 0.0
  %2902 = vmatprep.mubr.f32.mxu0 0.0
  %2903 = vmatmul.mubr.f32.gmra.mrb[0].mxu0 %v2836
  %v2904 = vpop.f32.mrb[0].mxu0
  %v2905 = vadd.f32 0.0, %v2904
  %v2906 = vpop.f32.mrb[0].mxu0
  %2907 = vdwg.mxu0
  %2908 = vrot.lane.b32.xlu0 %v2065, 96
  %v2909 = vpop.permute.xlu0 %2908
  %v2912 = vsel %vm164, %v2745, 0
  %2914 = vmatprep.subr.mxu0 0.0
  %2915 = vmatpush1.msra.mxu0 %v2909
  %2916 = vmatprep.subr.mxu0 0.0
  %2917 = vmatpush1.msra.mxu0 0.0
  %2918 = vmatprep.subr.mxu0 0.0
  %2919 = vmatpush1.msra.mxu0 0.0
  %2920 = vmatprep.subr.mxu0 0.0
  %2921 = vmatpush1.msra.mxu0 0.0
  %2922 = vmatprep.subr.mxu0 0.0
  %2923 = vmatpush1.msra.mxu0 0.0
  %2924 = vmatprep.subr.mxu0 0.0
  %2925 = vmatpush1.msra.mxu0 0.0
  %2926 = vmatprep.subr.mxu0 0.0
  %2927 = vmatpush1.msra.mxu0 0.0
  %2928 = vmatprep.subr.mxu0 0.0
  %2929 = vmatpush1.msra.mxu0 0.0
  %2930 = vmatprep.subr.mxu0 0.0
  %2931 = vmatpush1.msra.mxu0 0.0
  %2932 = vmatprep.subr.mxu0 0.0
  %2933 = vmatpush1.msra.mxu0 0.0
  %2934 = vmatprep.subr.mxu0 0.0
  %2935 = vmatpush1.msra.mxu0 0.0
  %2936 = vmatprep.subr.mxu0 0.0
  %2937 = vmatpush1.msra.mxu0 0.0
  %2938 = vmatprep.subr.mxu0 0.0
  %2939 = vmatpush1.msra.mxu0 0.0
  %2940 = vmatprep.subr.mxu0 0.0
  %2941 = vmatpush1.msra.mxu0 0.0
  %2942 = vmatprep.subr.mxu0 0.0
  %2943 = vmatpush1.msra.mxu0 0.0
  %2944 = vmatprep.subr.mxu0 0.0
  %2945 = vmatpush1.msra.mxu0 0.0
  %2946 = vmatprep.subr.mxu0 0.0
  %2947 = vmatpush1.msra.mxu0 0.0
  %2948 = vmatprep.subr.mxu0 0.0
  %2949 = vmatpush1.msra.mxu0 0.0
  %2950 = vmatprep.subr.mxu0 0.0
  %2951 = vmatpush1.msra.mxu0 0.0
  %2952 = vmatprep.subr.mxu0 0.0
  %2953 = vmatpush1.msra.mxu0 0.0
  %2954 = vmatprep.subr.mxu0 0.0
  %2955 = vmatpush1.msra.mxu0 0.0
  %2956 = vmatprep.subr.mxu0 0.0
  %2957 = vmatpush1.msra.mxu0 0.0
  %2958 = vmatprep.subr.mxu0 0.0
  %2959 = vmatpush1.msra.mxu0 0.0
  %2960 = vmatprep.subr.mxu0 0.0
  %2961 = vmatpush1.msra.mxu0 0.0
  %2962 = vmatprep.subr.mxu0 0.0
  %2963 = vmatpush1.msra.mxu0 0.0
  %2964 = vmatprep.subr.mxu0 0.0
  %2965 = vmatpush1.msra.mxu0 0.0
  %2966 = vmatprep.subr.mxu0 0.0
  %2967 = vmatpush1.msra.mxu0 0.0
  %2968 = vmatprep.subr.mxu0 0.0
  %2969 = vmatpush1.msra.mxu0 0.0
  %2970 = vmatprep.subr.mxu0 0.0
  %2971 = vmatpush1.msra.mxu0 0.0
  %2972 = vmatprep.subr.mxu0 0.0
  %2973 = vmatpush1.msra.mxu0 0.0
  %2974 = vmatprep.subr.mxu0 0.0
  %2975 = vmatpush1.msra.mxu0 0.0
  %2976 = vmatprep.subr.mxu0 0.0
  %2977 = vmatpush1.msra.mxu0 0.0
  %2978 = vmatprep.mubr.f32.mxu0 0.0
  %2979 = vmatmul.mubr.f32.gmra.mrb[0].mxu0 %v2912
  %v2980 = vpop.f32.mrb[0].mxu0
  %v2981 = vadd.f32 0.0, %v2980
  %v2982 = vpop.f32.mrb[0].mxu0
  %2983 = vdwg.mxu0
  %2984 = vrot.lane.b32.xlu0 %v2067, 96
  %v2985 = vpop.permute.xlu0 %2984
  %v2988 = vsel %vm164, %v2747, 0
  %2990 = vmatprep.subr.mxu0 0.0
  %2991 = vmatpush1.msra.mxu0 %v2985
  %2992 = vmatprep.subr.mxu0 0.0
  %2993 = vmatpush1.msra.mxu0 0.0
  %2994 = vmatprep.subr.mxu0 0.0
  %2995 = vmatpush1.msra.mxu0 0.0
  %2996 = vmatprep.subr.mxu0 0.0
  %2997 = vmatpush1.msra.mxu0 0.0
  %2998 = vmatprep.subr.mxu0 0.0
  %2999 = vmatpush1.msra.mxu0 0.0
  %3000 = vmatprep.subr.mxu0 0.0
  %3001 = vmatpush1.msra.mxu0 0.0
  %3002 = vmatprep.subr.mxu0 0.0
  %3003 = vmatpush1.msra.mxu0 0.0
  %3004 = vmatprep.subr.mxu0 0.0
  %3005 = vmatpush1.msra.mxu0 0.0
  %3006 = vmatprep.subr.mxu0 0.0
  %3007 = vmatpush1.msra.mxu0 0.0
  %3008 = vmatprep.subr.mxu0 0.0
  %3009 = vmatpush1.msra.mxu0 0.0
  %3010 = vmatprep.subr.mxu0 0.0
  %3011 = vmatpush1.msra.mxu0 0.0
  %3012 = vmatprep.subr.mxu0 0.0
  %3013 = vmatpush1.msra.mxu0 0.0
  %3014 = vmatprep.subr.mxu0 0.0
  %3015 = vmatpush1.msra.mxu0 0.0
  %3016 = vmatprep.subr.mxu0 0.0
  %3017 = vmatpush1.msra.mxu0 0.0
  %3018 = vmatprep.subr.mxu0 0.0
  %3019 = vmatpush1.msra.mxu0 0.0
  %3020 = vmatprep.subr.mxu0 0.0
  %3021 = vmatpush1.msra.mxu0 0.0
  %3022 = vmatprep.subr.mxu0 0.0
  %3023 = vmatpush1.msra.mxu0 0.0
  %3024 = vmatprep.subr.mxu0 0.0
  %3025 = vmatpush1.msra.mxu0 0.0
  %3026 = vmatprep.subr.mxu0 0.0
  %3027 = vmatpush1.msra.mxu0 0.0
  %3028 = vmatprep.subr.mxu0 0.0
  %3029 = vmatpush1.msra.mxu0 0.0
  %3030 = vmatprep.subr.mxu0 0.0
  %3031 = vmatpush1.msra.mxu0 0.0
  %3032 = vmatprep.subr.mxu0 0.0
  %3033 = vmatpush1.msra.mxu0 0.0
  %3034 = vmatprep.subr.mxu0 0.0
  %3035 = vmatpush1.msra.mxu0 0.0
  %3036 = vmatprep.subr.mxu0 0.0
  %3037 = vmatpush1.msra.mxu0 0.0
  %3038 = vmatprep.subr.mxu0 0.0
  %3039 = vmatpush1.msra.mxu0 0.0
  %3040 = vmatprep.subr.mxu0 0.0
  %3041 = vmatpush1.msra.mxu0 0.0
  %3042 = vmatprep.subr.mxu0 0.0
  %3043 = vmatpush1.msra.mxu0 0.0
  %3044 = vmatprep.subr.mxu0 0.0
  %3045 = vmatpush1.msra.mxu0 0.0
  %3046 = vmatprep.subr.mxu0 0.0
  %3047 = vmatpush1.msra.mxu0 0.0
  %3048 = vmatprep.subr.mxu0 0.0
  %3049 = vmatpush1.msra.mxu0 0.0
  %3050 = vmatprep.subr.mxu0 0.0
  %3051 = vmatpush1.msra.mxu0 0.0
  %3052 = vmatprep.subr.mxu0 0.0
  %3053 = vmatpush1.msra.mxu0 0.0
  %3054 = vmatprep.mubr.f32.mxu0 0.0
  %3055 = vmatmul.mubr.f32.gmra.mrb[0].mxu0 %v2988
  %v3056 = vpop.f32.mrb[0].mxu0
  %v3057 = vadd.f32 0.0, %v3056
  %v3058 = vpop.f32.mrb[0].mxu0
  %3059 = vdwg.mxu0
  %3060 = vrot.lane.b32.xlu0 %v2069, 96
  %v3061 = vpop.permute.xlu0 %3060
  %v3064 = vsel %vm164, %v2749, 0
  %3066 = vmatprep.subr.mxu0 0.0
  %3067 = vmatpush1.msra.mxu0 %v3061
  %3068 = vmatprep.subr.mxu0 0.0
  %3069 = vmatpush1.msra.mxu0 0.0
  %3070 = vmatprep.subr.mxu0 0.0
  %3071 = vmatpush1.msra.mxu0 0.0
  %3072 = vmatprep.subr.mxu0 0.0
  %3073 = vmatpush1.msra.mxu0 0.0
  %3074 = vmatprep.subr.mxu0 0.0
  %3075 = vmatpush1.msra.mxu0 0.0
  %3076 = vmatprep.subr.mxu0 0.0
  %3077 = vmatpush1.msra.mxu0 0.0
  %3078 = vmatprep.subr.mxu0 0.0
  %3079 = vmatpush1.msra.mxu0 0.0
  %3080 = vmatprep.subr.mxu0 0.0
  %3081 = vmatpush1.msra.mxu0 0.0
  %3082 = vmatprep.subr.mxu0 0.0
  %3083 = vmatpush1.msra.mxu0 0.0
  %3084 = vmatprep.subr.mxu0 0.0
  %3085 = vmatpush1.msra.mxu0 0.0
  %3086 = vmatprep.subr.mxu0 0.0
  %3087 = vmatpush1.msra.mxu0 0.0
  %3088 = vmatprep.subr.mxu0 0.0
  %3089 = vmatpush1.msra.mxu0 0.0
  %3090 = vmatprep.subr.mxu0 0.0
  %3091 = vmatpush1.msra.mxu0 0.0
  %3092 = vmatprep.subr.mxu0 0.0
  %3093 = vmatpush1.msra.mxu0 0.0
  %3094 = vmatprep.subr.mxu0 0.0
  %3095 = vmatpush1.msra.mxu0 0.0
  %3096 = vmatprep.subr.mxu0 0.0
  %3097 = vmatpush1.msra.mxu0 0.0
  %3098 = vmatprep.subr.mxu0 0.0
  %3099 = vmatpush1.msra.mxu0 0.0
  %3100 = vmatprep.subr.mxu0 0.0
  %3101 = vmatpush1.msra.mxu0 0.0
  %3102 = vmatprep.subr.mxu0 0.0
  %3103 = vmatpush1.msra.mxu0 0.0
  %3104 = vmatprep.subr.mxu0 0.0
  %3105 = vmatpush1.msra.mxu0 0.0
  %3106 = vmatprep.subr.mxu0 0.0
  %3107 = vmatpush1.msra.mxu0 0.0
  %3108 = vmatprep.subr.mxu0 0.0
  %3109 = vmatpush1.msra.mxu0 0.0
  %3110 = vmatprep.subr.mxu0 0.0
  %3111 = vmatpush1.msra.mxu0 0.0
  %3112 = vmatprep.subr.mxu0 0.0
  %3113 = vmatpush1.msra.mxu0 0.0
  %3114 = vmatprep.subr.mxu0 0.0
  %3115 = vmatpush1.msra.mxu0 0.0
  %3116 = vmatprep.subr.mxu0 0.0
  %3117 = vmatpush1.msra.mxu0 0.0
  %3118 = vmatprep.subr.mxu0 0.0
  %3119 = vmatpush1.msra.mxu0 0.0
  %3120 = vmatprep.subr.mxu0 0.0
  %3121 = vmatpush1.msra.mxu0 0.0
  %3122 = vmatprep.subr.mxu0 0.0
  %3123 = vmatpush1.msra.mxu0 0.0
  %3124 = vmatprep.subr.mxu0 0.0
  %3125 = vmatpush1.msra.mxu0 0.0
  %3126 = vmatprep.subr.mxu0 0.0
  %3127 = vmatpush1.msra.mxu0 0.0
  %3128 = vmatprep.subr.mxu0 0.0
  %3129 = vmatpush1.msra.mxu0 0.0
  %3130 = vmatprep.mubr.f32.mxu0 0.0
  %3131 = vmatmul.mubr.f32.gmra.mrb[0].mxu0 %v3064
  %v3132 = vpop.f32.mrb[0].mxu0
  %v3133 = vadd.f32 0.0, %v3132
  %v3134 = vpop.f32.mrb[0].mxu0
  %3135 = vdwg.mxu0
  %3136 = vrot.lane.b32.xlu0 %v2071, 96
  %v3137 = vpop.permute.xlu0 %3136
  %v3140 = vsel %vm164, %v2751, 0
  %3142 = vmatprep.subr.mxu0 0.0
  %3143 = vmatpush1.msra.mxu0 %v3137
  %3144 = vmatprep.subr.mxu0 0.0
  %3145 = vmatpush1.msra.mxu0 0.0
  %3146 = vmatprep.subr.mxu0 0.0
  %3147 = vmatpush1.msra.mxu0 0.0
  %3148 = vmatprep.subr.mxu0 0.0
  %3149 = vmatpush1.msra.mxu0 0.0
  %3150 = vmatprep.subr.mxu0 0.0
  %3151 = vmatpush1.msra.mxu0 0.0
  %3152 = vmatprep.subr.mxu0 0.0
  %3153 = vmatpush1.msra.mxu0 0.0
  %3154 = vmatprep.subr.mxu0 0.0
  %3155 = vmatpush1.msra.mxu0 0.0
  %3156 = vmatprep.subr.mxu0 0.0
  %3157 = vmatpush1.msra.mxu0 0.0
  %3158 = vmatprep.subr.mxu0 0.0
  %3159 = vmatpush1.msra.mxu0 0.0
  %3160 = vmatprep.subr.mxu0 0.0
  %3161 = vmatpush1.msra.mxu0 0.0
  %3162 = vmatprep.subr.mxu0 0.0
  %3163 = vmatpush1.msra.mxu0 0.0
  %3164 = vmatprep.subr.mxu0 0.0
  %3165 = vmatpush1.msra.mxu0 0.0
  %3166 = vmatprep.subr.mxu0 0.0
  %3167 = vmatpush1.msra.mxu0 0.0
  %3168 = vmatprep.subr.mxu0 0.0
  %3169 = vmatpush1.msra.mxu0 0.0
  %3170 = vmatprep.subr.mxu0 0.0
  %3171 = vmatpush1.msra.mxu0 0.0
  %3172 = vmatprep.subr.mxu0 0.0
  %3173 = vmatpush1.msra.mxu0 0.0
  %3174 = vmatprep.subr.mxu0 0.0
  %3175 = vmatpush1.msra.mxu0 0.0
  %3176 = vmatprep.subr.mxu0 0.0
  %3177 = vmatpush1.msra.mxu0 0.0
  %3178 = vmatprep.subr.mxu0 0.0
  %3179 = vmatpush1.msra.mxu0 0.0
  %3180 = vmatprep.subr.mxu0 0.0
  %3181 = vmatpush1.msra.mxu0 0.0
  %3182 = vmatprep.subr.mxu0 0.0
  %3183 = vmatpush1.msra.mxu0 0.0
  %3184 = vmatprep.subr.mxu0 0.0
  %3185 = vmatpush1.msra.mxu0 0.0
  %3186 = vmatprep.subr.mxu0 0.0
  %3187 = vmatpush1.msra.mxu0 0.0
  %3188 = vmatprep.subr.mxu0 0.0
  %3189 = vmatpush1.msra.mxu0 0.0
  %3190 = vmatprep.subr.mxu0 0.0
  %3191 = vmatpush1.msra.mxu0 0.0
  %3192 = vmatprep.subr.mxu0 0.0
  %3193 = vmatpush1.msra.mxu0 0.0
  %3194 = vmatprep.subr.mxu0 0.0
  %3195 = vmatpush1.msra.mxu0 0.0
  %3196 = vmatprep.subr.mxu0 0.0
  %3197 = vmatpush1.msra.mxu0 0.0
  %3198 = vmatprep.subr.mxu0 0.0
  %3199 = vmatpush1.msra.mxu0 0.0
  %3200 = vmatprep.subr.mxu0 0.0
  %3201 = vmatpush1.msra.mxu0 0.0
  %3202 = vmatprep.subr.mxu0 0.0
  %3203 = vmatpush1.msra.mxu0 0.0
  %3204 = vmatprep.subr.mxu0 0.0
  %3205 = vmatpush1.msra.mxu0 0.0
  %3206 = vmatprep.mubr.f32.mxu0 0.0
  %3207 = vmatmul.mubr.f32.gmra.mrb[0].mxu0 %v3140
  %v3208 = vpop.f32.mrb[0].mxu0
  %v3209 = vadd.f32 0.0, %v3208
  %v3210 = vpop.f32.mrb[0].mxu0
  %3211 = vdwg.mxu0
  %3212 = vrot.lane.b32.xlu0 %v2073, 96
  %v3213 = vpop.permute.xlu0 %3212
  %v3216 = vsel %vm164, %v2753, 0
  %3218 = vmatprep.subr.mxu0 0.0
  %3219 = vmatpush1.msra.mxu0 %v3213
  %3220 = vmatprep.subr.mxu0 0.0
  %3221 = vmatpush1.msra.mxu0 0.0
  %3222 = vmatprep.subr.mxu0 0.0
  %3223 = vmatpush1.msra.mxu0 0.0
  %3224 = vmatprep.subr.mxu0 0.0
  %3225 = vmatpush1.msra.mxu0 0.0
  %3226 = vmatprep.subr.mxu0 0.0
  %3227 = vmatpush1.msra.mxu0 0.0
  %3228 = vmatprep.subr.mxu0 0.0
  %3229 = vmatpush1.msra.mxu0 0.0
  %3230 = vmatprep.subr.mxu0 0.0
  %3231 = vmatpush1.msra.mxu0 0.0
  %3232 = vmatprep.subr.mxu0 0.0
  %3233 = vmatpush1.msra.mxu0 0.0
  %3234 = vmatprep.subr.mxu0 0.0
  %3235 = vmatpush1.msra.mxu0 0.0
  %3236 = vmatprep.subr.mxu0 0.0
  %3237 = vmatpush1.msra.mxu0 0.0
  %3238 = vmatprep.subr.mxu0 0.0
  %3239 = vmatpush1.msra.mxu0 0.0
  %3240 = vmatprep.subr.mxu0 0.0
  %3241 = vmatpush1.msra.mxu0 0.0
  %3242 = vmatprep.subr.mxu0 0.0
  %3243 = vmatpush1.msra.mxu0 0.0
  %3244 = vmatprep.subr.mxu0 0.0
  %3245 = vmatpush1.msra.mxu0 0.0
  %3246 = vmatprep.subr.mxu0 0.0
  %3247 = vmatpush1.msra.mxu0 0.0
  %3248 = vmatprep.subr.mxu0 0.0
  %3249 = vmatpush1.msra.mxu0 0.0
  %3250 = vmatprep.subr.mxu0 0.0
  %3251 = vmatpush1.msra.mxu0 0.0
  %3252 = vmatprep.subr.mxu0 0.0
  %3253 = vmatpush1.msra.mxu0 0.0
  %3254 = vmatprep.subr.mxu0 0.0
  %3255 = vmatpush1.msra.mxu0 0.0
  %3256 = vmatprep.subr.mxu0 0.0
  %3257 = vmatpush1.msra.mxu0 0.0
  %3258 = vmatprep.subr.mxu0 0.0
  %3259 = vmatpush1.msra.mxu0 0.0
  %3260 = vmatprep.subr.mxu0 0.0
  %3261 = vmatpush1.msra.mxu0 0.0
  %3262 = vmatprep.subr.mxu0 0.0
  %3263 = vmatpush1.msra.mxu0 0.0
  %3264 = vmatprep.subr.mxu0 0.0
  %3265 = vmatpush1.msra.mxu0 0.0
  %3266 = vmatprep.subr.mxu0 0.0
  %3267 = vmatpush1.msra.mxu0 0.0
  %3268 = vmatprep.subr.mxu0 0.0
  %3269 = vmatpush1.msra.mxu0 0.0
  %3270 = vmatprep.subr.mxu0 0.0
  %3271 = vmatpush1.msra.mxu0 0.0
  %3272 = vmatprep.subr.mxu0 0.0
  %3273 = vmatpush1.msra.mxu0 0.0
  %3274 = vmatprep.subr.mxu0 0.0
  %3275 = vmatpush1.msra.mxu0 0.0
  %3276 = vmatprep.subr.mxu0 0.0
  %3277 = vmatpush1.msra.mxu0 0.0
  %3278 = vmatprep.subr.mxu0 0.0
  %3279 = vmatpush1.msra.mxu0 0.0
  %3280 = vmatprep.subr.mxu0 0.0
  %3281 = vmatpush1.msra.mxu0 0.0
  %3282 = vmatprep.mubr.f32.mxu0 0.0
  %3283 = vmatmul.mubr.f32.gmra.mrb[0].mxu0 %v3216
  %v3284 = vpop.f32.mrb[0].mxu0
  %v3285 = vadd.f32 0.0, %v3284
  %v3286 = vpop.f32.mrb[0].mxu0
  %3287 = vdwg.mxu0
  %3288 = vrot.lane.b32.xlu0 %v2075, 96
  %v3289 = vpop.permute.xlu0 %3288
  %v3292 = vsel %vm164, %v2755, 0
  %3294 = vmatprep.subr.mxu0 0.0
  %3295 = vmatpush1.msra.mxu0 %v3289
  %3296 = vmatprep.subr.mxu0 0.0
  %3297 = vmatpush1.msra.mxu0 0.0
  %3298 = vmatprep.subr.mxu0 0.0
  %3299 = vmatpush1.msra.mxu0 0.0
  %3300 = vmatprep.subr.mxu0 0.0
  %3301 = vmatpush1.msra.mxu0 0.0
  %3302 = vmatprep.subr.mxu0 0.0
  %3303 = vmatpush1.msra.mxu0 0.0
  %3304 = vmatprep.subr.mxu0 0.0
  %3305 = vmatpush1.msra.mxu0 0.0
  %3306 = vmatprep.subr.mxu0 0.0
  %3307 = vmatpush1.msra.mxu0 0.0
  %3308 = vmatprep.subr.mxu0 0.0
  %3309 = vmatpush1.msra.mxu0 0.0
  %3310 = vmatprep.subr.mxu0 0.0
  %3311 = vmatpush1.msra.mxu0 0.0
  %3312 = vmatprep.subr.mxu0 0.0
  %3313 = vmatpush1.msra.mxu0 0.0
  %3314 = vmatprep.subr.mxu0 0.0
  %3315 = vmatpush1.msra.mxu0 0.0
  %3316 = vmatprep.subr.mxu0 0.0
  %3317 = vmatpush1.msra.mxu0 0.0
  %3318 = vmatprep.subr.mxu0 0.0
  %3319 = vmatpush1.msra.mxu0 0.0
  %3320 = vmatprep.subr.mxu0 0.0
  %3321 = vmatpush1.msra.mxu0 0.0
  %3322 = vmatprep.subr.mxu0 0.0
  %3323 = vmatpush1.msra.mxu0 0.0
  %3324 = vmatprep.subr.mxu0 0.0
  %3325 = vmatpush1.msra.mxu0 0.0
  %3326 = vmatprep.subr.mxu0 0.0
  %3327 = vmatpush1.msra.mxu0 0.0
  %3328 = vmatprep.subr.mxu0 0.0
  %3329 = vmatpush1.msra.mxu0 0.0
  %3330 = vmatprep.subr.mxu0 0.0
  %3331 = vmatpush1.msra.mxu0 0.0
  %3332 = vmatprep.subr.mxu0 0.0
  %3333 = vmatpush1.msra.mxu0 0.0
  %3334 = vmatprep.subr.mxu0 0.0
  %3335 = vmatpush1.msra.mxu0 0.0
  %3336 = vmatprep.subr.mxu0 0.0
  %3337 = vmatpush1.msra.mxu0 0.0
  %3338 = vmatprep.subr.mxu0 0.0
  %3339 = vmatpush1.msra.mxu0 0.0
  %3340 = vmatprep.subr.mxu0 0.0
  %3341 = vmatpush1.msra.mxu0 0.0
  %3342 = vmatprep.subr.mxu0 0.0
  %3343 = vmatpush1.msra.mxu0 0.0
  %3344 = vmatprep.subr.mxu0 0.0
  %3345 = vmatpush1.msra.mxu0 0.0
  %3346 = vmatprep.subr.mxu0 0.0
  %3347 = vmatpush1.msra.mxu0 0.0
  %3348 = vmatprep.subr.mxu0 0.0
  %3349 = vmatpush1.msra.mxu0 0.0
  %3350 = vmatprep.subr.mxu0 0.0
  %3351 = vmatpush1.msra.mxu0 0.0
  %3352 = vmatprep.subr.mxu0 0.0
  %3353 = vmatpush1.msra.mxu0 0.0
  %3354 = vmatprep.subr.mxu0 0.0
  %3355 = vmatpush1.msra.mxu0 0.0
  %3356 = vmatprep.subr.mxu0 0.0
  %3357 = vmatpush1.msra.mxu0 0.0
  %3358 = vmatprep.mubr.f32.mxu0 0.0
  %3359 = vmatmul.mubr.f32.gmra.mrb[0].mxu0 %v3292
  %v3360 = vpop.f32.mrb[0].mxu0
  %v3361 = vadd.f32 0.0, %v3360
  %v3362 = vpop.f32.mrb[0].mxu0
  %3363 = vdwg.mxu0
  %3364 = vrot.lane.b32.xlu0 %v25, 32
  %v3365 = vpop.permute.xlu0 %3364
  %v3368 = vsel %vm164, %v2829, 0
  %v3371 = vsel %vm164, %v2905, 0
  %3373 = vmatprep.subr.mxu0 0.0
  %3374 = vmatpush1.msra.mxu0 %v3365
  %3375 = vmatprep.subr.mxu0 0.0
  %3376 = vmatpush1.msra.mxu0 0.0
  %3377 = vmatprep.subr.mxu0 0.0
  %3378 = vmatpush1.msra.mxu0 0.0
  %3379 = vmatprep.subr.mxu0 0.0
  %3380 = vmatpush1.msra.mxu0 0.0
  %3381 = vmatprep.subr.mxu0 0.0
  %3382 = vmatpush1.msra.mxu0 0.0
  %3383 = vmatprep.subr.mxu0 0.0
  %3384 = vmatpush1.msra.mxu0 0.0
  %3385 = vmatprep.subr.mxu0 0.0
  %3386 = vmatpush1.msra.mxu0 0.0
  %3387 = vmatprep.subr.mxu0 0.0
  %3388 = vmatpush1.msra.mxu0 0.0
  %3389 = vmatprep.subr.mxu0 0.0
  %3390 = vmatpush1.msra.mxu0 0.0
  %3391 = vmatprep.subr.mxu0 0.0
  %3392 = vmatpush1.msra.mxu0 0.0
  %3393 = vmatprep.subr.mxu0 0.0
  %3394 = vmatpush1.msra.mxu0 0.0
  %3395 = vmatprep.subr.mxu0 0.0
  %3396 = vmatpush1.msra.mxu0 0.0
  %3397 = vmatprep.subr.mxu0 0.0
  %3398 = vmatpush1.msra.mxu0 0.0
  %3399 = vmatprep.subr.mxu0 0.0
  %3400 = vmatpush1.msra.mxu0 0.0
  %3401 = vmatprep.subr.mxu0 0.0
  %3402 = vmatpush1.msra.mxu0 0.0
  %3403 = vmatprep.subr.mxu0 0.0
  %3404 = vmatpush1.msra.mxu0 0.0
  %3405 = vmatprep.subr.mxu0 0.0
  %3406 = vmatpush1.msra.mxu0 0.0
  %3407 = vmatprep.subr.mxu0 0.0
  %3408 = vmatpush1.msra.mxu0 0.0
  %3409 = vmatprep.subr.mxu0 0.0
  %3410 = vmatpush1.msra.mxu0 0.0
  %3411 = vmatprep.subr.mxu0 0.0
  %3412 = vmatpush1.msra.mxu0 0.0
  %3413 = vmatprep.subr.mxu0 0.0
  %3414 = vmatpush1.msra.mxu0 0.0
  %3415 = vmatprep.subr.mxu0 0.0
  %3416 = vmatpush1.msra.mxu0 0.0
  %3417 = vmatprep.subr.mxu0 0.0
  %3418 = vmatpush1.msra.mxu0 0.0
  %3419 = vmatprep.subr.mxu0 0.0
  %3420 = vmatpush1.msra.mxu0 0.0
  %3421 = vmatprep.subr.mxu0 0.0
  %3422 = vmatpush1.msra.mxu0 0.0
  %3423 = vmatprep.subr.mxu0 0.0
  %3424 = vmatpush1.msra.mxu0 0.0
  %3425 = vmatprep.subr.mxu0 0.0
  %3426 = vmatpush1.msra.mxu0 0.0
  %3427 = vmatprep.subr.mxu0 0.0
  %3428 = vmatpush1.msra.mxu0 0.0
  %3429 = vmatprep.subr.mxu0 0.0
  %3430 = vmatpush1.msra.mxu0 0.0
  %3431 = vmatprep.subr.mxu0 0.0
  %3432 = vmatpush1.msra.mxu0 0.0
  %3433 = vmatprep.subr.mxu0 0.0
  %3434 = vmatpush1.msra.mxu0 0.0
  %3435 = vmatprep.subr.mxu0 0.0
  %3436 = vmatpush1.msra.mxu0 0.0
  %3437 = vmatprep.mubr.f32.mxu0 0.0
  %3438 = vmatmul.mubr.f32.gmra.mrb[0].mxu0 %v3368
  %v3439 = vpop.f32.mrb[0].mxu0
  %v3440 = vadd.f32 0.0, %v3439
  %v3441 = vpop.f32.mrb[0].mxu0
  %3442 = vmatprep.mubr.f32.mxu0 0.0
  %3443 = vmatmul.mubr.f32.gmra.mrb[0].mxu0 %v3371
  %v3444 = vpop.f32.mrb[0].mxu0
  %v3445 = vadd.f32 0.0, %v3444
  %v3446 = vpop.f32.mrb[0].mxu0
  %3447 = vdwg.mxu0
  %v3448 = vlaneseq
  %v3449 = vshrl.u32 %v3448, 7
  %v3450 = vsub.s32 4, %v3449
  %v3451 = vrot.slane %v44, %v3450
  %v3452 = vadd.f32 %v3451, %v3440
  %v3453 = vadd.f32 %v3451, %v3445
  %3454 = vrot.lane.b32.xlu0 %v28, 32
  %v3455 = vpop.permute.xlu0 %3454
  %v3458 = vsel %vm164, %v2981, 0
  %v3461 = vsel %vm164, %v3057, 0
  %3463 = vmatprep.subr.mxu0 0.0
  %3464 = vmatpush1.msra.mxu0 %v3455
  %3465 = vmatprep.subr.mxu0 0.0
  %3466 = vmatpush1.msra.mxu0 0.0
  %3467 = vmatprep.subr.mxu0 0.0
  %3468 = vmatpush1.msra.mxu0 0.0
  %3469 = vmatprep.subr.mxu0 0.0
  %3470 = vmatpush1.msra.mxu0 0.0
  %3471 = vmatprep.subr.mxu0 0.0
  %3472 = vmatpush1.msra.mxu0 0.0
  %3473 = vmatprep.subr.mxu0 0.0
  %3474 = vmatpush1.msra.mxu0 0.0
  %3475 = vmatprep.subr.mxu0 0.0
  %3476 = vmatpush1.msra.mxu0 0.0
  %3477 = vmatprep.subr.mxu0 0.0
  %3478 = vmatpush1.msra.mxu0 0.0
  %3479 = vmatprep.subr.mxu0 0.0
  %3480 = vmatpush1.msra.mxu0 0.0
  %3481 = vmatprep.subr.mxu0 0.0
  %3482 = vmatpush1.msra.mxu0 0.0
  %3483 = vmatprep.subr.mxu0 0.0
  %3484 = vmatpush1.msra.mxu0 0.0
  %3485 = vmatprep.subr.mxu0 0.0
  %3486 = vmatpush1.msra.mxu0 0.0
  %3487 = vmatprep.subr.mxu0 0.0
  %3488 = vmatpush1.msra.mxu0 0.0
  %3489 = vmatprep.subr.mxu0 0.0
  %3490 = vmatpush1.msra.mxu0 0.0
  %3491 = vmatprep.subr.mxu0 0.0
  %3492 = vmatpush1.msra.mxu0 0.0
  %3493 = vmatprep.subr.mxu0 0.0
  %3494 = vmatpush1.msra.mxu0 0.0
  %3495 = vmatprep.subr.mxu0 0.0
  %3496 = vmatpush1.msra.mxu0 0.0
  %3497 = vmatprep.subr.mxu0 0.0
  %3498 = vmatpush1.msra.mxu0 0.0
  %3499 = vmatprep.subr.mxu0 0.0
  %3500 = vmatpush1.msra.mxu0 0.0
  %3501 = vmatprep.subr.mxu0 0.0
  %3502 = vmatpush1.msra.mxu0 0.0
  %3503 = vmatprep.subr.mxu0 0.0
  %3504 = vmatpush1.msra.mxu0 0.0
  %3505 = vmatprep.subr.mxu0 0.0
  %3506 = vmatpush1.msra.mxu0 0.0
  %3507 = vmatprep.subr.mxu0 0.0
  %3508 = vmatpush1.msra.mxu0 0.0
  %3509 = vmatprep.subr.mxu0 0.0
  %3510 = vmatpush1.msra.mxu0 0.0
  %3511 = vmatprep.subr.mxu0 0.0
  %3512 = vmatpush1.msra.mxu0 0.0
  %3513 = vmatprep.subr.mxu0 0.0
  %3514 = vmatpush1.msra.mxu0 0.0
  %3515 = vmatprep.subr.mxu0 0.0
  %3516 = vmatpush1.msra.mxu0 0.0
  %3517 = vmatprep.subr.mxu0 0.0
  %3518 = vmatpush1.msra.mxu0 0.0
  %3519 = vmatprep.subr.mxu0 0.0
  %3520 = vmatpush1.msra.mxu0 0.0
  %3521 = vmatprep.subr.mxu0 0.0
  %3522 = vmatpush1.msra.mxu0 0.0
  %3523 = vmatprep.subr.mxu0 0.0
  %3524 = vmatpush1.msra.mxu0 0.0
  %3525 = vmatprep.subr.mxu0 0.0
  %3526 = vmatpush1.msra.mxu0 0.0
  %3527 = vmatprep.mubr.f32.mxu0 0.0
  %3528 = vmatmul.mubr.f32.gmra.mrb[0].mxu0 %v3458
  %v3529 = vpop.f32.mrb[0].mxu0
  %v3530 = vadd.f32 0.0, %v3529
  %v3531 = vpop.f32.mrb[0].mxu0
  %3532 = vmatprep.mubr.f32.mxu0 0.0
  %3533 = vmatmul.mubr.f32.gmra.mrb[0].mxu0 %v3461
  %v3534 = vpop.f32.mrb[0].mxu0
  %v3535 = vadd.f32 0.0, %v3534
  %v3536 = vpop.f32.mrb[0].mxu0
  %3537 = vdwg.mxu0
  %v3538 = vadd.f32 %v3452, %v3530
  %v3539 = vadd.f32 %v3453, %v3535
  %3540 = vrot.lane.b32.xlu0 %v31, 32
  %v3541 = vpop.permute.xlu0 %3540
  %v3544 = vsel %vm164, %v3133, 0
  %v3547 = vsel %vm164, %v3209, 0
  %3549 = vmatprep.subr.mxu0 0.0
  %3550 = vmatpush1.msra.mxu0 %v3541
  %3551 = vmatprep.subr.mxu0 0.0
  %3552 = vmatpush1.msra.mxu0 0.0
  %3553 = vmatprep.subr.mxu0 0.0
  %3554 = vmatpush1.msra.mxu0 0.0
  %3555 = vmatprep.subr.mxu0 0.0
  %3556 = vmatpush1.msra.mxu0 0.0
  %3557 = vmatprep.subr.mxu0 0.0
  %3558 = vmatpush1.msra.mxu0 0.0
  %3559 = vmatprep.subr.mxu0 0.0
  %3560 = vmatpush1.msra.mxu0 0.0
  %3561 = vmatprep.subr.mxu0 0.0
  %3562 = vmatpush1.msra.mxu0 0.0
  %3563 = vmatprep.subr.mxu0 0.0
  %3564 = vmatpush1.msra.mxu0 0.0
  %3565 = vmatprep.subr.mxu0 0.0
  %3566 = vmatpush1.msra.mxu0 0.0
  %3567 = vmatprep.subr.mxu0 0.0
  %3568 = vmatpush1.msra.mxu0 0.0
  %3569 = vmatprep.subr.mxu0 0.0
  %3570 = vmatpush1.msra.mxu0 0.0
  %3571 = vmatprep.subr.mxu0 0.0
  %3572 = vmatpush1.msra.mxu0 0.0
  %3573 = vmatprep.subr.mxu0 0.0
  %3574 = vmatpush1.msra.mxu0 0.0
  %3575 = vmatprep.subr.mxu0 0.0
  %3576 = vmatpush1.msra.mxu0 0.0
  %3577 = vmatprep.subr.mxu0 0.0
  %3578 = vmatpush1.msra.mxu0 0.0
  %3579 = vmatprep.subr.mxu0 0.0
  %3580 = vmatpush1.msra.mxu0 0.0
  %3581 = vmatprep.subr.mxu0 0.0
  %3582 = vmatpush1.msra.mxu0 0.0
  %3583 = vmatprep.subr.mxu0 0.0
  %3584 = vmatpush1.msra.mxu0 0.0
  %3585 = vmatprep.subr.mxu0 0.0
  %3586 = vmatpush1.msra.mxu0 0.0
  %3587 = vmatprep.subr.mxu0 0.0
  %3588 = vmatpush1.msra.mxu0 0.0
  %3589 = vmatprep.subr.mxu0 0.0
  %3590 = vmatpush1.msra.mxu0 0.0
  %3591 = vmatprep.subr.mxu0 0.0
  %3592 = vmatpush1.msra.mxu0 0.0
  %3593 = vmatprep.subr.mxu0 0.0
  %3594 = vmatpush1.msra.mxu0 0.0
  %3595 = vmatprep.subr.mxu0 0.0
  %3596 = vmatpush1.msra.mxu0 0.0
  %3597 = vmatprep.subr.mxu0 0.0
  %3598 = vmatpush1.msra.mxu0 0.0
  %3599 = vmatprep.subr.mxu0 0.0
  %3600 = vmatpush1.msra.mxu0 0.0
  %3601 = vmatprep.subr.mxu0 0.0
  %3602 = vmatpush1.msra.mxu0 0.0
  %3603 = vmatprep.subr.mxu0 0.0
  %3604 = vmatpush1.msra.mxu0 0.0
  %3605 = vmatprep.subr.mxu0 0.0
  %3606 = vmatpush1.msra.mxu0 0.0
  %3607 = vmatprep.subr.mxu0 0.0
  %3608 = vmatpush1.msra.mxu0 0.0
  %3609 = vmatprep.subr.mxu0 0.0
  %3610 = vmatpush1.msra.mxu0 0.0
  %3611 = vmatprep.subr.mxu0 0.0
  %3612 = vmatpush1.msra.mxu0 0.0
  %3613 = vmatprep.mubr.f32.mxu0 0.0
  %3614 = vmatmul.mubr.f32.gmra.mrb[0].mxu0 %v3544
  %v3615 = vpop.f32.mrb[0].mxu0
  %v3616 = vadd.f32 0.0, %v3615
  %v3617 = vpop.f32.mrb[0].mxu0
  %3618 = vmatprep.mubr.f32.mxu0 0.0
  %3619 = vmatmul.mubr.f32.gmra.mrb[0].mxu0 %v3547
  %v3620 = vpop.f32.mrb[0].mxu0
  %v3621 = vadd.f32 0.0, %v3620
  %v3622 = vpop.f32.mrb[0].mxu0
  %3623 = vdwg.mxu0
  %v3624 = vadd.f32 %v3538, %v3616
  %v3625 = vadd.f32 %v3539, %v3621
  %3626 = vrot.lane.b32.xlu0 %v34, 32
  %v3627 = vpop.permute.xlu0 %3626
  %v3630 = vsel %vm164, %v3285, 0
  %v3633 = vsel %vm164, %v3361, 0
  %3635 = vmatprep.subr.mxu0 0.0
  %3636 = vmatpush1.msra.mxu0 %v3627
  %3637 = vmatprep.subr.mxu0 0.0
  %3638 = vmatpush1.msra.mxu0 0.0
  %3639 = vmatprep.subr.mxu0 0.0
  %3640 = vmatpush1.msra.mxu0 0.0
  %3641 = vmatprep.subr.mxu0 0.0
  %3642 = vmatpush1.msra.mxu0 0.0
  %3643 = vmatprep.subr.mxu0 0.0
  %3644 = vmatpush1.msra.mxu0 0.0
  %3645 = vmatprep.subr.mxu0 0.0
  %3646 = vmatpush1.msra.mxu0 0.0
  %3647 = vmatprep.subr.mxu0 0.0
  %3648 = vmatpush1.msra.mxu0 0.0
  %3649 = vmatprep.subr.mxu0 0.0
  %3650 = vmatpush1.msra.mxu0 0.0
  %3651 = vmatprep.subr.mxu0 0.0
  %3652 = vmatpush1.msra.mxu0 0.0
  %3653 = vmatprep.subr.mxu0 0.0
  %3654 = vmatpush1.msra.mxu0 0.0
  %3655 = vmatprep.subr.mxu0 0.0
  %3656 = vmatpush1.msra.mxu0 0.0
  %3657 = vmatprep.subr.mxu0 0.0
  %3658 = vmatpush1.msra.mxu0 0.0
  %3659 = vmatprep.subr.mxu0 0.0
  %3660 = vmatpush1.msra.mxu0 0.0
  %3661 = vmatprep.subr.mxu0 0.0
  %3662 = vmatpush1.msra.mxu0 0.0
  %3663 = vmatprep.subr.mxu0 0.0
  %3664 = vmatpush1.msra.mxu0 0.0
  %3665 = vmatprep.subr.mxu0 0.0
  %3666 = vmatpush1.msra.mxu0 0.0
  %3667 = vmatprep.subr.mxu0 0.0
  %3668 = vmatpush1.msra.mxu0 0.0
  %3669 = vmatprep.subr.mxu0 0.0
  %3670 = vmatpush1.msra.mxu0 0.0
  %3671 = vmatprep.subr.mxu0 0.0
  %3672 = vmatpush1.msra.mxu0 0.0
  %3673 = vmatprep.subr.mxu0 0.0
  %3674 = vmatpush1.msra.mxu0 0.0
  %3675 = vmatprep.subr.mxu0 0.0
  %3676 = vmatpush1.msra.mxu0 0.0
  %3677 = vmatprep.subr.mxu0 0.0
  %3678 = vmatpush1.msra.mxu0 0.0
  %3679 = vmatprep.subr.mxu0 0.0
  %3680 = vmatpush1.msra.mxu0 0.0
  %3681 = vmatprep.subr.mxu0 0.0
  %3682 = vmatpush1.msra.mxu0 0.0
  %3683 = vmatprep.subr.mxu0 0.0
  %3684 = vmatpush1.msra.mxu0 0.0
  %3685 = vmatprep.subr.mxu0 0.0
  %3686 = vmatpush1.msra.mxu0 0.0
  %3687 = vmatprep.subr.mxu0 0.0
  %3688 = vmatpush1.msra.mxu0 0.0
  %3689 = vmatprep.subr.mxu0 0.0
  %3690 = vmatpush1.msra.mxu0 0.0
  %3691 = vmatprep.subr.mxu0 0.0
  %3692 = vmatpush1.msra.mxu0 0.0
  %3693 = vmatprep.subr.mxu0 0.0
  %3694 = vmatpush1.msra.mxu0 0.0
  %3695 = vmatprep.subr.mxu0 0.0
  %3696 = vmatpush1.msra.mxu0 0.0
  %3697 = vmatprep.subr.mxu0 0.0
  %3698 = vmatpush1.msra.mxu0 0.0
  %3699 = vmatprep.mubr.f32.mxu0 0.0
  %3700 = vmatmul.mubr.f32.gmra.mrb[0].mxu0 %v3630
  %v3701 = vpop.f32.mrb[0].mxu0
  %v3702 = vadd.f32 0.0, %v3701
  %v3703 = vpop.f32.mrb[0].mxu0
  %3704 = vmatprep.mubr.f32.mxu0 0.0
  %3705 = vmatmul.mubr.f32.gmra.mrb[0].mxu0 %v3633
  %v3706 = vpop.f32.mrb[0].mxu0
  %v3707 = vadd.f32 0.0, %v3706
  %v3708 = vpop.f32.mrb[0].mxu0
  %3709 = vdwg.mxu0
  %v3710 = vadd.f32 %v3624, %v3702
  %v3711 = vadd.f32 %v3625, %v3707
  %v3712 = vadd.f32 %v1858, %v3710
  %v3713 = vadd.f32 %v1859, %v3711
  %v3714 = vsel %vm50, %v3712, 0.0
  %3715 = vadd.xlane.f32.xlu0 %v3714
  %v3716 = vpop.xlane.xlu0 %3715
  %v3717 = vsel %vm50, %v3713, 0.0
  %3718 = vadd.xlane.f32.xlu0 %v3717
  %v3719 = vpop.xlane.xlu0 %3718
  %v3720 = vmul.f32 %v3716, %v1827
  %v3721 = vmul.f32 %v3719, %v1827
  %v3722 = vsub.f32 %v3712, %v3720
  %v3723 = vsub.f32 %v3713, %v3721
  %v3724 = vmul.f32 %v3722, %v3722
  %v3725 = vmul.f32 %v3723, %v3723
  %v3726 = vsel %vm50, %v3724, 0.0
  %3727 = vadd.xlane.f32.xlu0 %v3726
  %v3728 = vpop.xlane.xlu0 %3727
  %v3729 = vsel %vm50, %v3725, 0.0
  %3730 = vadd.xlane.f32.xlu0 %v3729
  %v3731 = vpop.xlane.xlu0 %3730
  %v3732 = vmul.f32 %v3728, %v1827
  %v3733 = vmul.f32 %v3731, %v1827
  %v3734 = vadd.f32 %v3732, 1e-05
  %v3735 = vadd.f32 %v3733, 1e-05
  %v3736 = vrsqrt.pop %v3734
  %v3737 = vrsqrt.pop %v3735
  %v3738 = vmul.f32 %v3722, %v3736
  %v3739 = vmul.f32 %v3723, %v3737
  %v3740 = vlaneseq
  %v3741 = vshrl.u32 %v3740, 7
  %v3742 = vsub.s32 1, %v3741
  %v3743 = vrot.slane %v45, %v3742
  %v3744 = vmul.f32 %v3738, %v3743
  %v3745 = vmul.f32 %v3739, %v3743
  %v3746 = vlaneseq
  %v3747 = vshrl.u32 %v3746, 7
  %v3748 = vsub.s32 2, %v3747
  %v3749 = vrot.slane %v45, %v3748
  %v3750 = vadd.f32 %v3744, %v3749
  %v3751 = vadd.f32 %v3745, %v3749
  %v3752 = vlaneseq
  %v3753 = vshrl.u32 %v3752, 7
  %v3754 = vsub.s32 5, %v3753
  %v3755 = vrot.slane %v44, %v3754
  %v3757 = vsel %vm50, %v3750, 0
  %v3760 = vsel %vm50, %v3751, 0
  %3762 = vmatprep.subr.mxu0 0.0
  %3763 = vmatpush1.msra.mxu0 %v26
  %3764 = vmatprep.subr.mxu0 0.0
  %3765 = vmatpush1.msra.mxu0 %v29
  %3766 = vmatprep.subr.mxu0 0.0
  %3767 = vmatpush1.msra.mxu0 %v32
  %3768 = vmatprep.subr.mxu0 0.0
  %3769 = vmatpush1.msra.mxu0 %v35
  %3770 = vmatprep.subr.mxu0 0.0
  %3771 = vmatpush1.msra.mxu0 0.0
  %3772 = vmatprep.subr.mxu0 0.0
  %3773 = vmatpush1.msra.mxu0 0.0
  %3774 = vmatprep.subr.mxu0 0.0
  %3775 = vmatpush1.msra.mxu0 0.0
  %3776 = vmatprep.subr.mxu0 0.0
  %3777 = vmatpush1.msra.mxu0 0.0
  %3778 = vmatprep.subr.mxu0 0.0
  %3779 = vmatpush1.msra.mxu0 0.0
  %3780 = vmatprep.subr.mxu0 0.0
  %3781 = vmatpush1.msra.mxu0 0.0
  %3782 = vmatprep.subr.mxu0 0.0
  %3783 = vmatpush1.msra.mxu0 0.0
  %3784 = vmatprep.subr.mxu0 0.0
  %3785 = vmatpush1.msra.mxu0 0.0
  %3786 = vmatprep.subr.mxu0 0.0
  %3787 = vmatpush1.msra.mxu0 0.0
  %3788 = vmatprep.subr.mxu0 0.0
  %3789 = vmatpush1.msra.mxu0 0.0
  %3790 = vmatprep.subr.mxu0 0.0
  %3791 = vmatpush1.msra.mxu0 0.0
  %3792 = vmatprep.subr.mxu0 0.0
  %3793 = vmatpush1.msra.mxu0 0.0
  %3794 = vmatprep.subr.mxu0 0.0
  %3795 = vmatpush1.msra.mxu0 0.0
  %3796 = vmatprep.subr.mxu0 0.0
  %3797 = vmatpush1.msra.mxu0 0.0
  %3798 = vmatprep.subr.mxu0 0.0
  %3799 = vmatpush1.msra.mxu0 0.0
  %3800 = vmatprep.subr.mxu0 0.0
  %3801 = vmatpush1.msra.mxu0 0.0
  %3802 = vmatprep.subr.mxu0 0.0
  %3803 = vmatpush1.msra.mxu0 0.0
  %3804 = vmatprep.subr.mxu0 0.0
  %3805 = vmatpush1.msra.mxu0 0.0
  %3806 = vmatprep.subr.mxu0 0.0
  %3807 = vmatpush1.msra.mxu0 0.0
  %3808 = vmatprep.subr.mxu0 0.0
  %3809 = vmatpush1.msra.mxu0 0.0
  %3810 = vmatprep.subr.mxu0 0.0
  %3811 = vmatpush1.msra.mxu0 0.0
  %3812 = vmatprep.subr.mxu0 0.0
  %3813 = vmatpush1.msra.mxu0 0.0
  %3814 = vmatprep.subr.mxu0 0.0
  %3815 = vmatpush1.msra.mxu0 0.0
  %3816 = vmatprep.subr.mxu0 0.0
  %3817 = vmatpush1.msra.mxu0 0.0
  %3818 = vmatprep.subr.mxu0 0.0
  %3819 = vmatpush1.msra.mxu0 0.0
  %3820 = vmatprep.subr.mxu0 0.0
  %3821 = vmatpush1.msra.mxu0 0.0
  %3822 = vmatprep.subr.mxu0 0.0
  %3823 = vmatpush1.msra.mxu0 0.0
  %3824 = vmatprep.subr.mxu0 0.0
  %3825 = vmatpush1.msra.mxu0 0.0
  %3826 = vmatprep.mubr.f32.mxu0 0.0
  %3827 = vmatmul.mubr.f32.gmra.mrb[0].mxu0 %v3757
  %v3828 = vpop.f32.mrb[0].mxu0
  %v3829 = vadd.f32 %v3755, %v3828
  %v3830 = vpop.f32.mrb[0].mxu0
  %3831 = vmatprep.mubr.f32.mxu0 0.0
  %3832 = vmatmul.mubr.f32.gmra.mrb[0].mxu0 %v3760
  %v3833 = vpop.f32.mrb[0].mxu0
  %v3834 = vadd.f32 %v3755, %v3833
  %v3835 = vpop.f32.mrb[0].mxu0
  %3836 = vdwg.mxu0
  %v3837 = vmax.f32 %v3829, 0.0
  %v3838 = vmax.f32 %v3834, 0.0
  %v3839 = vlaneseq
  %v3840 = vshrl.u32 %v3839, 7
  %v3841 = vsub.s32 6, %v3840
  %v3842 = vrot.slane %v44, %v3841
  %vm3843 = vcmask 523264
  %v3845 = vsel %vm3843, %v3837, 0
  %v3848 = vsel %vm3843, %v3838, 0
  %3850 = vmatprep.subr.mxu0 0.0
  %3851 = vmatpush1.msra.mxu0 %v36
  %3852 = vmatprep.subr.mxu0 0.0
  %3853 = vmatpush1.msra.mxu0 %v37
  %3854 = vmatprep.subr.mxu0 0.0
  %3855 = vmatpush1.msra.mxu0 %v38
  %3856 = vmatprep.subr.mxu0 0.0
  %3857 = vmatpush1.msra.mxu0 %v39
  %3858 = vmatprep.subr.mxu0 0.0
  %3859 = vmatpush1.msra.mxu0 %v40
  %3860 = vmatprep.subr.mxu0 0.0
  %3861 = vmatpush1.msra.mxu0 %v41
  %3862 = vmatprep.subr.mxu0 0.0
  %3863 = vmatpush1.msra.mxu0 %v42
  %3864 = vmatprep.subr.mxu0 0.0
  %3865 = vmatpush1.msra.mxu0 %v43
  %3866 = vmatprep.subr.mxu0 0.0
  %3867 = vmatpush1.msra.mxu0 0.0
  %3868 = vmatprep.subr.mxu0 0.0
  %3869 = vmatpush1.msra.mxu0 0.0
  %3870 = vmatprep.subr.mxu0 0.0
  %3871 = vmatpush1.msra.mxu0 0.0
  %3872 = vmatprep.subr.mxu0 0.0
  %3873 = vmatpush1.msra.mxu0 0.0
  %3874 = vmatprep.subr.mxu0 0.0
  %3875 = vmatpush1.msra.mxu0 0.0
  %3876 = vmatprep.subr.mxu0 0.0
  %3877 = vmatpush1.msra.mxu0 0.0
  %3878 = vmatprep.subr.mxu0 0.0
  %3879 = vmatpush1.msra.mxu0 0.0
  %3880 = vmatprep.subr.mxu0 0.0
  %3881 = vmatpush1.msra.mxu0 0.0
  %3882 = vmatprep.subr.mxu0 0.0
  %3883 = vmatpush1.msra.mxu0 0.0
  %3884 = vmatprep.subr.mxu0 0.0
  %3885 = vmatpush1.msra.mxu0 0.0
  %3886 = vmatprep.subr.mxu0 0.0
  %3887 = vmatpush1.msra.mxu0 0.0
  %3888 = vmatprep.subr.mxu0 0.0
  %3889 = vmatpush1.msra.mxu0 0.0
  %3890 = vmatprep.subr.mxu0 0.0
  %3891 = vmatpush1.msra.mxu0 0.0
  %3892 = vmatprep.subr.mxu0 0.0
  %3893 = vmatpush1.msra.mxu0 0.0
  %3894 = vmatprep.subr.mxu0 0.0
  %3895 = vmatpush1.msra.mxu0 0.0
  %3896 = vmatprep.subr.mxu0 0.0
  %3897 = vmatpush1.msra.mxu0 0.0
  %3898 = vmatprep.subr.mxu0 0.0
  %3899 = vmatpush1.msra.mxu0 0.0
  %3900 = vmatprep.subr.mxu0 0.0
  %3901 = vmatpush1.msra.mxu0 0.0
  %3902 = vmatprep.subr.mxu0 0.0
  %3903 = vmatpush1.msra.mxu0 0.0
  %3904 = vmatprep.subr.mxu0 0.0
  %3905 = vmatpush1.msra.mxu0 0.0
  %3906 = vmatprep.subr.mxu0 0.0
  %3907 = vmatpush1.msra.mxu0 0.0
  %3908 = vmatprep.subr.mxu0 0.0
  %3909 = vmatpush1.msra.mxu0 0.0
  %3910 = vmatprep.subr.mxu0 0.0
  %3911 = vmatpush1.msra.mxu0 0.0
  %3912 = vmatprep.subr.mxu0 0.0
  %3913 = vmatpush1.msra.mxu0 0.0
  %3914 = vmatprep.mubr.f32.mxu0 0.0
  %3915 = vmatmul.mubr.f32.gmra.mrb[0].mxu0 %v3845
  %v3916 = vpop.f32.mrb[0].mxu0
  %v3917 = vadd.f32 %v3842, %v3916
  %v3918 = vpop.f32.mrb[0].mxu0
  %3919 = vmatprep.mubr.f32.mxu0 0.0
  %3920 = vmatmul.mubr.f32.gmra.mrb[0].mxu0 %v3848
  %v3921 = vpop.f32.mrb[0].mxu0
  %v3922 = vadd.f32 %v3842, %v3921
  %v3923 = vpop.f32.mrb[0].mxu0
  %3924 = vdwg.mxu0
  %v3925 = vadd.f32 %v3750, %v3917
  %v3926 = vadd.f32 %v3751, %v3922
  %v3927 = vsel %vm50, %v3925, 0.0
  %3928 = vadd.xlane.f32.xlu0 %v3927
  %v3929 = vpop.xlane.xlu0 %3928
  %v3930 = vsel %vm50, %v3926, 0.0
  %3931 = vadd.xlane.f32.xlu0 %v3930
  %v3932 = vpop.xlane.xlu0 %3931
  %v3933 = vmul.f32 %v3929, %v1827
  %v3934 = vmul.f32 %v3932, %v1827
  %v3935 = vsub.f32 %v3925, %v3933
  %v3936 = vsub.f32 %v3926, %v3934
  %v3937 = vmul.f32 %v3935, %v3935
  %v3938 = vmul.f32 %v3936, %v3936
  %v3939 = vsel %vm50, %v3937, 0.0
  %3940 = vadd.xlane.f32.xlu0 %v3939
  %v3941 = vpop.xlane.xlu0 %3940
  %v3942 = vsel %vm50, %v3938, 0.0
  %3943 = vadd.xlane.f32.xlu0 %v3942
  %v3944 = vpop.xlane.xlu0 %3943
  %v3945 = vmul.f32 %v3941, %v1827
  %v3946 = vmul.f32 %v3944, %v1827
  %v3947 = vadd.f32 %v3945, 1e-05
  %v3948 = vadd.f32 %v3946, 1e-05
  %v3949 = vrsqrt.pop %v3947
  %v3950 = vrsqrt.pop %v3948
  %v3951 = vmul.f32 %v3935, %v3949
  %v3952 = vmul.f32 %v3936, %v3950
  %v3953 = vlaneseq
  %v3954 = vshrl.u32 %v3953, 7
  %v3955 = vsub.s32 3, %v3954
  %v3956 = vrot.slane %v45, %v3955
  %v3957 = vmul.f32 %v3951, %v3956
  %v3958 = vmul.f32 %v3952, %v3956
  %v3959 = vlaneseq
  %v3960 = vshrl.u32 %v3959, 7
  %v3961 = vsub.s32 4, %v3960
  %v3962 = vrot.slane %v45, %v3961
  %v3963 = vadd.f32 %v3957, %v3962
  %v3964 = vadd.f32 %v3958, %v3962
  %3965 = vst.msk [vmem:[%s5] sm:$0xff] %vm50, %v3963
  %3966 = vst.msk [vmem:[%s5 + $0x8] sm:$0xff] %vm50, %v3964
  // Predicated region
  $region22: #{transformer_decoder_layer.1} parent=0 // pred_check
    _
  $region23: #{transformer_decoder_layer.1} parent=0 // pred_check_branch
    %3968 = sbr.rel (0) target = $region25
  $region24: #{transformer_decoder_layer.1} parent=0 // pred_region
    _
  $region25: #{transformer_decoder_layer.1} parent=0 // pred_fallthru
    _
  // Predicated region
  $region26: #{transformer_decoder_layer.1} parent=0 // pred_check
    _
  $region27: #{transformer_decoder_layer.1} parent=0 // pred_check_branch
    %3970 = sbr.rel (0) target = $region29
  $region28: #{transformer_decoder_layer.1} parent=0 // pred_region
    _
  $region29: #{transformer_decoder_layer.1} parent=0 // pred_fallthru
    _

</llo_original>
